<compile_context>
chip_gen: v5e
topology: v5e:2x2
jax: 0.10.0
libtpu: 0.0.40
codegen_flags: <defaults>
</compile_context>

<pallas_src>
import functools

import numpy as np
import jax
import jax.numpy as jnp
from jax.experimental import pallas as pl
from jax.experimental.pallas import tpu as pltpu


def _block_kernel(x_ref, ln1_g_ref, ln1_b_ref, wqkv3_ref, wp3_ref, bp_ref,
                  ln2_g_ref, ln2_b_ref, wfc1_ref, bfc1_ref, wdw_ref, bdw_ref,
                  dwm_ref, wfc2_ref, bfc2_ref,
                  o_ref,
                  *, num_heads, head_dim, H, W, eps):
    """One grid step == one batch element. Residual stream stays f32."""
    f32, bf16 = jnp.float32, jnp.bfloat16
    N = H * W
    C = num_heads * head_dim
    dh = head_dim

    x = x_ref[...]                                                   # (N, C) f32

    # ---------------- LayerNorm 1 (f32) ----------------
    mu = jnp.mean(x, axis=-1, keepdims=True)
    xc = x - mu
    var = jnp.mean(xc * xc, axis=-1, keepdims=True)
    xn = xc * jax.lax.rsqrt(var + eps) * ln1_g_ref[...] + ln1_b_ref[...]

    # ---------------- Attention (sr_ratio=1, linear=False) ----------------
    # Heads are the leading batch dim of every contraction; softmax scale is
    # pre-folded into the Q columns of the per-head fused QKV weight.
    xnb = jnp.broadcast_to(xn.astype(bf16)[None], (num_heads, N, C))
    qkv3 = jnp.einsum('hnc,hcf->hnf', xnb, wqkv3_ref[...],
                      preferred_element_type=f32)                    # (nh, N, 3dh)
    q3 = qkv3[..., :dh].astype(bf16)                                 # (nh, N, dh) (scaled)
    k3 = qkv3[..., dh:2 * dh].astype(bf16)
    v3 = qkv3[..., 2 * dh:].astype(bf16)

    s = jnp.einsum('hnd,hmd->hnm', q3, k3,
                   preferred_element_type=f32)                       # (nh, N, N)
    m = jnp.max(s, axis=-1, keepdims=True)
    p = jnp.exp(s - m)
    p = p * pl.reciprocal(jnp.sum(p, axis=-1, keepdims=True), approx=True)

    ctx3 = jnp.einsum('hnm,hmd->hnd', p.astype(bf16), v3,
                      preferred_element_type=f32)                    # (nh, N, dh)
    # Output projection as a batched per-head contraction + head reduction:
    #   out[n,c] = sum_h sum_d ctx3[h,n,d] * Wp[h*dh+d, c]
    attn = jnp.sum(
        jnp.einsum('hnd,hdc->hnc', ctx3.astype(bf16), wp3_ref[...],
                   preferred_element_type=f32),
        axis=0) + bp_ref[...]                                        # (N, C)
    x1 = x + attn                                                    # residual 1

    # ---------------- LayerNorm 2 (f32) ----------------
    mu2 = jnp.mean(x1, axis=-1, keepdims=True)
    yc = x1 - mu2
    var2 = jnp.mean(yc * yc, axis=-1, keepdims=True)
    yn = yc * jax.lax.rsqrt(var2 + eps) * ln2_g_ref[...] + ln2_b_ref[...]

    # ---------------- MLP: fc1 -> depthwise 3x3 conv -> GELU -> fc2 ----------------
    h1 = jnp.dot(yn.astype(bf16), wfc1_ref[...],
                 preferred_element_type=f32) + bfc1_ref[...]         # (N, hidden) f32

    # Depthwise 3x3 conv (zero padding) via 9 shifted multiply-accumulates:
    #   d[n,c] = sum_{dy,dx} valid(n,dy,dx) * h1[n + dy*W + dx, c] * w[dy,dx,c] + b[c]
    # Shifts use pltpu.roll on the sublane axis (XLU slot); host-built masks kill
    # the circular wrap-around / out-of-bounds taps.
    wdw = wdw_ref[...]                                               # (9, hidden) f32
    dwm = dwm_ref[...]                                               # (N, 9)      f32
    d = h1 * wdw[4:5, :] + bdw_ref[...]                              # center tap (always valid)
    t = 0
    for dy in (-1, 0, 1):
        for dx in (-1, 0, 1):
            if dy == 0 and dx == 0:
                t += 1
                continue
            off = dy * W + dx
            shifted = pltpu.roll(h1, shift=(-off) % N, axis=0)       # shifted[n] = h1[n+off]
            d = d + shifted * wdw[t:t + 1, :] * dwm[:, t:t + 1]
            t += 1

    # GELU (tanh approximation)
    # TODO(synk): torch nn.GELU() default is the exact erf form; erf lowering is not
    # guaranteed in Mosaic, so the tanh approximation (<1e-3 abs difference) is used.
    c0 = 0.7978845608028654  # sqrt(2/pi)
    g = 0.5 * d * (1.0 + jnp.tanh(c0 * (d + 0.044715 * d * d * d)))

    h2 = jnp.dot(g.astype(bf16), wfc2_ref[...],
                 preferred_element_type=f32) + bfc2_ref[...]         # (N, C)

    o_ref[...] = (x1 + h2).astype(o_ref.dtype)                       # residual 2


def _dwconv_masks(H, W):
    """mask[n, t] = 1 iff the t-th 3x3 neighbour of flattened position n is in-bounds."""
    N = H * W
    rows, cols = np.arange(N) // W, np.arange(N) % W
    m = np.zeros((N, 9), np.float32)
    t = 0
    for dy in (-1, 0, 1):
        for dx in (-1, 0, 1):
            valid = (rows + dy >= 0) & (rows + dy < H) & (cols + dx >= 0) & (cols + dx < W)
            m[:, t] = valid.astype(np.float32)
            t += 1
    return jnp.asarray(m)


def block_pallas(x, params, *, H, W, num_heads):
    B, N, C = x.shape
    assert N == H * W and C % num_heads == 0
    dh = C // num_heads
    scale = dh ** (-0.5)
    hidden = params["wfc1_t"].shape[1]
    bf16 = jnp.bfloat16

    # Host-side (amortized) prep: per-head fused Q|K|V weight with the softmax scale
    # folded into Q, per-head output-projection weight, flattened dwconv weight,
    # and the conv boundary masks. MXU operands are pre-cast to bf16.
    wq = params["wq_t"] * scale                                      # (C, C)
    wk = params["wkv_t"][:, :C]
    wv = params["wkv_t"][:, C:]
    wqkv3 = jnp.stack(
        [jnp.concatenate([wq[:, h * dh:(h + 1) * dh],
                          wk[:, h * dh:(h + 1) * dh],
                          wv[:, h * dh:(h + 1) * dh]], axis=1)
         for h in range(num_heads)], axis=0).astype(bf16)            # (nh, C, 3dh)
    wp3 = params["wp_t"].reshape(num_heads, dh, C).astype(bf16)      # (nh, dh, C)
    wfc1 = params["wfc1_t"].astype(bf16)                             # (C, hidden)
    wfc2 = params["wfc2_t"].astype(bf16)                             # (hidden, C)
    wdw9 = params["wdw"].reshape(9, hidden)                          # f32 (elementwise)
    dwmask = _dwconv_masks(H, W)                                     # (N, 9) f32

    row = lambda v: v.reshape(1, -1)

    args = (
        x,
        row(params["ln1_g"]), row(params["ln1_b"]),
        wqkv3, wp3, row(params["bp"]),
        row(params["ln2_g"]), row(params["ln2_b"]),
        wfc1, row(params["bfc1"]),
        wdw9, row(params["bdw"]), dwmask,
        wfc2, row(params["bfc2"]),
    )

    def const_spec(a):
        nd = a.ndim
        return pl.BlockSpec(a.shape, lambda b, _nd=nd: (0,) * _nd)

    kernel = functools.partial(_block_kernel, num_heads=num_heads, head_dim=dh,
                               H=H, W=W, eps=1e-5)

    return pl.pallas_call(
        kernel,
        out_shape=jax.ShapeDtypeStruct((B, N, C), x.dtype),
        grid=(B,),
        in_specs=[pl.BlockSpec((pl.Squeezed(), N, C), lambda b: (b, 0, 0))]
                 + [const_spec(a) for a in args[1:]],
        out_specs=pl.BlockSpec((pl.Squeezed(), N, C), lambda b: (b, 0, 0)),
        compiler_params=pltpu.CompilerParams(
            dimension_semantics=("parallel",)),
    )(*args)


# ----------------------------- pure-JAX reference -----------------------------
def _layernorm(x, g, b, eps=1e-5):
    mu = jnp.mean(x, axis=-1, keepdims=True)
    var = jnp.mean((x - mu) ** 2, axis=-1, keepdims=True)
    return (x - mu) * jax.lax.rsqrt(var + eps) * g + b


def _gelu_tanh(x):
    c0 = 0.7978845608028654
    return 0.5 * x * (1.0 + jnp.tanh(c0 * (x + 0.044715 * x ** 3)))


def block_ref(x, p, *, H, W, num_heads):
    B, N, C = x.shape
    dh = C // num_heads
    scale = dh ** (-0.5)
    hidden = p["wfc1_t"].shape[1]

    xn = _layernorm(x, p["ln1_g"], p["ln1_b"])
    q = (xn @ p["wq_t"]).reshape(B, N, num_heads, dh).transpose(0, 2, 1, 3)
    kv = xn @ p["wkv_t"]
    k = kv[..., :C].reshape(B, N, num_heads, dh).transpose(0, 2, 1, 3)
    v = kv[..., C:].reshape(B, N, num_heads, dh).transpose(0, 2, 1, 3)
    attn = (q @ jnp.swapaxes(k, -2, -1)) * scale
    attn = jax.nn.softmax(attn, axis=-1)
    a = (attn @ v).transpose(0, 2, 1, 3).reshape(B, N, C)
    x1 = x + a @ p["wp_t"] + p["bp"]

    yn = _layernorm(x1, p["ln2_g"], p["ln2_b"])
    h1 = yn @ p["wfc1_t"] + p["bfc1"]
    hs = h1.reshape(B, H, W, hidden)
    conv = jax.lax.conv_general_dilated(
        hs, p["wdw"].reshape(3, 3, 1, hidden), window_strides=(1, 1),
        padding="SAME", dimension_numbers=("NHWC", "HWIO", "NHWC"),
        feature_group_count=hidden)
    d = (conv + p["bdw"]).reshape(B, N, hidden)
    h2 = _gelu_tanh(d) @ p["wfc2_t"] + p["bfc2"]
    return x1 + h2


if __name__ == "__main__":
    B, H, W = 2, 8, 8
    N = H * W
    dim, num_heads, mlp_ratio = 32, 8, 4
    hidden = dim * mlp_ratio

    key = jax.random.PRNGKey(0)
    ks = jax.random.split(key, 16)

    x = jax.random.normal(ks[0], (B, N, dim), dtype=jnp.float32)

    params = dict(
        ln1_g=1.0 + 0.1 * jax.random.normal(ks[1], (dim,), jnp.float32),
        ln1_b=0.1 * jax.random.normal(ks[2], (dim,), jnp.float32),
        wq_t=0.02 * jax.random.normal(ks[3], (dim, dim), jnp.float32),
        wkv_t=0.02 * jax.random.normal(ks[4], (dim, 2 * dim), jnp.float32),
        wp_t=0.02 * jax.random.normal(ks[5], (dim, dim), jnp.float32),
        bp=0.02 * jax.random.normal(ks[6], (dim,), jnp.float32),
        ln2_g=1.0 + 0.1 * jax.random.normal(ks[7], (dim,), jnp.float32),
        ln2_b=0.1 * jax.random.normal(ks[8], (dim,), jnp.float32),
        wfc1_t=0.02 * jax.random.normal(ks[9], (dim, hidden), jnp.float32),
        bfc1=0.02 * jax.random.normal(ks[10], (hidden,), jnp.float32),
        wdw=(2.0 / 9.0) ** 0.5 * jax.random.normal(ks[11], (3, 3, hidden), jnp.float32),
        bdw=0.02 * jax.random.normal(ks[12], (hidden,), jnp.float32),
        wfc2_t=0.02 * jax.random.normal(ks[13], (hidden, dim), jnp.float32),
        bfc2=0.02 * jax.random.normal(ks[14], (dim,), jnp.float32),
    )

    out = block_pallas(x, params, H=H, W=W, num_heads=num_heads)
    out = jax.block_until_ready(out)

    ref = block_ref(x, params, H=H, W=W, num_heads=num_heads)
    assert out.shape == (B, N, dim)
    # bf16 MXU operands (f32 accumulation) vs a pure-f32 reference -> ~1e-4 abs error.
    assert jnp.allclose(out, ref, atol=5e-3, rtol=5e-3), \
        f"mismatch vs reference: max abs err {jnp.max(jnp.abs(out - ref))}"

    print("KERNEL_OK")
</pallas_src>

<mosaic_0001>
module attributes {stable_mosaic.version = 11 : i64} {
  func.func @_block_kernel(%arg0: i32, %arg1: memref<1x64x32xf32, #tpu.memory_space<vmem>>, %arg2: memref<1x32xf32, #tpu.memory_space<vmem>>, %arg3: memref<1x32xf32, #tpu.memory_space<vmem>>, %arg4: memref<8x32x12xbf16, #tpu.memory_space<vmem>>, %arg5: memref<8x4x32xbf16, #tpu.memory_space<vmem>>, %arg6: memref<1x32xf32, #tpu.memory_space<vmem>>, %arg7: memref<1x32xf32, #tpu.memory_space<vmem>>, %arg8: memref<1x32xf32, #tpu.memory_space<vmem>>, %arg9: memref<32x128xbf16, #tpu.memory_space<vmem>>, %arg10: memref<1x128xf32, #tpu.memory_space<vmem>>, %arg11: memref<9x128xf32, #tpu.memory_space<vmem>>, %arg12: memref<1x128xf32, #tpu.memory_space<vmem>>, %arg13: memref<64x9xf32, #tpu.memory_space<vmem>>, %arg14: memref<128x32xbf16, #tpu.memory_space<vmem>>, %arg15: memref<1x32xf32, #tpu.memory_space<vmem>>, %arg16: memref<1x64x32xf32, #tpu.memory_space<vmem>>) attributes {dimension_semantics = [#tpu.dimension_semantics<parallel>], iteration_bounds = array<i64: 2>, scalar_prefetch = 0 : i64, scratch_operands = 0 : i64, tpu.core_type = #tpu.core_type<tc>, window_params = [{transform_indices = @transform_0, window_bounds = array<i64: 1, 64, 32>}, {pipeline_mode = #tpu.pipeline_mode<synchronous>, transform_indices = @transform_1, window_bounds = array<i64: 1, 32>}, {pipeline_mode = #tpu.pipeline_mode<synchronous>, transform_indices = @transform_2, window_bounds = array<i64: 1, 32>}, {pipeline_mode = #tpu.pipeline_mode<synchronous>, transform_indices = @transform_3, window_bounds = array<i64: 8, 32, 12>}, {pipeline_mode = #tpu.pipeline_mode<synchronous>, transform_indices = @transform_4, window_bounds = array<i64: 8, 4, 32>}, {pipeline_mode = #tpu.pipeline_mode<synchronous>, transform_indices = @transform_5, window_bounds = array<i64: 1, 32>}, {pipeline_mode = #tpu.pipeline_mode<synchronous>, transform_indices = @transform_6, window_bounds = array<i64: 1, 32>}, {pipeline_mode = #tpu.pipeline_mode<synchronous>, transform_indices = @transform_7, window_bounds = array<i64: 1, 32>}, {pipeline_mode = #tpu.pipeline_mode<synchronous>, transform_indices = @transform_8, window_bounds = array<i64: 32, 128>}, {pipeline_mode = #tpu.pipeline_mode<synchronous>, transform_indices = @transform_9, window_bounds = array<i64: 1, 128>}, {pipeline_mode = #tpu.pipeline_mode<synchronous>, transform_indices = @transform_10, window_bounds = array<i64: 9, 128>}, {pipeline_mode = #tpu.pipeline_mode<synchronous>, transform_indices = @transform_11, window_bounds = array<i64: 1, 128>}, {pipeline_mode = #tpu.pipeline_mode<synchronous>, transform_indices = @transform_12, window_bounds = array<i64: 64, 9>}, {pipeline_mode = #tpu.pipeline_mode<synchronous>, transform_indices = @transform_13, window_bounds = array<i64: 128, 32>}, {pipeline_mode = #tpu.pipeline_mode<synchronous>, transform_indices = @transform_14, window_bounds = array<i64: 1, 32>}, {transform_indices = @transform_15, window_bounds = array<i64: 1, 64, 32>}]} {
    %c0 = arith.constant 0 : index
    %c0_0 = arith.constant 0 : index
    %c0_1 = arith.constant 0 : index
    %0 = vector.load %arg1[%c0, %c0_0, %c0_1] : memref<1x64x32xf32, #tpu.memory_space<vmem>>, vector<1x64x32xf32>
    %1 = vector.shape_cast %0 : vector<1x64x32xf32> to vector<64x32xf32>
    %cst = arith.constant dense<0.000000e+00> : vector<64xf32>
    %2 = vector.multi_reduction <add>, %1, %cst [1] : vector<64x32xf32> to vector<64xf32>
    %3 = vector.shape_cast %2 : vector<64xf32> to vector<64x1xf32>
    %cst_2 = arith.constant 3.200000e+01 : f32
    %4 = vector.broadcast %cst_2 : f32 to vector<64x1xf32>
    %5 = arith.divf %3, %4 : vector<64x1xf32>
    %6 = vector.broadcast %5 : vector<64x1xf32> to vector<64x32xf32>
    %7 = arith.subf %1, %6 : vector<64x32xf32>
    %8 = arith.mulf %7, %7 : vector<64x32xf32>
    %cst_3 = arith.constant dense<0.000000e+00> : vector<64xf32>
    %9 = vector.multi_reduction <add>, %8, %cst_3 [1] : vector<64x32xf32> to vector<64xf32>
    %10 = vector.shape_cast %9 : vector<64xf32> to vector<64x1xf32>
    %cst_4 = arith.constant 3.200000e+01 : f32
    %11 = vector.broadcast %cst_4 : f32 to vector<64x1xf32>
    %12 = arith.divf %10, %11 : vector<64x1xf32>
    %cst_5 = arith.constant 9.99999974E-6 : f32
    %13 = vector.broadcast %cst_5 : f32 to vector<64x1xf32>
    %14 = arith.addf %12, %13 : vector<64x1xf32>
    %15 = math.rsqrt %14 : vector<64x1xf32>
    %16 = vector.broadcast %15 : vector<64x1xf32> to vector<64x32xf32>
    %17 = arith.mulf %7, %16 : vector<64x32xf32>
    %c0_6 = arith.constant 0 : index
    %c0_7 = arith.constant 0 : index
    %18 = vector.load %arg2[%c0_6, %c0_7] : memref<1x32xf32, #tpu.memory_space<vmem>>, vector<1x32xf32>
    %19 = vector.broadcast %18 : vector<1x32xf32> to vector<64x32xf32>
    %20 = arith.mulf %17, %19 : vector<64x32xf32>
    %c0_8 = arith.constant 0 : index
    %c0_9 = arith.constant 0 : index
    %21 = vector.load %arg3[%c0_8, %c0_9] : memref<1x32xf32, #tpu.memory_space<vmem>>, vector<1x32xf32>
    %22 = vector.broadcast %21 : vector<1x32xf32> to vector<64x32xf32>
    %23 = arith.addf %20, %22 : vector<64x32xf32>
    %24 = arith.truncf %23 : vector<64x32xf32> to vector<64x32xbf16>
    %25 = vector.shape_cast %24 : vector<64x32xbf16> to vector<1x64x32xbf16>
    %26 = vector.shape_cast %25 : vector<1x64x32xbf16> to vector<1x64x32xbf16>
    %27 = vector.broadcast %26 : vector<1x64x32xbf16> to vector<8x64x32xbf16>
    %c0_10 = arith.constant 0 : index
    %c0_11 = arith.constant 0 : index
    %c0_12 = arith.constant 0 : index
    %28 = vector.load %arg4[%c0_10, %c0_11, %c0_12] : memref<8x32x12xbf16, #tpu.memory_space<vmem>>, vector<8x32x12xbf16>
    "tpu.trace_start"() <{level = 10 : i32, message = "hnc,hcf->hnf"}> : () -> ()
    %cst_13 = arith.constant dense<0.000000e+00> : vector<8x64x12xf32>
    %29 = tpu.matmul %27, %28, %cst_13 {dimension_numbers = #tpu.dot_dimension_numbers<[2], [1], [1], [2], [0, 0, 0, 1, 1, 2], [0], [0]>} : vector<8x64x32xbf16>, vector<8x32x12xbf16>, vector<8x64x12xf32> -> vector<8x64x12xf32>
    "tpu.trace_stop"() : () -> ()
    %30 = vector.extract_strided_slice %29 {offsets = [0, 0, 0], sizes = [8, 64, 4], strides = [1, 1, 1]} : vector<8x64x12xf32> to vector<8x64x4xf32>
    %31 = arith.truncf %30 : vector<8x64x4xf32> to vector<8x64x4xbf16>
    %32 = vector.extract_strided_slice %29 {offsets = [0, 0, 4], sizes = [8, 64, 4], strides = [1, 1, 1]} : vector<8x64x12xf32> to vector<8x64x4xf32>
    %33 = arith.truncf %32 : vector<8x64x4xf32> to vector<8x64x4xbf16>
    %34 = vector.extract_strided_slice %29 {offsets = [0, 0, 8], sizes = [8, 64, 4], strides = [1, 1, 1]} : vector<8x64x12xf32> to vector<8x64x4xf32>
    %35 = arith.truncf %34 : vector<8x64x4xf32> to vector<8x64x4xbf16>
    "tpu.trace_start"() <{level = 10 : i32, message = "hnd,hmd->hnm"}> : () -> ()
    %cst_14 = arith.constant dense<0.000000e+00> : vector<8x64x64xf32>
    %36 = tpu.matmul %31, %33, %cst_14 {dimension_numbers = #tpu.dot_dimension_numbers<[2], [2], [1], [1], [0, 0, 0, 1, 1, 1], [0], [0]>} : vector<8x64x4xbf16>, vector<8x64x4xbf16>, vector<8x64x64xf32> -> vector<8x64x64xf32>
    "tpu.trace_stop"() : () -> ()
    %cst_15 = arith.constant dense<0xFF800000> : vector<8x64xf32>
    %37 = vector.multi_reduction <maximumf>, %36, %cst_15 [2] : vector<8x64x64xf32> to vector<8x64xf32>
    %38 = vector.shape_cast %37 : vector<8x64xf32> to vector<8x64x1xf32>
    %39 = vector.broadcast %38 : vector<8x64x1xf32> to vector<8x64x64xf32>
    %40 = arith.subf %36, %39 : vector<8x64x64xf32>
    %41 = math.exp %40 : vector<8x64x64xf32>
    %cst_16 = arith.constant dense<0.000000e+00> : vector<8x64xf32>
    %42 = vector.multi_reduction <add>, %41, %cst_16 [2] : vector<8x64x64xf32> to vector<8x64xf32>
    %43 = vector.shape_cast %42 : vector<8x64xf32> to vector<8x64x1xf32>
    %44 = tpu.reciprocal %43 {approx = true} : vector<8x64x1xf32> -> vector<8x64x1xf32>
    %45 = vector.broadcast %44 : vector<8x64x1xf32> to vector<8x64x64xf32>
    %46 = arith.mulf %41, %45 : vector<8x64x64xf32>
    %47 = arith.truncf %46 : vector<8x64x64xf32> to vector<8x64x64xbf16>
    "tpu.trace_start"() <{level = 10 : i32, message = "hnm,hmd->hnd"}> : () -> ()
    %cst_17 = arith.constant dense<0.000000e+00> : vector<8x64x4xf32>
    %48 = tpu.matmul %47, %35, %cst_17 {dimension_numbers = #tpu.dot_dimension_numbers<[2], [1], [1], [2], [0, 0, 0, 1, 1, 2], [0], [0]>} : vector<8x64x64xbf16>, vector<8x64x4xbf16>, vector<8x64x4xf32> -> vector<8x64x4xf32>
    "tpu.trace_stop"() : () -> ()
    %49 = arith.truncf %48 : vector<8x64x4xf32> to vector<8x64x4xbf16>
    %c0_18 = arith.constant 0 : index
    %c0_19 = arith.constant 0 : index
    %c0_20 = arith.constant 0 : index
    %50 = vector.load %arg5[%c0_18, %c0_19, %c0_20] : memref<8x4x32xbf16, #tpu.memory_space<vmem>>, vector<8x4x32xbf16>
    "tpu.trace_start"() <{level = 10 : i32, message = "hnd,hdc->hnc"}> : () -> ()
    %cst_21 = arith.constant dense<0.000000e+00> : vector<8x64x32xf32>
    %51 = tpu.matmul %49, %50, %cst_21 {dimension_numbers = #tpu.dot_dimension_numbers<[2], [1], [1], [2], [0, 0, 0, 1, 1, 2], [0], [0]>} : vector<8x64x4xbf16>, vector<8x4x32xbf16>, vector<8x64x32xf32> -> vector<8x64x32xf32>
    "tpu.trace_stop"() : () -> ()
    %cst_22 = arith.constant dense<0.000000e+00> : vector<64x32xf32>
    %52 = vector.multi_reduction <add>, %51, %cst_22 [0] : vector<8x64x32xf32> to vector<64x32xf32>
    %c0_23 = arith.constant 0 : index
    %c0_24 = arith.constant 0 : index
    %53 = vector.load %arg6[%c0_23, %c0_24] : memref<1x32xf32, #tpu.memory_space<vmem>>, vector<1x32xf32>
    %54 = vector.broadcast %53 : vector<1x32xf32> to vector<64x32xf32>
    %55 = arith.addf %52, %54 : vector<64x32xf32>
    %56 = arith.addf %1, %55 : vector<64x32xf32>
    %cst_25 = arith.constant dense<0.000000e+00> : vector<64xf32>
    %57 = vector.multi_reduction <add>, %56, %cst_25 [1] : vector<64x32xf32> to vector<64xf32>
    %58 = vector.shape_cast %57 : vector<64xf32> to vector<64x1xf32>
    %cst_26 = arith.constant 3.200000e+01 : f32
    %59 = vector.broadcast %cst_26 : f32 to vector<64x1xf32>
    %60 = arith.divf %58, %59 : vector<64x1xf32>
    %61 = vector.broadcast %60 : vector<64x1xf32> to vector<64x32xf32>
    %62 = arith.subf %56, %61 : vector<64x32xf32>
    %63 = arith.mulf %62, %62 : vector<64x32xf32>
    %cst_27 = arith.constant dense<0.000000e+00> : vector<64xf32>
    %64 = vector.multi_reduction <add>, %63, %cst_27 [1] : vector<64x32xf32> to vector<64xf32>
    %65 = vector.shape_cast %64 : vector<64xf32> to vector<64x1xf32>
    %cst_28 = arith.constant 3.200000e+01 : f32
    %66 = vector.broadcast %cst_28 : f32 to vector<64x1xf32>
    %67 = arith.divf %65, %66 : vector<64x1xf32>
    %cst_29 = arith.constant 9.99999974E-6 : f32
    %68 = vector.broadcast %cst_29 : f32 to vector<64x1xf32>
    %69 = arith.addf %67, %68 : vector<64x1xf32>
    %70 = math.rsqrt %69 : vector<64x1xf32>
    %71 = vector.broadcast %70 : vector<64x1xf32> to vector<64x32xf32>
    %72 = arith.mulf %62, %71 : vector<64x32xf32>
    %c0_30 = arith.constant 0 : index
    %c0_31 = arith.constant 0 : index
    %73 = vector.load %arg7[%c0_30, %c0_31] : memref<1x32xf32, #tpu.memory_space<vmem>>, vector<1x32xf32>
    %74 = vector.broadcast %73 : vector<1x32xf32> to vector<64x32xf32>
    %75 = arith.mulf %72, %74 : vector<64x32xf32>
    %c0_32 = arith.constant 0 : index
    %c0_33 = arith.constant 0 : index
    %76 = vector.load %arg8[%c0_32, %c0_33] : memref<1x32xf32, #tpu.memory_space<vmem>>, vector<1x32xf32>
    %77 = vector.broadcast %76 : vector<1x32xf32> to vector<64x32xf32>
    %78 = arith.addf %75, %77 : vector<64x32xf32>
    %79 = arith.truncf %78 : vector<64x32xf32> to vector<64x32xbf16>
    %c0_34 = arith.constant 0 : index
    %c0_35 = arith.constant 0 : index
    %80 = vector.load %arg9[%c0_34, %c0_35] : memref<32x128xbf16, #tpu.memory_space<vmem>>, vector<32x128xbf16>
    %cst_36 = arith.constant dense<0.000000e+00> : vector<64x128xf32>
    %81 = tpu.matmul %79, %80, %cst_36 {dimension_numbers = #tpu.dot_dimension_numbers<[1], [0], [0], [1], [0, 0, 1, 1], [], []>} : vector<64x32xbf16>, vector<32x128xbf16>, vector<64x128xf32> -> vector<64x128xf32>
    %c0_37 = arith.constant 0 : index
    %c0_38 = arith.constant 0 : index
    %82 = vector.load %arg10[%c0_37, %c0_38] : memref<1x128xf32, #tpu.memory_space<vmem>>, vector<1x128xf32>
    %83 = vector.broadcast %82 : vector<1x128xf32> to vector<64x128xf32>
    %84 = arith.addf %81, %83 : vector<64x128xf32>
    %c0_39 = arith.constant 0 : index
    %c0_40 = arith.constant 0 : index
    %85 = vector.load %arg11[%c0_39, %c0_40] : memref<9x128xf32, #tpu.memory_space<vmem>>, vector<9x128xf32>
    %c0_41 = arith.constant 0 : index
    %c0_42 = arith.constant 0 : index
    %86 = vector.load %arg13[%c0_41, %c0_42] : memref<64x9xf32, #tpu.memory_space<vmem>>, vector<64x9xf32>
    %87 = vector.extract_strided_slice %85 {offsets = [4, 0], sizes = [1, 128], strides = [1, 1]} : vector<9x128xf32> to vector<1x128xf32>
    %88 = vector.broadcast %87 : vector<1x128xf32> to vector<64x128xf32>
    %89 = arith.mulf %84, %88 : vector<64x128xf32>
    %c0_43 = arith.constant 0 : index
    %c0_44 = arith.constant 0 : index
    %90 = vector.load %arg12[%c0_43, %c0_44] : memref<1x128xf32, #tpu.memory_space<vmem>>, vector<1x128xf32>
    %91 = vector.broadcast %90 : vector<1x128xf32> to vector<64x128xf32>
    %92 = arith.addf %89, %91 : vector<64x128xf32>
    %c9_i32 = arith.constant 9 : i32
    %93 = tpu.dynamic_rotate %84 by %c9_i32 dim 0 : vector<64x128xf32>, i32 -> vector<64x128xf32>
    %94 = vector.extract_strided_slice %85 {offsets = [0, 0], sizes = [1, 128], strides = [1, 1]} : vector<9x128xf32> to vector<1x128xf32>
    %95 = vector.broadcast %94 : vector<1x128xf32> to vector<64x128xf32>
    %96 = arith.mulf %93, %95 : vector<64x128xf32>
    %97 = vector.extract_strided_slice %86 {offsets = [0, 0], sizes = [64, 1], strides = [1, 1]} : vector<64x9xf32> to vector<64x1xf32>
    %98 = vector.broadcast %97 : vector<64x1xf32> to vector<64x128xf32>
    %99 = arith.mulf %96, %98 : vector<64x128xf32>
    %100 = arith.addf %92, %99 : vector<64x128xf32>
    %c8_i32 = arith.constant 8 : i32
    %101 = tpu.dynamic_rotate %84 by %c8_i32 dim 0 : vector<64x128xf32>, i32 -> vector<64x128xf32>
    %102 = vector.extract_strided_slice %85 {offsets = [1, 0], sizes = [1, 128], strides = [1, 1]} : vector<9x128xf32> to vector<1x128xf32>
    %103 = vector.broadcast %102 : vector<1x128xf32> to vector<64x128xf32>
    %104 = arith.mulf %101, %103 : vector<64x128xf32>
    %105 = vector.extract_strided_slice %86 {offsets = [0, 1], sizes = [64, 1], strides = [1, 1]} : vector<64x9xf32> to vector<64x1xf32>
    %106 = vector.broadcast %105 : vector<64x1xf32> to vector<64x128xf32>
    %107 = arith.mulf %104, %106 : vector<64x128xf32>
    %108 = arith.addf %100, %107 : vector<64x128xf32>
    %c7_i32 = arith.constant 7 : i32
    %109 = tpu.dynamic_rotate %84 by %c7_i32 dim 0 : vector<64x128xf32>, i32 -> vector<64x128xf32>
    %110 = vector.extract_strided_slice %85 {offsets = [2, 0], sizes = [1, 128], strides = [1, 1]} : vector<9x128xf32> to vector<1x128xf32>
    %111 = vector.broadcast %110 : vector<1x128xf32> to vector<64x128xf32>
    %112 = arith.mulf %109, %111 : vector<64x128xf32>
    %113 = vector.extract_strided_slice %86 {offsets = [0, 2], sizes = [64, 1], strides = [1, 1]} : vector<64x9xf32> to vector<64x1xf32>
    %114 = vector.broadcast %113 : vector<64x1xf32> to vector<64x128xf32>
    %115 = arith.mulf %112, %114 : vector<64x128xf32>
    %116 = arith.addf %108, %115 : vector<64x128xf32>
    %c1_i32 = arith.constant 1 : i32
    %117 = tpu.dynamic_rotate %84 by %c1_i32 dim 0 : vector<64x128xf32>, i32 -> vector<64x128xf32>
    %118 = vector.extract_strided_slice %85 {offsets = [3, 0], sizes = [1, 128], strides = [1, 1]} : vector<9x128xf32> to vector<1x128xf32>
    %119 = vector.broadcast %118 : vector<1x128xf32> to vector<64x128xf32>
    %120 = arith.mulf %117, %119 : vector<64x128xf32>
    %121 = vector.extract_strided_slice %86 {offsets = [0, 3], sizes = [64, 1], strides = [1, 1]} : vector<64x9xf32> to vector<64x1xf32>
    %122 = vector.broadcast %121 : vector<64x1xf32> to vector<64x128xf32>
    %123 = arith.mulf %120, %122 : vector<64x128xf32>
    %124 = arith.addf %116, %123 : vector<64x128xf32>
    %c63_i32 = arith.constant 63 : i32
    %125 = tpu.dynamic_rotate %84 by %c63_i32 dim 0 : vector<64x128xf32>, i32 -> vector<64x128xf32>
    %126 = vector.extract_strided_slice %85 {offsets = [5, 0], sizes = [1, 128], strides = [1, 1]} : vector<9x128xf32> to vector<1x128xf32>
    %127 = vector.broadcast %126 : vector<1x128xf32> to vector<64x128xf32>
    %128 = arith.mulf %125, %127 : vector<64x128xf32>
    %129 = vector.extract_strided_slice %86 {offsets = [0, 5], sizes = [64, 1], strides = [1, 1]} : vector<64x9xf32> to vector<64x1xf32>
    %130 = vector.broadcast %129 : vector<64x1xf32> to vector<64x128xf32>
    %131 = arith.mulf %128, %130 : vector<64x128xf32>
    %132 = arith.addf %124, %131 : vector<64x128xf32>
    %c57_i32 = arith.constant 57 : i32
    %133 = tpu.dynamic_rotate %84 by %c57_i32 dim 0 : vector<64x128xf32>, i32 -> vector<64x128xf32>
    %134 = vector.extract_strided_slice %85 {offsets = [6, 0], sizes = [1, 128], strides = [1, 1]} : vector<9x128xf32> to vector<1x128xf32>
    %135 = vector.broadcast %134 : vector<1x128xf32> to vector<64x128xf32>
    %136 = arith.mulf %133, %135 : vector<64x128xf32>
    %137 = vector.extract_strided_slice %86 {offsets = [0, 6], sizes = [64, 1], strides = [1, 1]} : vector<64x9xf32> to vector<64x1xf32>
    %138 = vector.broadcast %137 : vector<64x1xf32> to vector<64x128xf32>
    %139 = arith.mulf %136, %138 : vector<64x128xf32>
    %140 = arith.addf %132, %139 : vector<64x128xf32>
    %c56_i32 = arith.constant 56 : i32
    %141 = tpu.dynamic_rotate %84 by %c56_i32 dim 0 : vector<64x128xf32>, i32 -> vector<64x128xf32>
    %142 = vector.extract_strided_slice %85 {offsets = [7, 0], sizes = [1, 128], strides = [1, 1]} : vector<9x128xf32> to vector<1x128xf32>
    %143 = vector.broadcast %142 : vector<1x128xf32> to vector<64x128xf32>
    %144 = arith.mulf %141, %143 : vector<64x128xf32>
    %145 = vector.extract_strided_slice %86 {offsets = [0, 7], sizes = [64, 1], strides = [1, 1]} : vector<64x9xf32> to vector<64x1xf32>
    %146 = vector.broadcast %145 : vector<64x1xf32> to vector<64x128xf32>
    %147 = arith.mulf %144, %146 : vector<64x128xf32>
    %148 = arith.addf %140, %147 : vector<64x128xf32>
    %c55_i32 = arith.constant 55 : i32
    %149 = tpu.dynamic_rotate %84 by %c55_i32 dim 0 : vector<64x128xf32>, i32 -> vector<64x128xf32>
    %150 = vector.extract_strided_slice %85 {offsets = [8, 0], sizes = [1, 128], strides = [1, 1]} : vector<9x128xf32> to vector<1x128xf32>
    %151 = vector.broadcast %150 : vector<1x128xf32> to vector<64x128xf32>
    %152 = arith.mulf %149, %151 : vector<64x128xf32>
    %153 = vector.extract_strided_slice %86 {offsets = [0, 8], sizes = [64, 1], strides = [1, 1]} : vector<64x9xf32> to vector<64x1xf32>
    %154 = vector.broadcast %153 : vector<64x1xf32> to vector<64x128xf32>
    %155 = arith.mulf %152, %154 : vector<64x128xf32>
    %156 = arith.addf %148, %155 : vector<64x128xf32>
    %cst_45 = arith.constant 5.000000e-01 : f32
    %157 = vector.broadcast %cst_45 : f32 to vector<64x128xf32>
    %158 = arith.mulf %157, %156 : vector<64x128xf32>
    %cst_46 = arith.constant 4.471500e-02 : f32
    %159 = vector.broadcast %cst_46 : f32 to vector<64x128xf32>
    %160 = arith.mulf %159, %156 : vector<64x128xf32>
    %161 = arith.mulf %160, %156 : vector<64x128xf32>
    %162 = arith.mulf %161, %156 : vector<64x128xf32>
    %163 = arith.addf %156, %162 : vector<64x128xf32>
    %cst_47 = arith.constant 0.797884583 : f32
    %164 = vector.broadcast %cst_47 : f32 to vector<64x128xf32>
    %165 = arith.mulf %164, %163 : vector<64x128xf32>
    %166 = math.tanh %165 : vector<64x128xf32>
    %cst_48 = arith.constant 1.000000e+00 : f32
    %167 = vector.broadcast %cst_48 : f32 to vector<64x128xf32>
    %168 = arith.addf %167, %166 : vector<64x128xf32>
    %169 = arith.mulf %158, %168 : vector<64x128xf32>
    %170 = arith.truncf %169 : vector<64x128xf32> to vector<64x128xbf16>
    %c0_49 = arith.constant 0 : index
    %c0_50 = arith.constant 0 : index
    %171 = vector.load %arg14[%c0_49, %c0_50] : memref<128x32xbf16, #tpu.memory_space<vmem>>, vector<128x32xbf16>
    %cst_51 = arith.constant dense<0.000000e+00> : vector<64x32xf32>
    %172 = tpu.matmul %170, %171, %cst_51 {dimension_numbers = #tpu.dot_dimension_numbers<[1], [0], [0], [1], [0, 0, 1, 1], [], []>} : vector<64x128xbf16>, vector<128x32xbf16>, vector<64x32xf32> -> vector<64x32xf32>
    %c0_52 = arith.constant 0 : index
    %c0_53 = arith.constant 0 : index
    %173 = vector.load %arg15[%c0_52, %c0_53] : memref<1x32xf32, #tpu.memory_space<vmem>>, vector<1x32xf32>
    %174 = vector.broadcast %173 : vector<1x32xf32> to vector<64x32xf32>
    %175 = arith.addf %172, %174 : vector<64x32xf32>
    %176 = arith.addf %56, %175 : vector<64x32xf32>
    %c0_54 = arith.constant 0 : index
    %c0_55 = arith.constant 0 : index
    %c0_56 = arith.constant 0 : index
    %177 = vector.load %arg16[%c0_54, %c0_55, %c0_56] : memref<1x64x32xf32, #tpu.memory_space<vmem>>, vector<1x64x32xf32>
    %178 = vector.shape_cast %177 : vector<1x64x32xf32> to vector<64x32xf32>
    %179 = vector.shape_cast %176 : vector<64x32xf32> to vector<1x64x32xf32>
    tpu.vector_store %arg16[%c0_54, %c0_55, %c0_56], %179 {strides = array<i32>} : memref<1x64x32xf32, #tpu.memory_space<vmem>>, vector<1x64x32xf32>,
    return
  }
  func.func @transform_0(%arg0: i32) -> (i32, i32, i32) {
    %c0_i32 = arith.constant 0 : i32
    %c0_i32_0 = arith.constant 0 : i32
    %c0_i32_1 = arith.constant 0 : i32
    return %arg0, %c0_i32, %c0_i32_0 : i32, i32, i32
  }
  func.func @transform_1(%arg0: i32) -> (i32, i32) {
    %c0_i32 = arith.constant 0 : i32
    %c0_i32_0 = arith.constant 0 : i32
    %c0_i32_1 = arith.constant 0 : i32
    return %c0_i32, %c0_i32_0 : i32, i32
  }
  func.func @transform_2(%arg0: i32) -> (i32, i32) {
    %c0_i32 = arith.constant 0 : i32
    %c0_i32_0 = arith.constant 0 : i32
    %c0_i32_1 = arith.constant 0 : i32
    return %c0_i32, %c0_i32_0 : i32, i32
  }
  func.func @transform_3(%arg0: i32) -> (i32, i32, i32) {
    %c0_i32 = arith.constant 0 : i32
    %c0_i32_0 = arith.constant 0 : i32
    %c0_i32_1 = arith.constant 0 : i32
    %c0_i32_2 = arith.constant 0 : i32
    return %c0_i32, %c0_i32_0, %c0_i32_1 : i32, i32, i32
  }
  func.func @transform_4(%arg0: i32) -> (i32, i32, i32) {
    %c0_i32 = arith.constant 0 : i32
    %c0_i32_0 = arith.constant 0 : i32
    %c0_i32_1 = arith.constant 0 : i32
    %c0_i32_2 = arith.constant 0 : i32
    return %c0_i32, %c0_i32_0, %c0_i32_1 : i32, i32, i32
  }
  func.func @transform_5(%arg0: i32) -> (i32, i32) {
    %c0_i32 = arith.constant 0 : i32
    %c0_i32_0 = arith.constant 0 : i32
    %c0_i32_1 = arith.constant 0 : i32
    return %c0_i32, %c0_i32_0 : i32, i32
  }
  func.func @transform_6(%arg0: i32) -> (i32, i32) {
    %c0_i32 = arith.constant 0 : i32
    %c0_i32_0 = arith.constant 0 : i32
    %c0_i32_1 = arith.constant 0 : i32
    return %c0_i32, %c0_i32_0 : i32, i32
  }
  func.func @transform_7(%arg0: i32) -> (i32, i32) {
    %c0_i32 = arith.constant 0 : i32
    %c0_i32_0 = arith.constant 0 : i32
    %c0_i32_1 = arith.constant 0 : i32
    return %c0_i32, %c0_i32_0 : i32, i32
  }
  func.func @transform_8(%arg0: i32) -> (i32, i32) {
    %c0_i32 = arith.constant 0 : i32
    %c0_i32_0 = arith.constant 0 : i32
    %c0_i32_1 = arith.constant 0 : i32
    return %c0_i32, %c0_i32_0 : i32, i32
  }
  func.func @transform_9(%arg0: i32) -> (i32, i32) {
    %c0_i32 = arith.constant 0 : i32
    %c0_i32_0 = arith.constant 0 : i32
    %c0_i32_1 = arith.constant 0 : i32
    return %c0_i32, %c0_i32_0 : i32, i32
  }
  func.func @transform_10(%arg0: i32) -> (i32, i32) {
    %c0_i32 = arith.constant 0 : i32
    %c0_i32_0 = arith.constant 0 : i32
    %c0_i32_1 = arith.constant 0 : i32
    return %c0_i32, %c0_i32_0 : i32, i32
  }
  func.func @transform_11(%arg0: i32) -> (i32, i32) {
    %c0_i32 = arith.constant 0 : i32
    %c0_i32_0 = arith.constant 0 : i32
    %c0_i32_1 = arith.constant 0 : i32
    return %c0_i32, %c0_i32_0 : i32, i32
  }
  func.func @transform_12(%arg0: i32) -> (i32, i32) {
    %c0_i32 = arith.constant 0 : i32
    %c0_i32_0 = arith.constant 0 : i32
    %c0_i32_1 = arith.constant 0 : i32
    return %c0_i32, %c0_i32_0 : i32, i32
  }
  func.func @transform_13(%arg0: i32) -> (i32, i32) {
    %c0_i32 = arith.constant 0 : i32
    %c0_i32_0 = arith.constant 0 : i32
    %c0_i32_1 = arith.constant 0 : i32
    return %c0_i32, %c0_i32_0 : i32, i32
  }
  func.func @transform_14(%arg0: i32) -> (i32, i32) {
    %c0_i32 = arith.constant 0 : i32
    %c0_i32_0 = arith.constant 0 : i32
    %c0_i32_1 = arith.constant 0 : i32
    return %c0_i32, %c0_i32_0 : i32, i32
  }
  func.func @transform_15(%arg0: i32) -> (i32, i32, i32) {
    %c0_i32 = arith.constant 0 : i32
    %c0_i32_0 = arith.constant 0 : i32
    %c0_i32_1 = arith.constant 0 : i32
    return %arg0, %c0_i32, %c0_i32_0 : i32, i32, i32
  }
}

</mosaic_0001>

<llo_original>
// kernel: tpu_custom_call.1
$region0: #{tpu_custom_call.1}
  #allocation0 [shape = 'u32[]', space=smem, size = 0x4, offset = 0x4, fixed_abs, tag = 'smem constant byte address 0x4 - core index']
  #allocation1 [shape = 'u32[72,128]{1,0:T(1,128)}', space=vmem, size = 0x9000, scoped, tag = 'internal scratch']
  %s0 = inlined_call_operand.vmem [shape: f32[2,64,32], index: 0, kind: input, shape index: {}]
  %s1 = inlined_call_operand.vmem [shape: f32[1,32], index: 1, kind: input, shape index: {}]
  %s2 = inlined_call_operand.vmem [shape: f32[1,32], index: 2, kind: input, shape index: {}]
  %s3 = inlined_call_operand.vmem [shape: bf16[8,32,12], index: 3, kind: input, shape index: {}]
  %s4 = inlined_call_operand.vmem [shape: bf16[8,4,32], index: 4, kind: input, shape index: {}]
  %s5 = inlined_call_operand.vmem [shape: f32[1,32], index: 5, kind: input, shape index: {}]
  %s6 = inlined_call_operand.vmem [shape: f32[1,32], index: 6, kind: input, shape index: {}]
  %s7 = inlined_call_operand.vmem [shape: f32[1,32], index: 7, kind: input, shape index: {}]
  %s8 = inlined_call_operand.vmem [shape: bf16[32,128], index: 8, kind: input, shape index: {}]
  %s9 = inlined_call_operand.vmem [shape: f32[1,128], index: 9, kind: input, shape index: {}]
  %s10 = inlined_call_operand.vmem [shape: f32[9,128], index: 10, kind: input, shape index: {}]
  %s11 = inlined_call_operand.vmem [shape: f32[1,128], index: 11, kind: input, shape index: {}]
  %s12 = inlined_call_operand.vmem [shape: f32[64,9], index: 12, kind: input, shape index: {}]
  %s13 = inlined_call_operand.vmem [shape: bf16[128,32], index: 13, kind: input, shape index: {}]
  %s14 = inlined_call_operand.vmem [shape: f32[1,32], index: 14, kind: input, shape index: {}]
  %s15 = inlined_call_operand.vmem [shape: f32[2,64,32], index: 15, kind: output, shape index: {}]
  %s16 = sld [smem:[#allocation0]]
  $region93: #{tpu_custom_call.1} parent=0
    _
  %s18 = ssub.s32 1, %s16
  %s19 = scalar_select 0, %s18, %s16
  loop: start=0, step=1, limit=4
  $region2: #{tpu_custom_call.1} parent=0 // loop_pre_header
    _
  $region3: #{tpu_custom_call.1} parent=0 // loop_header
    %s21 = sphi 0, %s25
    %p22 = scmp.ge.s32.totalorder %s21, 4
    %s31 = sphi 0, %s33
    %s34 = sphi 0, %s31
    %s35 = sphi 0, %s34
    %s51 = sphi 0, %s35
    %s55 = sphi 0, %s55
    %s57 = sphi 0, %s55
    %s58 = sphi 0, %s57
    %s72 = sphi 0, %s58
    %s76 = sphi 0, %s76
    %s78 = sphi 0, %s76
    %s79 = sphi 0, %s78
    %s93 = sphi 0, %s79
    %s97 = sphi 0, %s97
    %s99 = sphi 0, %s97
    %s100 = sphi 0, %s99
    %s114 = sphi 0, %s100
    %s118 = sphi 0, %s118
    %s120 = sphi 0, %s118
    %s121 = sphi 0, %s120
    %s135 = sphi 0, %s121
    %s139 = sphi 0, %s139
    %s141 = sphi 0, %s139
    %s142 = sphi 0, %s141
    %s156 = sphi 0, %s142
    %s160 = sphi 0, %s160
    %s162 = sphi 0, %s160
    %s163 = sphi 0, %s162
    %s177 = sphi 0, %s163
    %s181 = sphi 0, %s181
    %s183 = sphi 0, %s181
    %s184 = sphi 0, %s183
    %s198 = sphi 0, %s184
    %s202 = sphi 0, %s202
    %s204 = sphi 0, %s202
    %s205 = sphi 0, %s204
    %s219 = sphi 0, %s205
    %s223 = sphi 0, %s223
    %s225 = sphi 0, %s223
    %s226 = sphi 0, %s225
    %s240 = sphi 0, %s226
    %s244 = sphi 0, %s244
    %s246 = sphi 0, %s244
    %s247 = sphi 0, %s246
    %s261 = sphi 0, %s247
    %s265 = sphi 0, %s265
    %s267 = sphi 0, %s265
    %s268 = sphi 0, %s267
    %s282 = sphi 0, %s268
    %s286 = sphi 0, %s286
    %s288 = sphi 0, %s286
    %s289 = sphi 0, %s288
    %s303 = sphi 0, %s289
    %s307 = sphi 0, %s307
    %s309 = sphi 0, %s307
    %s310 = sphi 0, %s309
    %s324 = sphi 0, %s310
    %s328 = sphi 0, %s328
    %s330 = sphi 0, %s328
    %s331 = sphi 0, %s330
    %s345 = sphi 0, %s331
    %s351 = sphi 0, %s353
    %s354 = sphi 0, %s351
    %s355 = sphi 0, %s354
    %s371 = sphi 0, %s355
  $region4: #{tpu_custom_call.1} parent=0 // loop_header_branch
    %24 = sbr.rel (%p22) target = $region8
  $region5: #{tpu_custom_call.1} parent=0 // loop_body
    %s26 = ssub.s32 %s21, 1
    %s27 = ssub.s32 %s21, 2
    %s28 = sadd.s32 %s21, 1
    %s29 = ssub.s32 %s21, %s28
    %p30 = scmp.eq.s32.totalorder %s29, 0
    %s32 = sadd.s32 %s31, 1
    %s33 = scalar_select %p30, %s31, %s32
    %p36 = pneg %p30
    %p37 = scmp.eq.s32.totalorder %s21, 1
    %p38 = por %p36, %p37
    %p39 = scmp.ne.s32.totalorder %s31, %s34
    %p40 = scmp.eq.s32.totalorder %s21, 0
    %p41 = por %p39, %p40
    %p42 = scmp.ne.s32.totalorder %s31, %s34
    %p43 = scmp.eq.s32.totalorder %s26, 1
    %p44 = por %p42, %p43
    %p45 = scmp.ne.s32.totalorder %s34, %s35
    %p46 = scmp.eq.s32.totalorder %s26, 0
    %p47 = por %p45, %p46
    %p48 = scmp.ne.s32.totalorder %s34, %s35
    %p49 = scmp.eq.s32.totalorder %s27, 1
    %p50 = por %p48, %p49
    %p52 = scmp.ne.s32.totalorder %s35, %s51
    %p53 = scmp.eq.s32.totalorder %s27, 0
    %p54 = por %p52, %p53
    %s56 = sadd.s32 %s55, 1
    %p59 = scmp.eq.s32.totalorder %s21, 1
    %p60 = scmp.ne.s32.totalorder %s55, %s57
    %p61 = scmp.eq.s32.totalorder %s21, 0
    %p62 = por %p60, %p61
    %p63 = scmp.ne.s32.totalorder %s55, %s57
    %p64 = scmp.eq.s32.totalorder %s26, 1
    %p65 = por %p63, %p64
    %p66 = scmp.ne.s32.totalorder %s57, %s58
    %p67 = scmp.eq.s32.totalorder %s26, 0
    %p68 = por %p66, %p67
    %p69 = scmp.ne.s32.totalorder %s57, %s58
    %p70 = scmp.eq.s32.totalorder %s27, 1
    %p71 = por %p69, %p70
    %p73 = scmp.ne.s32.totalorder %s58, %s72
    %p74 = scmp.eq.s32.totalorder %s27, 0
    %p75 = por %p73, %p74
    %s77 = sadd.s32 %s76, 1
    %p80 = scmp.eq.s32.totalorder %s21, 1
    %p81 = scmp.ne.s32.totalorder %s76, %s78
    %p82 = scmp.eq.s32.totalorder %s21, 0
    %p83 = por %p81, %p82
    %p84 = scmp.ne.s32.totalorder %s76, %s78
    %p85 = scmp.eq.s32.totalorder %s26, 1
    %p86 = por %p84, %p85
    %p87 = scmp.ne.s32.totalorder %s78, %s79
    %p88 = scmp.eq.s32.totalorder %s26, 0
    %p89 = por %p87, %p88
    %p90 = scmp.ne.s32.totalorder %s78, %s79
    %p91 = scmp.eq.s32.totalorder %s27, 1
    %p92 = por %p90, %p91
    %p94 = scmp.ne.s32.totalorder %s79, %s93
    %p95 = scmp.eq.s32.totalorder %s27, 0
    %p96 = por %p94, %p95
    %s98 = sadd.s32 %s97, 1
    %p101 = scmp.eq.s32.totalorder %s21, 1
    %p102 = scmp.ne.s32.totalorder %s97, %s99
    %p103 = scmp.eq.s32.totalorder %s21, 0
    %p104 = por %p102, %p103
    %p105 = scmp.ne.s32.totalorder %s97, %s99
    %p106 = scmp.eq.s32.totalorder %s26, 1
    %p107 = por %p105, %p106
    %p108 = scmp.ne.s32.totalorder %s99, %s100
    %p109 = scmp.eq.s32.totalorder %s26, 0
    %p110 = por %p108, %p109
    %p111 = scmp.ne.s32.totalorder %s99, %s100
    %p112 = scmp.eq.s32.totalorder %s27, 1
    %p113 = por %p111, %p112
    %p115 = scmp.ne.s32.totalorder %s100, %s114
    %p116 = scmp.eq.s32.totalorder %s27, 0
    %p117 = por %p115, %p116
    %s119 = sadd.s32 %s118, 1
    %p122 = scmp.eq.s32.totalorder %s21, 1
    %p123 = scmp.ne.s32.totalorder %s118, %s120
    %p124 = scmp.eq.s32.totalorder %s21, 0
    %p125 = por %p123, %p124
    %p126 = scmp.ne.s32.totalorder %s118, %s120
    %p127 = scmp.eq.s32.totalorder %s26, 1
    %p128 = por %p126, %p127
    %p129 = scmp.ne.s32.totalorder %s120, %s121
    %p130 = scmp.eq.s32.totalorder %s26, 0
    %p131 = por %p129, %p130
    %p132 = scmp.ne.s32.totalorder %s120, %s121
    %p133 = scmp.eq.s32.totalorder %s27, 1
    %p134 = por %p132, %p133
    %p136 = scmp.ne.s32.totalorder %s121, %s135
    %p137 = scmp.eq.s32.totalorder %s27, 0
    %p138 = por %p136, %p137
    %s140 = sadd.s32 %s139, 1
    %p143 = scmp.eq.s32.totalorder %s21, 1
    %p144 = scmp.ne.s32.totalorder %s139, %s141
    %p145 = scmp.eq.s32.totalorder %s21, 0
    %p146 = por %p144, %p145
    %p147 = scmp.ne.s32.totalorder %s139, %s141
    %p148 = scmp.eq.s32.totalorder %s26, 1
    %p149 = por %p147, %p148
    %p150 = scmp.ne.s32.totalorder %s141, %s142
    %p151 = scmp.eq.s32.totalorder %s26, 0
    %p152 = por %p150, %p151
    %p153 = scmp.ne.s32.totalorder %s141, %s142
    %p154 = scmp.eq.s32.totalorder %s27, 1
    %p155 = por %p153, %p154
    %p157 = scmp.ne.s32.totalorder %s142, %s156
    %p158 = scmp.eq.s32.totalorder %s27, 0
    %p159 = por %p157, %p158
    %s161 = sadd.s32 %s160, 1
    %p164 = scmp.eq.s32.totalorder %s21, 1
    %p165 = scmp.ne.s32.totalorder %s160, %s162
    %p166 = scmp.eq.s32.totalorder %s21, 0
    %p167 = por %p165, %p166
    %p168 = scmp.ne.s32.totalorder %s160, %s162
    %p169 = scmp.eq.s32.totalorder %s26, 1
    %p170 = por %p168, %p169
    %p171 = scmp.ne.s32.totalorder %s162, %s163
    %p172 = scmp.eq.s32.totalorder %s26, 0
    %p173 = por %p171, %p172
    %p174 = scmp.ne.s32.totalorder %s162, %s163
    %p175 = scmp.eq.s32.totalorder %s27, 1
    %p176 = por %p174, %p175
    %p178 = scmp.ne.s32.totalorder %s163, %s177
    %p179 = scmp.eq.s32.totalorder %s27, 0
    %p180 = por %p178, %p179
    %s182 = sadd.s32 %s181, 1
    %p185 = scmp.eq.s32.totalorder %s21, 1
    %p186 = scmp.ne.s32.totalorder %s181, %s183
    %p187 = scmp.eq.s32.totalorder %s21, 0
    %p188 = por %p186, %p187
    %p189 = scmp.ne.s32.totalorder %s181, %s183
    %p190 = scmp.eq.s32.totalorder %s26, 1
    %p191 = por %p189, %p190
    %p192 = scmp.ne.s32.totalorder %s183, %s184
    %p193 = scmp.eq.s32.totalorder %s26, 0
    %p194 = por %p192, %p193
    %p195 = scmp.ne.s32.totalorder %s183, %s184
    %p196 = scmp.eq.s32.totalorder %s27, 1
    %p197 = por %p195, %p196
    %p199 = scmp.ne.s32.totalorder %s184, %s198
    %p200 = scmp.eq.s32.totalorder %s27, 0
    %p201 = por %p199, %p200
    %s203 = sadd.s32 %s202, 1
    %p206 = scmp.eq.s32.totalorder %s21, 1
    %p207 = scmp.ne.s32.totalorder %s202, %s204
    %p208 = scmp.eq.s32.totalorder %s21, 0
    %p209 = por %p207, %p208
    %p210 = scmp.ne.s32.totalorder %s202, %s204
    %p211 = scmp.eq.s32.totalorder %s26, 1
    %p212 = por %p210, %p211
    %p213 = scmp.ne.s32.totalorder %s204, %s205
    %p214 = scmp.eq.s32.totalorder %s26, 0
    %p215 = por %p213, %p214
    %p216 = scmp.ne.s32.totalorder %s204, %s205
    %p217 = scmp.eq.s32.totalorder %s27, 1
    %p218 = por %p216, %p217
    %p220 = scmp.ne.s32.totalorder %s205, %s219
    %p221 = scmp.eq.s32.totalorder %s27, 0
    %p222 = por %p220, %p221
    %s224 = sadd.s32 %s223, 1
    %p227 = scmp.eq.s32.totalorder %s21, 1
    %p228 = scmp.ne.s32.totalorder %s223, %s225
    %p229 = scmp.eq.s32.totalorder %s21, 0
    %p230 = por %p228, %p229
    %p231 = scmp.ne.s32.totalorder %s223, %s225
    %p232 = scmp.eq.s32.totalorder %s26, 1
    %p233 = por %p231, %p232
    %p234 = scmp.ne.s32.totalorder %s225, %s226
    %p235 = scmp.eq.s32.totalorder %s26, 0
    %p236 = por %p234, %p235
    %p237 = scmp.ne.s32.totalorder %s225, %s226
    %p238 = scmp.eq.s32.totalorder %s27, 1
    %p239 = por %p237, %p238
    %p241 = scmp.ne.s32.totalorder %s226, %s240
    %p242 = scmp.eq.s32.totalorder %s27, 0
    %p243 = por %p241, %p242
    %s245 = sadd.s32 %s244, 1
    %p248 = scmp.eq.s32.totalorder %s21, 1
    %p249 = scmp.ne.s32.totalorder %s244, %s246
    %p250 = scmp.eq.s32.totalorder %s21, 0
    %p251 = por %p249, %p250
    %p252 = scmp.ne.s32.totalorder %s244, %s246
    %p253 = scmp.eq.s32.totalorder %s26, 1
    %p254 = por %p252, %p253
    %p255 = scmp.ne.s32.totalorder %s246, %s247
    %p256 = scmp.eq.s32.totalorder %s26, 0
    %p257 = por %p255, %p256
    %p258 = scmp.ne.s32.totalorder %s246, %s247
    %p259 = scmp.eq.s32.totalorder %s27, 1
    %p260 = por %p258, %p259
    %p262 = scmp.ne.s32.totalorder %s247, %s261
    %p263 = scmp.eq.s32.totalorder %s27, 0
    %p264 = por %p262, %p263
    %s266 = sadd.s32 %s265, 1
    %p269 = scmp.eq.s32.totalorder %s21, 1
    %p270 = scmp.ne.s32.totalorder %s265, %s267
    %p271 = scmp.eq.s32.totalorder %s21, 0
    %p272 = por %p270, %p271
    %p273 = scmp.ne.s32.totalorder %s265, %s267
    %p274 = scmp.eq.s32.totalorder %s26, 1
    %p275 = por %p273, %p274
    %p276 = scmp.ne.s32.totalorder %s267, %s268
    %p277 = scmp.eq.s32.totalorder %s26, 0
    %p278 = por %p276, %p277
    %p279 = scmp.ne.s32.totalorder %s267, %s268
    %p280 = scmp.eq.s32.totalorder %s27, 1
    %p281 = por %p279, %p280
    %p283 = scmp.ne.s32.totalorder %s268, %s282
    %p284 = scmp.eq.s32.totalorder %s27, 0
    %p285 = por %p283, %p284
    %s287 = sadd.s32 %s286, 1
    %p290 = scmp.eq.s32.totalorder %s21, 1
    %p291 = scmp.ne.s32.totalorder %s286, %s288
    %p292 = scmp.eq.s32.totalorder %s21, 0
    %p293 = por %p291, %p292
    %p294 = scmp.ne.s32.totalorder %s286, %s288
    %p295 = scmp.eq.s32.totalorder %s26, 1
    %p296 = por %p294, %p295
    %p297 = scmp.ne.s32.totalorder %s288, %s289
    %p298 = scmp.eq.s32.totalorder %s26, 0
    %p299 = por %p297, %p298
    %p300 = scmp.ne.s32.totalorder %s288, %s289
    %p301 = scmp.eq.s32.totalorder %s27, 1
    %p302 = por %p300, %p301
    %p304 = scmp.ne.s32.totalorder %s289, %s303
    %p305 = scmp.eq.s32.totalorder %s27, 0
    %p306 = por %p304, %p305
    %s308 = sadd.s32 %s307, 1
    %p311 = scmp.eq.s32.totalorder %s21, 1
    %p312 = scmp.ne.s32.totalorder %s307, %s309
    %p313 = scmp.eq.s32.totalorder %s21, 0
    %p314 = por %p312, %p313
    %p315 = scmp.ne.s32.totalorder %s307, %s309
    %p316 = scmp.eq.s32.totalorder %s26, 1
    %p317 = por %p315, %p316
    %p318 = scmp.ne.s32.totalorder %s309, %s310
    %p319 = scmp.eq.s32.totalorder %s26, 0
    %p320 = por %p318, %p319
    %p321 = scmp.ne.s32.totalorder %s309, %s310
    %p322 = scmp.eq.s32.totalorder %s27, 1
    %p323 = por %p321, %p322
    %p325 = scmp.ne.s32.totalorder %s310, %s324
    %p326 = scmp.eq.s32.totalorder %s27, 0
    %p327 = por %p325, %p326
    %s329 = sadd.s32 %s328, 1
    %p332 = scmp.eq.s32.totalorder %s21, 1
    %p333 = scmp.ne.s32.totalorder %s328, %s330
    %p334 = scmp.eq.s32.totalorder %s21, 0
    %p335 = por %p333, %p334
    %p336 = scmp.ne.s32.totalorder %s328, %s330
    %p337 = scmp.eq.s32.totalorder %s26, 1
    %p338 = por %p336, %p337
    %p339 = scmp.ne.s32.totalorder %s330, %s331
    %p340 = scmp.eq.s32.totalorder %s26, 0
    %p341 = por %p339, %p340
    %p342 = scmp.ne.s32.totalorder %s330, %s331
    %p343 = scmp.eq.s32.totalorder %s27, 1
    %p344 = por %p342, %p343
    %p346 = scmp.ne.s32.totalorder %s331, %s345
    %p347 = scmp.eq.s32.totalorder %s27, 0
    %p348 = por %p346, %p347
    %s349 = ssub.s32 %s21, %s28
    %p350 = scmp.eq.s32.totalorder %s349, 0
    %s352 = sadd.s32 %s351, 1
    %s353 = scalar_select %p350, %s351, %s352
    %p356 = pneg %p350
    %p357 = scmp.eq.s32.totalorder %s21, 1
    %p358 = por %p356, %p357
    %p359 = scmp.ne.s32.totalorder %s351, %s354
    %p360 = scmp.eq.s32.totalorder %s21, 0
    %p361 = por %p359, %p360
    %p362 = scmp.ne.s32.totalorder %s351, %s354
    %p363 = scmp.eq.s32.totalorder %s26, 1
    %p364 = por %p362, %p363
    %p365 = scmp.ne.s32.totalorder %s354, %s355
    %p366 = scmp.eq.s32.totalorder %s26, 0
    %p367 = por %p365, %p366
    %p368 = scmp.ne.s32.totalorder %s354, %s355
    %p369 = scmp.eq.s32.totalorder %s27, 1
    %p370 = por %p368, %p369
    %p372 = scmp.ne.s32.totalorder %s355, %s371
    %p373 = scmp.eq.s32.totalorder %s27, 0
    %p374 = por %p372, %p373
    %p375 = scmp.le.s32.totalorder 1, %s21
    %p376 = scmp.lt.s32.totalorder %s21, 3
    %p377 = pnand %p375, %p376
    %p378 = pneg %p377
    // Predicated region
    $region9: #{tpu_custom_call.1} parent=5 // pred_check
      _
    $region10: #{tpu_custom_call.1} parent=5 // pred_check_branch
      %380 = sbr.rel (%p377) target = $region12
    $region11: #{tpu_custom_call.1} parent=5 // pred_region
      %s381 = ssub.s32 %s21, 1
      // Predicated region
      $region13: #{tpu_custom_call.1} parent=11 // pred_check
        %p382 = pneg %p68
      $region14: #{tpu_custom_call.1} parent=11 // pred_check_branch
        %384 = sbr.rel (%p382) target = $region16
      $region15: #{tpu_custom_call.1} parent=11 // pred_region
        _
      $region16: #{tpu_custom_call.1} parent=11 // pred_fallthru
        _
      // Predicated region
      $region17: #{tpu_custom_call.1} parent=11 // pred_check
        %p385 = pneg %p89
      $region18: #{tpu_custom_call.1} parent=11 // pred_check_branch
        %387 = sbr.rel (%p385) target = $region20
      $region19: #{tpu_custom_call.1} parent=11 // pred_region
        _
      $region20: #{tpu_custom_call.1} parent=11 // pred_fallthru
        _
      // Predicated region
      $region21: #{tpu_custom_call.1} parent=11 // pred_check
        %p388 = pneg %p110
      $region22: #{tpu_custom_call.1} parent=11 // pred_check_branch
        %390 = sbr.rel (%p388) target = $region24
      $region23: #{tpu_custom_call.1} parent=11 // pred_region
        _
      $region24: #{tpu_custom_call.1} parent=11 // pred_fallthru
        _
      // Predicated region
      $region25: #{tpu_custom_call.1} parent=11 // pred_check
        %p391 = pneg %p131
      $region26: #{tpu_custom_call.1} parent=11 // pred_check_branch
        %393 = sbr.rel (%p391) target = $region28
      $region27: #{tpu_custom_call.1} parent=11 // pred_region
        _
      $region28: #{tpu_custom_call.1} parent=11 // pred_fallthru
        _
      // Predicated region
      $region29: #{tpu_custom_call.1} parent=11 // pred_check
        %p394 = pneg %p152
      $region30: #{tpu_custom_call.1} parent=11 // pred_check_branch
        %396 = sbr.rel (%p394) target = $region32
      $region31: #{tpu_custom_call.1} parent=11 // pred_region
        _
      $region32: #{tpu_custom_call.1} parent=11 // pred_fallthru
        _
      // Predicated region
      $region33: #{tpu_custom_call.1} parent=11 // pred_check
        %p397 = pneg %p173
      $region34: #{tpu_custom_call.1} parent=11 // pred_check_branch
        %399 = sbr.rel (%p397) target = $region36
      $region35: #{tpu_custom_call.1} parent=11 // pred_region
        _
      $region36: #{tpu_custom_call.1} parent=11 // pred_fallthru
        _
      // Predicated region
      $region37: #{tpu_custom_call.1} parent=11 // pred_check
        %p400 = pneg %p194
      $region38: #{tpu_custom_call.1} parent=11 // pred_check_branch
        %402 = sbr.rel (%p400) target = $region40
      $region39: #{tpu_custom_call.1} parent=11 // pred_region
        _
      $region40: #{tpu_custom_call.1} parent=11 // pred_fallthru
        _
      // Predicated region
      $region41: #{tpu_custom_call.1} parent=11 // pred_check
        %p403 = pneg %p215
      $region42: #{tpu_custom_call.1} parent=11 // pred_check_branch
        %405 = sbr.rel (%p403) target = $region44
      $region43: #{tpu_custom_call.1} parent=11 // pred_region
        _
      $region44: #{tpu_custom_call.1} parent=11 // pred_fallthru
        _
      // Predicated region
      $region45: #{tpu_custom_call.1} parent=11 // pred_check
        %p406 = pneg %p236
      $region46: #{tpu_custom_call.1} parent=11 // pred_check_branch
        %408 = sbr.rel (%p406) target = $region48
      $region47: #{tpu_custom_call.1} parent=11 // pred_region
        _
      $region48: #{tpu_custom_call.1} parent=11 // pred_fallthru
        _
      // Predicated region
      $region49: #{tpu_custom_call.1} parent=11 // pred_check
        %p409 = pneg %p257
      $region50: #{tpu_custom_call.1} parent=11 // pred_check_branch
        %411 = sbr.rel (%p409) target = $region52
      $region51: #{tpu_custom_call.1} parent=11 // pred_region
        _
      $region52: #{tpu_custom_call.1} parent=11 // pred_fallthru
        _
      // Predicated region
      $region53: #{tpu_custom_call.1} parent=11 // pred_check
        %p412 = pneg %p278
      $region54: #{tpu_custom_call.1} parent=11 // pred_check_branch
        %414 = sbr.rel (%p412) target = $region56
      $region55: #{tpu_custom_call.1} parent=11 // pred_region
        _
      $region56: #{tpu_custom_call.1} parent=11 // pred_fallthru
        _
      // Predicated region
      $region57: #{tpu_custom_call.1} parent=11 // pred_check
        %p415 = pneg %p299
      $region58: #{tpu_custom_call.1} parent=11 // pred_check_branch
        %417 = sbr.rel (%p415) target = $region60
      $region59: #{tpu_custom_call.1} parent=11 // pred_region
        _
      $region60: #{tpu_custom_call.1} parent=11 // pred_fallthru
        _
      // Predicated region
      $region61: #{tpu_custom_call.1} parent=11 // pred_check
        %p418 = pneg %p320
      $region62: #{tpu_custom_call.1} parent=11 // pred_check_branch
        %420 = sbr.rel (%p418) target = $region64
      $region63: #{tpu_custom_call.1} parent=11 // pred_region
        _
      $region64: #{tpu_custom_call.1} parent=11 // pred_fallthru
        _
      // Predicated region
      $region65: #{tpu_custom_call.1} parent=11 // pred_check
        %p421 = pneg %p341
      $region66: #{tpu_custom_call.1} parent=11 // pred_check_branch
        %423 = sbr.rel (%p421) target = $region68
      $region67: #{tpu_custom_call.1} parent=11 // pred_region
        _
      $region68: #{tpu_custom_call.1} parent=11 // pred_fallthru
        _
    $region12: #{tpu_custom_call.1} parent=5 // pred_fallthru
      _
    %p424 = scmp.lt.s32.totalorder %s21, 2
    // Predicated region
    $region69: #{tpu_custom_call.1} parent=5 // pred_check
      %p425 = pneg %p424
    $region70: #{tpu_custom_call.1} parent=5 // pred_check_branch
      %427 = sbr.rel (%p425) target = $region72
    $region71: #{tpu_custom_call.1} parent=5 // pred_region
      // Predicated region
      $region73: #{tpu_custom_call.1} parent=71 // pred_check
        %p428 = pneg %p41
      $region74: #{tpu_custom_call.1} parent=71 // pred_check_branch
        %430 = sbr.rel (%p428) target = $region76
      $region75: #{tpu_custom_call.1} parent=71 // pred_region
        %p431 = scmp.lt.s32.totalorder %s21, 1
        %s432 = scalar_select %p431, %s21, 1
        %s433 = smul.addr %s432, 8
        %s434 = smul.addr %s433, 8
        %s435 = scalar_lea.vmem %s0, %s434
      $region76: #{tpu_custom_call.1} parent=71 // pred_fallthru
        _
    $region72: #{tpu_custom_call.1} parent=5 // pred_fallthru
      _
    %p436 = scmp.le.s32.totalorder 1, %s21
    %p437 = scmp.lt.s32.totalorder %s21, 3
    %p438 = pnand %p436, %p437
    %p439 = pneg %p438
    // Predicated region
    $region77: #{tpu_custom_call.1} parent=5 // pred_check
      _
    $region78: #{tpu_custom_call.1} parent=5 // pred_check_branch
      %441 = sbr.rel (%p438) target = $region80
    $region79: #{tpu_custom_call.1} parent=5 // pred_region
      %s442 = ssub.s32 %s21, 1
      %p443 = scmp.lt.s32.totalorder %s26, 1
      %s444 = scalar_select %p443, %s26, 1
      %s445 = smul.addr %s444, 8
      %s446 = smul.addr %s445, 8
      %s447 = scalar_lea.vmem %s0, %s446
      %p448 = pneg %p47
      %p449 = pneg %p44
      %p450 = pneg %p68
      %p451 = pneg %p65
      %p452 = pneg %p89
      %p453 = pneg %p86
      %p454 = pneg %p110
      %p455 = pneg %p107
      %p456 = pneg %p131
      %p457 = pneg %p128
      %p458 = pneg %p152
      %p459 = pneg %p149
      %p460 = pneg %p173
      %p461 = pneg %p170
      %p462 = pneg %p194
      %p463 = pneg %p191
      %p464 = pneg %p215
      %p465 = pneg %p212
      %p466 = pneg %p236
      %p467 = pneg %p233
      %p468 = pneg %p257
      %p469 = pneg %p254
      %p470 = pneg %p278
      %p471 = pneg %p275
      %p472 = pneg %p299
      %p473 = pneg %p296
      %p474 = pneg %p320
      %p475 = pneg %p317
      %p476 = pneg %p341
      %p477 = pneg %p338
      %p478 = pneg %p367
      %p479 = pneg %p364
      %p480 = scmp.lt.s32.totalorder %s26, 1
      %s481 = scalar_select %p480, %s26, 1
      %s482 = smul.addr %s481, 8
      %s483 = smul.addr %s482, 8
      %s484 = scalar_lea.vmem %s15, %s483
      %p485 = scmp.lt.s32.totalorder %s26, 1
      %s486 = scalar_select %p485, %s26, 1
      %s487 = smul.addr %s486, 8
      %s488 = smul.addr %s487, 8
      %s489 = scalar_lea.vmem %s0, %s488
      %p490 = scmp.lt.s32.totalorder %s26, 1
      %s491 = scalar_select %p490, %s26, 1
      %s492 = smul.addr %s491, 8
      %s493 = smul.addr %s492, 8
      %s494 = scalar_lea.vmem %s15, %s493
      %v496 = vld [vmem:[%s489] sm:$0xff]
      %v497 = vld [vmem:[%s489 + $0x8] sm:$0xff]
      %v498 = vld [vmem:[%s489 + $0x10] sm:$0xff]
      %v499 = vld [vmem:[%s489 + $0x18] sm:$0xff]
      %v500 = vld [vmem:[%s489 + $0x20] sm:$0xff]
      %v501 = vld [vmem:[%s489 + $0x28] sm:$0xff]
      %v502 = vld [vmem:[%s489 + $0x30] sm:$0xff]
      %v503 = vld [vmem:[%s489 + $0x38] sm:$0xff]
      %vm504 = vcmask 261120
      %v505 = vsel %vm504, %v496, 0.0
      %506 = vadd.xlane.f32.xlu0 %v505
      %v507 = vpop.xlane.xlu0 %506
      %v508 = vsel %vm504, %v497, 0.0
      %509 = vadd.xlane.f32.xlu0 %v508
      %v510 = vpop.xlane.xlu0 %509
      %v511 = vsel %vm504, %v498, 0.0
      %512 = vadd.xlane.f32.xlu0 %v511
      %v513 = vpop.xlane.xlu0 %512
      %v514 = vsel %vm504, %v499, 0.0
      %515 = vadd.xlane.f32.xlu0 %v514
      %v516 = vpop.xlane.xlu0 %515
      %v517 = vsel %vm504, %v500, 0.0
      %518 = vadd.xlane.f32.xlu0 %v517
      %v519 = vpop.xlane.xlu0 %518
      %v520 = vsel %vm504, %v501, 0.0
      %521 = vadd.xlane.f32.xlu0 %v520
      %v522 = vpop.xlane.xlu0 %521
      %v523 = vsel %vm504, %v502, 0.0
      %524 = vadd.xlane.f32.xlu0 %v523
      %v525 = vpop.xlane.xlu0 %524
      %v526 = vsel %vm504, %v503, 0.0
      %527 = vadd.xlane.f32.xlu0 %v526
      %v528 = vpop.xlane.xlu0 %527
      %v529 = vrcp.pop 32.0
      %v530 = vmul.f32 32.0, %v529
      %v531 = vsub.f32 1.0, %v530
      %v532 = vmul.f32 %v529, %v531
      %v533 = vadd.f32 %v529, %v532
      %vm534 = vweird.f32 %v529
      %v535 = vsel %vm534, %v529, %v533
      %v536 = vmul.f32 %v507, %v535
      %v537 = vmul.f32 %v510, %v535
      %v538 = vmul.f32 %v513, %v535
      %v539 = vmul.f32 %v516, %v535
      %v540 = vmul.f32 %v519, %v535
      %v541 = vmul.f32 %v522, %v535
      %v542 = vmul.f32 %v525, %v535
      %v543 = vmul.f32 %v528, %v535
      %v544 = vsub.f32 %v496, %v536
      %v545 = vsub.f32 %v497, %v537
      %v546 = vsub.f32 %v498, %v538
      %v547 = vsub.f32 %v499, %v539
      %v548 = vsub.f32 %v500, %v540
      %v549 = vsub.f32 %v501, %v541
      %v550 = vsub.f32 %v502, %v542
      %v551 = vsub.f32 %v503, %v543
      %v552 = vmul.f32 %v544, %v544
      %v553 = vmul.f32 %v545, %v545
      %v554 = vmul.f32 %v546, %v546
      %v555 = vmul.f32 %v547, %v547
      %v556 = vmul.f32 %v548, %v548
      %v557 = vmul.f32 %v549, %v549
      %v558 = vmul.f32 %v550, %v550
      %v559 = vmul.f32 %v551, %v551
      %v560 = vsel %vm504, %v552, 0.0
      %561 = vadd.xlane.f32.xlu0 %v560
      %v562 = vpop.xlane.xlu0 %561
      %v563 = vsel %vm504, %v553, 0.0
      %564 = vadd.xlane.f32.xlu0 %v563
      %v565 = vpop.xlane.xlu0 %564
      %v566 = vsel %vm504, %v554, 0.0
      %567 = vadd.xlane.f32.xlu0 %v566
      %v568 = vpop.xlane.xlu0 %567
      %v569 = vsel %vm504, %v555, 0.0
      %570 = vadd.xlane.f32.xlu0 %v569
      %v571 = vpop.xlane.xlu0 %570
      %v572 = vsel %vm504, %v556, 0.0
      %573 = vadd.xlane.f32.xlu0 %v572
      %v574 = vpop.xlane.xlu0 %573
      %v575 = vsel %vm504, %v557, 0.0
      %576 = vadd.xlane.f32.xlu0 %v575
      %v577 = vpop.xlane.xlu0 %576
      %v578 = vsel %vm504, %v558, 0.0
      %579 = vadd.xlane.f32.xlu0 %v578
      %v580 = vpop.xlane.xlu0 %579
      %v581 = vsel %vm504, %v559, 0.0
      %582 = vadd.xlane.f32.xlu0 %v581
      %v583 = vpop.xlane.xlu0 %582
      %v584 = vmul.f32 %v562, %v535
      %v585 = vmul.f32 %v565, %v535
      %v586 = vmul.f32 %v568, %v535
      %v587 = vmul.f32 %v571, %v535
      %v588 = vmul.f32 %v574, %v535
      %v589 = vmul.f32 %v577, %v535
      %v590 = vmul.f32 %v580, %v535
      %v591 = vmul.f32 %v583, %v535
      %v592 = vadd.f32 %v584, 1e-05
      %v593 = vadd.f32 %v585, 1e-05
      %v594 = vadd.f32 %v586, 1e-05
      %v595 = vadd.f32 %v587, 1e-05
      %v596 = vadd.f32 %v588, 1e-05
      %v597 = vadd.f32 %v589, 1e-05
      %v598 = vadd.f32 %v590, 1e-05
      %v599 = vadd.f32 %v591, 1e-05
      %v600 = vrsqrt.pop %v592
      %v601 = vmul.f32 %v600, %v592
      %v602 = vmul.f32 %v601, %v600
      %v603 = vmul.f32 0.5, %v602
      %v604 = vsub.f32 1.5, %v603
      %v605 = vmul.f32 %v600, %v604
      %vm606 = vweird.f32 %v592
      %vm607 = vweird.f32 %v600
      %vm608 = vmor %vm606, %vm607
      %v609 = vsel %vm608, %v600, %v605
      %v610 = vrsqrt.pop %v593
      %v611 = vmul.f32 %v610, %v593
      %v612 = vmul.f32 %v611, %v610
      %v613 = vmul.f32 0.5, %v612
      %v614 = vsub.f32 1.5, %v613
      %v615 = vmul.f32 %v610, %v614
      %vm616 = vweird.f32 %v593
      %vm617 = vweird.f32 %v610
      %vm618 = vmor %vm616, %vm617
      %v619 = vsel %vm618, %v610, %v615
      %v620 = vrsqrt.pop %v594
      %v621 = vmul.f32 %v620, %v594
      %v622 = vmul.f32 %v621, %v620
      %v623 = vmul.f32 0.5, %v622
      %v624 = vsub.f32 1.5, %v623
      %v625 = vmul.f32 %v620, %v624
      %vm626 = vweird.f32 %v594
      %vm627 = vweird.f32 %v620
      %vm628 = vmor %vm626, %vm627
      %v629 = vsel %vm628, %v620, %v625
      %v630 = vrsqrt.pop %v595
      %v631 = vmul.f32 %v630, %v595
      %v632 = vmul.f32 %v631, %v630
      %v633 = vmul.f32 0.5, %v632
      %v634 = vsub.f32 1.5, %v633
      %v635 = vmul.f32 %v630, %v634
      %vm636 = vweird.f32 %v595
      %vm637 = vweird.f32 %v630
      %vm638 = vmor %vm636, %vm637
      %v639 = vsel %vm638, %v630, %v635
      %v640 = vrsqrt.pop %v596
      %v641 = vmul.f32 %v640, %v596
      %v642 = vmul.f32 %v641, %v640
      %v643 = vmul.f32 0.5, %v642
      %v644 = vsub.f32 1.5, %v643
      %v645 = vmul.f32 %v640, %v644
      %vm646 = vweird.f32 %v596
      %vm647 = vweird.f32 %v640
      %vm648 = vmor %vm646, %vm647
      %v649 = vsel %vm648, %v640, %v645
      %v650 = vrsqrt.pop %v597
      %v651 = vmul.f32 %v650, %v597
      %v652 = vmul.f32 %v651, %v650
      %v653 = vmul.f32 0.5, %v652
      %v654 = vsub.f32 1.5, %v653
      %v655 = vmul.f32 %v650, %v654
      %vm656 = vweird.f32 %v597
      %vm657 = vweird.f32 %v650
      %vm658 = vmor %vm656, %vm657
      %v659 = vsel %vm658, %v650, %v655
      %v660 = vrsqrt.pop %v598
      %v661 = vmul.f32 %v660, %v598
      %v662 = vmul.f32 %v661, %v660
      %v663 = vmul.f32 0.5, %v662
      %v664 = vsub.f32 1.5, %v663
      %v665 = vmul.f32 %v660, %v664
      %vm666 = vweird.f32 %v598
      %vm667 = vweird.f32 %v660
      %vm668 = vmor %vm666, %vm667
      %v669 = vsel %vm668, %v660, %v665
      %v670 = vrsqrt.pop %v599
      %v671 = vmul.f32 %v670, %v599
      %v672 = vmul.f32 %v671, %v670
      %v673 = vmul.f32 0.5, %v672
      %v674 = vsub.f32 1.5, %v673
      %v675 = vmul.f32 %v670, %v674
      %vm676 = vweird.f32 %v599
      %vm677 = vweird.f32 %v670
      %vm678 = vmor %vm676, %vm677
      %v679 = vsel %vm678, %v670, %v675
      %v680 = vmul.f32 %v544, %v609
      %v681 = vmul.f32 %v545, %v619
      %v682 = vmul.f32 %v546, %v629
      %v683 = vmul.f32 %v547, %v639
      %v684 = vmul.f32 %v548, %v649
      %v685 = vmul.f32 %v549, %v659
      %v686 = vmul.f32 %v550, %v669
      %v687 = vmul.f32 %v551, %v679
      %v688 = vld [vmem:[%s1] sm:$0x1]
      %v690 = vperm.slane %v688, 0
      %v692 = vmul.f32 %v680, %v690
      %v693 = vmul.f32 %v681, %v690
      %v694 = vmul.f32 %v682, %v690
      %v695 = vmul.f32 %v683, %v690
      %v696 = vmul.f32 %v684, %v690
      %v697 = vmul.f32 %v685, %v690
      %v698 = vmul.f32 %v686, %v690
      %v699 = vmul.f32 %v687, %v690
      %v700 = vld [vmem:[%s2] sm:$0x1]
      %v702 = vperm.slane %v700, 0
      %v704 = vadd.f32 %v692, %v702
      %v705 = vadd.f32 %v693, %v702
      %v706 = vadd.f32 %v694, %v702
      %v707 = vadd.f32 %v695, %v702
      %v708 = vadd.f32 %v696, %v702
      %v709 = vadd.f32 %v697, %v702
      %v710 = vadd.f32 %v698, %v702
      %v711 = vadd.f32 %v699, %v702
      %v712 = vpack.c.bf16 %v704, %v704
      %v713 = vpack.c.bf16 %v705, %v705
      %v714 = vpack.c.bf16 %v706, %v706
      %v715 = vpack.c.bf16 %v707, %v707
      %v716 = vpack.c.bf16 %v708, %v708
      %v717 = vpack.c.bf16 %v709, %v709
      %v718 = vpack.c.bf16 %v710, %v710
      %v719 = vpack.c.bf16 %v711, %v711
      %v720 = vld [vmem:[%s3] sm:$0xf]
      %v721 = vld [vmem:[%s3 + $0x4] sm:$0xf]
      %v722 = vld [vmem:[%s3 + $0x8] sm:$0xf]
      %v723 = vld [vmem:[%s3 + $0xc] sm:$0xf]
      %v724 = vld [vmem:[%s3 + $0x10] sm:$0xf]
      %v725 = vld [vmem:[%s3 + $0x14] sm:$0xf]
      %v726 = vld [vmem:[%s3 + $0x18] sm:$0xf]
      %v727 = vld [vmem:[%s3 + $0x1c] sm:$0xf]
      %v728 = vld [vmem:[%s3 + $0x20] sm:$0xf]
      %v729 = vld [vmem:[%s3 + $0x24] sm:$0xf]
      %v730 = vld [vmem:[%s3 + $0x28] sm:$0xf]
      %v731 = vld [vmem:[%s3 + $0x2c] sm:$0xf]
      %v732 = vld [vmem:[%s3 + $0x30] sm:$0xf]
      %v733 = vld [vmem:[%s3 + $0x34] sm:$0xf]
      %v734 = vld [vmem:[%s3 + $0x38] sm:$0xf]
      %v735 = vld [vmem:[%s3 + $0x3c] sm:$0xf]
      %v736 = vld [vmem:[%s3 + $0x40] sm:$0xf]
      %v737 = vld [vmem:[%s3 + $0x44] sm:$0xf]
      %v738 = vld [vmem:[%s3 + $0x48] sm:$0xf]
      %v739 = vld [vmem:[%s3 + $0x4c] sm:$0xf]
      %v740 = vld [vmem:[%s3 + $0x50] sm:$0xf]
      %v741 = vld [vmem:[%s3 + $0x54] sm:$0xf]
      %v742 = vld [vmem:[%s3 + $0x58] sm:$0xf]
      %v743 = vld [vmem:[%s3 + $0x5c] sm:$0xf]
      %v744 = vld [vmem:[%s3 + $0x60] sm:$0xf]
      %v745 = vld [vmem:[%s3 + $0x64] sm:$0xf]
      %v746 = vld [vmem:[%s3 + $0x68] sm:$0xf]
      %v747 = vld [vmem:[%s3 + $0x6c] sm:$0xf]
      %v748 = vld [vmem:[%s3 + $0x70] sm:$0xf]
      %v749 = vld [vmem:[%s3 + $0x74] sm:$0xf]
      %v750 = vld [vmem:[%s3 + $0x78] sm:$0xf]
      %v751 = vld [vmem:[%s3 + $0x7c] sm:$0xf]
      %v760 = vunpack.c.l.b16 %v712
      %v761 = vunpack.c.l.b16 %v713
      %v762 = vunpack.c.l.b16 %v714
      %v763 = vunpack.c.l.b16 %v715
      %v764 = vunpack.c.l.b16 %v716
      %v765 = vunpack.c.l.b16 %v717
      %v766 = vunpack.c.l.b16 %v718
      %v767 = vunpack.c.l.b16 %v719
      %v768 = vpack.c.b16 %v761, %v760
      %v769 = vpack.c.b16 %v763, %v762
      %v770 = vpack.c.b16 %v765, %v764
      %v771 = vpack.c.b16 %v767, %v766
      %v776 = vunpack.c.l.b16 %v720
      %v777 = vunpack.c.l.b16 %v721
      %v778 = vunpack.c.l.b16 %v722
      %v779 = vunpack.c.l.b16 %v723
      %v780 = vpack.c.b16 %v777, %v776
      %v781 = vpack.c.b16 %v779, %v778
      %v785 = vsel %vm504, %v768, 0
      %v788 = vsel %vm504, %v769, 0
      %v791 = vsel %vm504, %v770, 0
      %v794 = vsel %vm504, %v771, 0
      %796 = vmatpush.bf16.msra.mxu0 0
      %797 = vmatpush.bf16.msra.mxu0 0
      %798 = vmatpush.bf16.msra.mxu0 0
      %799 = vmatpush.bf16.msra.mxu0 0
      %800 = vmatpush.bf16.msra.mxu0 0
      %801 = vmatpush.bf16.msra.mxu0 0
      %802 = vmatpush.bf16.msra.mxu0 %v781
      %803 = vmatpush.bf16.msra.mxu0 %v780
      %804 = vmatmul.bf16.gmra.mxu0 %v785
      %v805 = vpop.f32.mrf.mxu0
      %v806 = vadd.f32 0.0, %v805
      %v807 = vpop.f32.mrf.mxu0
      %v808 = vadd.f32 0.0, %v807
      %809 = vmatmul.bf16.gmra.mxu0 %v788
      %v810 = vpop.f32.mrf.mxu0
      %v811 = vadd.f32 0.0, %v810
      %v812 = vpop.f32.mrf.mxu0
      %v813 = vadd.f32 0.0, %v812
      %814 = vmatmul.bf16.gmra.mxu0 %v791
      %v815 = vpop.f32.mrf.mxu0
      %v816 = vadd.f32 0.0, %v815
      %v817 = vpop.f32.mrf.mxu0
      %v818 = vadd.f32 0.0, %v817
      %819 = vmatmul.bf16.gmra.mxu0 %v794
      %v820 = vpop.f32.mrf.mxu0
      %v821 = vadd.f32 0.0, %v820
      %v822 = vpop.f32.mrf.mxu0
      %v823 = vadd.f32 0.0, %v822
      %824 = vdwg.mxu0
      %v829 = vunpack.c.l.b16 %v724
      %v830 = vunpack.c.l.b16 %v725
      %v831 = vunpack.c.l.b16 %v726
      %v832 = vunpack.c.l.b16 %v727
      %v833 = vpack.c.b16 %v830, %v829
      %v834 = vpack.c.b16 %v832, %v831
      %837 = vmatpush.bf16.msra.mxu0 0
      %838 = vmatpush.bf16.msra.mxu0 0
      %839 = vmatpush.bf16.msra.mxu0 0
      %840 = vmatpush.bf16.msra.mxu0 0
      %841 = vmatpush.bf16.msra.mxu0 0
      %842 = vmatpush.bf16.msra.mxu0 0
      %843 = vmatpush.bf16.msra.mxu0 %v834
      %844 = vmatpush.bf16.msra.mxu0 %v833
      %845 = vmatmul.bf16.gmra.mxu0 %v785
      %v846 = vpop.f32.mrf.mxu0
      %v847 = vadd.f32 0.0, %v846
      %v848 = vpop.f32.mrf.mxu0
      %v849 = vadd.f32 0.0, %v848
      %850 = vmatmul.bf16.gmra.mxu0 %v788
      %v851 = vpop.f32.mrf.mxu0
      %v852 = vadd.f32 0.0, %v851
      %v853 = vpop.f32.mrf.mxu0
      %v854 = vadd.f32 0.0, %v853
      %855 = vmatmul.bf16.gmra.mxu0 %v791
      %v856 = vpop.f32.mrf.mxu0
      %v857 = vadd.f32 0.0, %v856
      %v858 = vpop.f32.mrf.mxu0
      %v859 = vadd.f32 0.0, %v858
      %860 = vmatmul.bf16.gmra.mxu0 %v794
      %v861 = vpop.f32.mrf.mxu0
      %v862 = vadd.f32 0.0, %v861
      %v863 = vpop.f32.mrf.mxu0
      %v864 = vadd.f32 0.0, %v863
      %865 = vdwg.mxu0
      %v870 = vunpack.c.l.b16 %v728
      %v871 = vunpack.c.l.b16 %v729
      %v872 = vunpack.c.l.b16 %v730
      %v873 = vunpack.c.l.b16 %v731
      %v874 = vpack.c.b16 %v871, %v870
      %v875 = vpack.c.b16 %v873, %v872
      %878 = vmatpush.bf16.msra.mxu0 0
      %879 = vmatpush.bf16.msra.mxu0 0
      %880 = vmatpush.bf16.msra.mxu0 0
      %881 = vmatpush.bf16.msra.mxu0 0
      %882 = vmatpush.bf16.msra.mxu0 0
      %883 = vmatpush.bf16.msra.mxu0 0
      %884 = vmatpush.bf16.msra.mxu0 %v875
      %885 = vmatpush.bf16.msra.mxu0 %v874
      %886 = vmatmul.bf16.gmra.mxu0 %v785
      %v887 = vpop.f32.mrf.mxu0
      %v888 = vadd.f32 0.0, %v887
      %v889 = vpop.f32.mrf.mxu0
      %v890 = vadd.f32 0.0, %v889
      %891 = vmatmul.bf16.gmra.mxu0 %v788
      %v892 = vpop.f32.mrf.mxu0
      %v893 = vadd.f32 0.0, %v892
      %v894 = vpop.f32.mrf.mxu0
      %v895 = vadd.f32 0.0, %v894
      %896 = vmatmul.bf16.gmra.mxu0 %v791
      %v897 = vpop.f32.mrf.mxu0
      %v898 = vadd.f32 0.0, %v897
      %v899 = vpop.f32.mrf.mxu0
      %v900 = vadd.f32 0.0, %v899
      %901 = vmatmul.bf16.gmra.mxu0 %v794
      %v902 = vpop.f32.mrf.mxu0
      %v903 = vadd.f32 0.0, %v902
      %v904 = vpop.f32.mrf.mxu0
      %v905 = vadd.f32 0.0, %v904
      %906 = vdwg.mxu0
      %v911 = vunpack.c.l.b16 %v732
      %v912 = vunpack.c.l.b16 %v733
      %v913 = vunpack.c.l.b16 %v734
      %v914 = vunpack.c.l.b16 %v735
      %v915 = vpack.c.b16 %v912, %v911
      %v916 = vpack.c.b16 %v914, %v913
      %919 = vmatpush.bf16.msra.mxu0 0
      %920 = vmatpush.bf16.msra.mxu0 0
      %921 = vmatpush.bf16.msra.mxu0 0
      %922 = vmatpush.bf16.msra.mxu0 0
      %923 = vmatpush.bf16.msra.mxu0 0
      %924 = vmatpush.bf16.msra.mxu0 0
      %925 = vmatpush.bf16.msra.mxu0 %v916
      %926 = vmatpush.bf16.msra.mxu0 %v915
      %927 = vmatmul.bf16.gmra.mxu0 %v785
      %v928 = vpop.f32.mrf.mxu0
      %v929 = vadd.f32 0.0, %v928
      %v930 = vpop.f32.mrf.mxu0
      %v931 = vadd.f32 0.0, %v930
      %932 = vmatmul.bf16.gmra.mxu0 %v788
      %v933 = vpop.f32.mrf.mxu0
      %v934 = vadd.f32 0.0, %v933
      %v935 = vpop.f32.mrf.mxu0
      %v936 = vadd.f32 0.0, %v935
      %937 = vmatmul.bf16.gmra.mxu0 %v791
      %v938 = vpop.f32.mrf.mxu0
      %v939 = vadd.f32 0.0, %v938
      %v940 = vpop.f32.mrf.mxu0
      %v941 = vadd.f32 0.0, %v940
      %942 = vmatmul.bf16.gmra.mxu0 %v794
      %v943 = vpop.f32.mrf.mxu0
      %v944 = vadd.f32 0.0, %v943
      %v945 = vpop.f32.mrf.mxu0
      %v946 = vadd.f32 0.0, %v945
      %947 = vdwg.mxu0
      %v952 = vunpack.c.l.b16 %v736
      %v953 = vunpack.c.l.b16 %v737
      %v954 = vunpack.c.l.b16 %v738
      %v955 = vunpack.c.l.b16 %v739
      %v956 = vpack.c.b16 %v953, %v952
      %v957 = vpack.c.b16 %v955, %v954
      %960 = vmatpush.bf16.msra.mxu0 0
      %961 = vmatpush.bf16.msra.mxu0 0
      %962 = vmatpush.bf16.msra.mxu0 0
      %963 = vmatpush.bf16.msra.mxu0 0
      %964 = vmatpush.bf16.msra.mxu0 0
      %965 = vmatpush.bf16.msra.mxu0 0
      %966 = vmatpush.bf16.msra.mxu0 %v957
      %967 = vmatpush.bf16.msra.mxu0 %v956
      %968 = vmatmul.bf16.gmra.mxu0 %v785
      %v969 = vpop.f32.mrf.mxu0
      %v970 = vadd.f32 0.0, %v969
      %v971 = vpop.f32.mrf.mxu0
      %v972 = vadd.f32 0.0, %v971
      %973 = vmatmul.bf16.gmra.mxu0 %v788
      %v974 = vpop.f32.mrf.mxu0
      %v975 = vadd.f32 0.0, %v974
      %v976 = vpop.f32.mrf.mxu0
      %v977 = vadd.f32 0.0, %v976
      %978 = vmatmul.bf16.gmra.mxu0 %v791
      %v979 = vpop.f32.mrf.mxu0
      %v980 = vadd.f32 0.0, %v979
      %v981 = vpop.f32.mrf.mxu0
      %v982 = vadd.f32 0.0, %v981
      %983 = vmatmul.bf16.gmra.mxu0 %v794
      %v984 = vpop.f32.mrf.mxu0
      %v985 = vadd.f32 0.0, %v984
      %v986 = vpop.f32.mrf.mxu0
      %v987 = vadd.f32 0.0, %v986
      %988 = vdwg.mxu0
      %v993 = vunpack.c.l.b16 %v740
      %v994 = vunpack.c.l.b16 %v741
      %v995 = vunpack.c.l.b16 %v742
      %v996 = vunpack.c.l.b16 %v743
      %v997 = vpack.c.b16 %v994, %v993
      %v998 = vpack.c.b16 %v996, %v995
      %1001 = vmatpush.bf16.msra.mxu0 0
      %1002 = vmatpush.bf16.msra.mxu0 0
      %1003 = vmatpush.bf16.msra.mxu0 0
      %1004 = vmatpush.bf16.msra.mxu0 0
      %1005 = vmatpush.bf16.msra.mxu0 0
      %1006 = vmatpush.bf16.msra.mxu0 0
      %1007 = vmatpush.bf16.msra.mxu0 %v998
      %1008 = vmatpush.bf16.msra.mxu0 %v997
      %1009 = vmatmul.bf16.gmra.mxu0 %v785
      %v1010 = vpop.f32.mrf.mxu0
      %v1011 = vadd.f32 0.0, %v1010
      %v1012 = vpop.f32.mrf.mxu0
      %v1013 = vadd.f32 0.0, %v1012
      %1014 = vmatmul.bf16.gmra.mxu0 %v788
      %v1015 = vpop.f32.mrf.mxu0
      %v1016 = vadd.f32 0.0, %v1015
      %v1017 = vpop.f32.mrf.mxu0
      %v1018 = vadd.f32 0.0, %v1017
      %1019 = vmatmul.bf16.gmra.mxu0 %v791
      %v1020 = vpop.f32.mrf.mxu0
      %v1021 = vadd.f32 0.0, %v1020
      %v1022 = vpop.f32.mrf.mxu0
      %v1023 = vadd.f32 0.0, %v1022
      %1024 = vmatmul.bf16.gmra.mxu0 %v794
      %v1025 = vpop.f32.mrf.mxu0
      %v1026 = vadd.f32 0.0, %v1025
      %v1027 = vpop.f32.mrf.mxu0
      %v1028 = vadd.f32 0.0, %v1027
      %1029 = vdwg.mxu0
      %v1034 = vunpack.c.l.b16 %v744
      %v1035 = vunpack.c.l.b16 %v745
      %v1036 = vunpack.c.l.b16 %v746
      %v1037 = vunpack.c.l.b16 %v747
      %v1038 = vpack.c.b16 %v1035, %v1034
      %v1039 = vpack.c.b16 %v1037, %v1036
      %1042 = vmatpush.bf16.msra.mxu0 0
      %1043 = vmatpush.bf16.msra.mxu0 0
      %1044 = vmatpush.bf16.msra.mxu0 0
      %1045 = vmatpush.bf16.msra.mxu0 0
      %1046 = vmatpush.bf16.msra.mxu0 0
      %1047 = vmatpush.bf16.msra.mxu0 0
      %1048 = vmatpush.bf16.msra.mxu0 %v1039
      %1049 = vmatpush.bf16.msra.mxu0 %v1038
      %1050 = vmatmul.bf16.gmra.mxu0 %v785
      %v1051 = vpop.f32.mrf.mxu0
      %v1052 = vadd.f32 0.0, %v1051
      %v1053 = vpop.f32.mrf.mxu0
      %v1054 = vadd.f32 0.0, %v1053
      %1055 = vmatmul.bf16.gmra.mxu0 %v788
      %v1056 = vpop.f32.mrf.mxu0
      %v1057 = vadd.f32 0.0, %v1056
      %v1058 = vpop.f32.mrf.mxu0
      %v1059 = vadd.f32 0.0, %v1058
      %1060 = vmatmul.bf16.gmra.mxu0 %v791
      %v1061 = vpop.f32.mrf.mxu0
      %v1062 = vadd.f32 0.0, %v1061
      %v1063 = vpop.f32.mrf.mxu0
      %v1064 = vadd.f32 0.0, %v1063
      %1065 = vmatmul.bf16.gmra.mxu0 %v794
      %v1066 = vpop.f32.mrf.mxu0
      %v1067 = vadd.f32 0.0, %v1066
      %v1068 = vpop.f32.mrf.mxu0
      %v1069 = vadd.f32 0.0, %v1068
      %1070 = vdwg.mxu0
      %v1075 = vunpack.c.l.b16 %v748
      %v1076 = vunpack.c.l.b16 %v749
      %v1077 = vunpack.c.l.b16 %v750
      %v1078 = vunpack.c.l.b16 %v751
      %v1079 = vpack.c.b16 %v1076, %v1075
      %v1080 = vpack.c.b16 %v1078, %v1077
      %1083 = vmatpush.bf16.msra.mxu0 0
      %1084 = vmatpush.bf16.msra.mxu0 0
      %1085 = vmatpush.bf16.msra.mxu0 0
      %1086 = vmatpush.bf16.msra.mxu0 0
      %1087 = vmatpush.bf16.msra.mxu0 0
      %1088 = vmatpush.bf16.msra.mxu0 0
      %1089 = vmatpush.bf16.msra.mxu0 %v1080
      %1090 = vmatpush.bf16.msra.mxu0 %v1079
      %1091 = vmatmul.bf16.gmra.mxu0 %v785
      %v1092 = vpop.f32.mrf.mxu0
      %v1093 = vadd.f32 0.0, %v1092
      %v1094 = vpop.f32.mrf.mxu0
      %v1095 = vadd.f32 0.0, %v1094
      %1096 = vmatmul.bf16.gmra.mxu0 %v788
      %v1097 = vpop.f32.mrf.mxu0
      %v1098 = vadd.f32 0.0, %v1097
      %v1099 = vpop.f32.mrf.mxu0
      %v1100 = vadd.f32 0.0, %v1099
      %1101 = vmatmul.bf16.gmra.mxu0 %v791
      %v1102 = vpop.f32.mrf.mxu0
      %v1103 = vadd.f32 0.0, %v1102
      %v1104 = vpop.f32.mrf.mxu0
      %v1105 = vadd.f32 0.0, %v1104
      %1106 = vmatmul.bf16.gmra.mxu0 %v794
      %v1107 = vpop.f32.mrf.mxu0
      %v1108 = vadd.f32 0.0, %v1107
      %v1109 = vpop.f32.mrf.mxu0
      %v1110 = vadd.f32 0.0, %v1109
      %1111 = vdwg.mxu0
      %v1112 = vpack.c.bf16 %v806, %v806
      %v1113 = vpack.c.bf16 %v808, %v808
      %v1114 = vpack.c.bf16 %v811, %v811
      %v1115 = vpack.c.bf16 %v813, %v813
      %v1116 = vpack.c.bf16 %v816, %v816
      %v1117 = vpack.c.bf16 %v818, %v818
      %v1118 = vpack.c.bf16 %v821, %v821
      %v1119 = vpack.c.bf16 %v823, %v823
      %v1120 = vpack.c.bf16 %v847, %v847
      %v1121 = vpack.c.bf16 %v849, %v849
      %v1122 = vpack.c.bf16 %v852, %v852
      %v1123 = vpack.c.bf16 %v854, %v854
      %v1124 = vpack.c.bf16 %v857, %v857
      %v1125 = vpack.c.bf16 %v859, %v859
      %v1126 = vpack.c.bf16 %v862, %v862
      %v1127 = vpack.c.bf16 %v864, %v864
      %v1128 = vpack.c.bf16 %v888, %v888
      %v1129 = vpack.c.bf16 %v890, %v890
      %v1130 = vpack.c.bf16 %v893, %v893
      %v1131 = vpack.c.bf16 %v895, %v895
      %v1132 = vpack.c.bf16 %v898, %v898
      %v1133 = vpack.c.bf16 %v900, %v900
      %v1134 = vpack.c.bf16 %v903, %v903
      %v1135 = vpack.c.bf16 %v905, %v905
      %v1136 = vpack.c.bf16 %v929, %v929
      %v1137 = vpack.c.bf16 %v931, %v931
      %v1138 = vpack.c.bf16 %v934, %v934
      %v1139 = vpack.c.bf16 %v936, %v936
      %v1140 = vpack.c.bf16 %v939, %v939
      %v1141 = vpack.c.bf16 %v941, %v941
      %v1142 = vpack.c.bf16 %v944, %v944
      %v1143 = vpack.c.bf16 %v946, %v946
      %v1144 = vpack.c.bf16 %v970, %v970
      %v1145 = vpack.c.bf16 %v972, %v972
      %v1146 = vpack.c.bf16 %v975, %v975
      %v1147 = vpack.c.bf16 %v977, %v977
      %v1148 = vpack.c.bf16 %v980, %v980
      %v1149 = vpack.c.bf16 %v982, %v982
      %v1150 = vpack.c.bf16 %v985, %v985
      %v1151 = vpack.c.bf16 %v987, %v987
      %v1152 = vpack.c.bf16 %v1011, %v1011
      %v1153 = vpack.c.bf16 %v1013, %v1013
      %v1154 = vpack.c.bf16 %v1016, %v1016
      %v1155 = vpack.c.bf16 %v1018, %v1018
      %v1156 = vpack.c.bf16 %v1021, %v1021
      %v1157 = vpack.c.bf16 %v1023, %v1023
      %v1158 = vpack.c.bf16 %v1026, %v1026
      %v1159 = vpack.c.bf16 %v1028, %v1028
      %v1160 = vpack.c.bf16 %v1052, %v1052
      %v1161 = vpack.c.bf16 %v1054, %v1054
      %v1162 = vpack.c.bf16 %v1057, %v1057
      %v1163 = vpack.c.bf16 %v1059, %v1059
      %v1164 = vpack.c.bf16 %v1062, %v1062
      %v1165 = vpack.c.bf16 %v1064, %v1064
      %v1166 = vpack.c.bf16 %v1067, %v1067
      %v1167 = vpack.c.bf16 %v1069, %v1069
      %v1168 = vpack.c.bf16 %v1093, %v1093
      %v1169 = vpack.c.bf16 %v1095, %v1095
      %v1170 = vpack.c.bf16 %v1098, %v1098
      %v1171 = vpack.c.bf16 %v1100, %v1100
      %v1172 = vpack.c.bf16 %v1103, %v1103
      %v1173 = vpack.c.bf16 %v1105, %v1105
      %v1174 = vpack.c.bf16 %v1108, %v1108
      %v1175 = vpack.c.bf16 %v1110, %v1110
      %v1184 = vunpack.c.l.b16 %v1112
      %v1185 = vunpack.c.l.b16 %v1113
      %v1186 = vunpack.c.l.b16 %v1114
      %v1187 = vunpack.c.l.b16 %v1115
      %v1188 = vunpack.c.l.b16 %v1116
      %v1189 = vunpack.c.l.b16 %v1117
      %v1190 = vunpack.c.l.b16 %v1118
      %v1191 = vunpack.c.l.b16 %v1119
      %v1192 = vpack.c.b16 %v1185, %v1184
      %v1193 = vpack.c.b16 %v1187, %v1186
      %v1194 = vpack.c.b16 %v1189, %v1188
      %v1195 = vpack.c.b16 %v1191, %v1190
      %1196 = vrot.lane.b32.xlu0 %v1192, 124
      %v1197 = vpop.permute.xlu0 %1196
      %1198 = vrot.lane.b32.xlu0 %v1193, 124
      %v1199 = vpop.permute.xlu0 %1198
      %1200 = vrot.lane.b32.xlu0 %v1194, 124
      %v1201 = vpop.permute.xlu0 %1200
      %1202 = vrot.lane.b32.xlu0 %v1195, 124
      %v1203 = vpop.permute.xlu0 %1202
      %vm1204 = vcmask 31744
      %v1206 = vsel %vm1204, %v1192, 0
      %v1209 = vsel %vm1204, %v1193, 0
      %v1212 = vsel %vm1204, %v1194, 0
      %v1215 = vsel %vm1204, %v1195, 0
      %v1218 = vsel %vm1204, %v1197, 0
      %v1221 = vsel %vm1204, %v1199, 0
      %v1224 = vsel %vm1204, %v1201, 0
      %v1227 = vsel %vm1204, %v1203, 0
      %1229 = vmatpush.bf16.xpose.msra.mxu0 0
      %1230 = vmatpush.bf16.xpose.msra.mxu0 0
      %1231 = vmatpush.bf16.xpose.msra.mxu0 0
      %1232 = vmatpush.bf16.xpose.msra.mxu0 0
      %1233 = vmatpush.bf16.xpose.msra.mxu0 %v1227
      %1234 = vmatpush.bf16.xpose.msra.mxu0 %v1224
      %1235 = vmatpush.bf16.xpose.msra.mxu0 %v1221
      %1236 = vmatpush.bf16.xpose.msra.mxu0 %v1218
      %1237 = vmatmul.bf16.gmra.mxu0 %v1206
      %v1238 = vpop.f32.mrf.mxu0
      %v1239 = vadd.f32 0.0, %v1238
      %v1240 = vpop.f32.mrf.mxu0
      %v1241 = vadd.f32 0.0, %v1240
      %1242 = vmatmul.bf16.gmra.mxu0 %v1209
      %v1243 = vpop.f32.mrf.mxu0
      %v1244 = vadd.f32 0.0, %v1243
      %v1245 = vpop.f32.mrf.mxu0
      %v1246 = vadd.f32 0.0, %v1245
      %1247 = vmatmul.bf16.gmra.mxu0 %v1212
      %v1248 = vpop.f32.mrf.mxu0
      %v1249 = vadd.f32 0.0, %v1248
      %v1250 = vpop.f32.mrf.mxu0
      %v1251 = vadd.f32 0.0, %v1250
      %1252 = vmatmul.bf16.gmra.mxu0 %v1215
      %v1253 = vpop.f32.mrf.mxu0
      %v1254 = vadd.f32 0.0, %v1253
      %v1255 = vpop.f32.mrf.mxu0
      %v1256 = vadd.f32 0.0, %v1255
      %1257 = vdwg.mxu0
      %v1266 = vunpack.c.l.b16 %v1120
      %v1267 = vunpack.c.l.b16 %v1121
      %v1268 = vunpack.c.l.b16 %v1122
      %v1269 = vunpack.c.l.b16 %v1123
      %v1270 = vunpack.c.l.b16 %v1124
      %v1271 = vunpack.c.l.b16 %v1125
      %v1272 = vunpack.c.l.b16 %v1126
      %v1273 = vunpack.c.l.b16 %v1127
      %v1274 = vpack.c.b16 %v1267, %v1266
      %v1275 = vpack.c.b16 %v1269, %v1268
      %v1276 = vpack.c.b16 %v1271, %v1270
      %v1277 = vpack.c.b16 %v1273, %v1272
      %1278 = vrot.lane.b32.xlu0 %v1274, 124
      %v1279 = vpop.permute.xlu0 %1278
      %1280 = vrot.lane.b32.xlu0 %v1275, 124
      %v1281 = vpop.permute.xlu0 %1280
      %1282 = vrot.lane.b32.xlu0 %v1276, 124
      %v1283 = vpop.permute.xlu0 %1282
      %1284 = vrot.lane.b32.xlu0 %v1277, 124
      %v1285 = vpop.permute.xlu0 %1284
      %v1287 = vsel %vm1204, %v1274, 0
      %v1290 = vsel %vm1204, %v1275, 0
      %v1293 = vsel %vm1204, %v1276, 0
      %v1296 = vsel %vm1204, %v1277, 0
      %v1299 = vsel %vm1204, %v1279, 0
      %v1302 = vsel %vm1204, %v1281, 0
      %v1305 = vsel %vm1204, %v1283, 0
      %v1308 = vsel %vm1204, %v1285, 0
      %1310 = vmatpush.bf16.xpose.msra.mxu0 0
      %1311 = vmatpush.bf16.xpose.msra.mxu0 0
      %1312 = vmatpush.bf16.xpose.msra.mxu0 0
      %1313 = vmatpush.bf16.xpose.msra.mxu0 0
      %1314 = vmatpush.bf16.xpose.msra.mxu0 %v1308
      %1315 = vmatpush.bf16.xpose.msra.mxu0 %v1305
      %1316 = vmatpush.bf16.xpose.msra.mxu0 %v1302
      %1317 = vmatpush.bf16.xpose.msra.mxu0 %v1299
      %1318 = vmatmul.bf16.gmra.mxu0 %v1287
      %v1319 = vpop.f32.mrf.mxu0
      %v1320 = vadd.f32 0.0, %v1319
      %v1321 = vpop.f32.mrf.mxu0
      %v1322 = vadd.f32 0.0, %v1321
      %1323 = vmatmul.bf16.gmra.mxu0 %v1290
      %v1324 = vpop.f32.mrf.mxu0
      %v1325 = vadd.f32 0.0, %v1324
      %v1326 = vpop.f32.mrf.mxu0
      %v1327 = vadd.f32 0.0, %v1326
      %1328 = vmatmul.bf16.gmra.mxu0 %v1293
      %v1329 = vpop.f32.mrf.mxu0
      %v1330 = vadd.f32 0.0, %v1329
      %v1331 = vpop.f32.mrf.mxu0
      %v1332 = vadd.f32 0.0, %v1331
      %1333 = vmatmul.bf16.gmra.mxu0 %v1296
      %v1334 = vpop.f32.mrf.mxu0
      %v1335 = vadd.f32 0.0, %v1334
      %v1336 = vpop.f32.mrf.mxu0
      %v1337 = vadd.f32 0.0, %v1336
      %1338 = vdwg.mxu0
      %v1347 = vunpack.c.l.b16 %v1128
      %v1348 = vunpack.c.l.b16 %v1129
      %v1349 = vunpack.c.l.b16 %v1130
      %v1350 = vunpack.c.l.b16 %v1131
      %v1351 = vunpack.c.l.b16 %v1132
      %v1352 = vunpack.c.l.b16 %v1133
      %v1353 = vunpack.c.l.b16 %v1134
      %v1354 = vunpack.c.l.b16 %v1135
      %v1355 = vpack.c.b16 %v1348, %v1347
      %v1356 = vpack.c.b16 %v1350, %v1349
      %v1357 = vpack.c.b16 %v1352, %v1351
      %v1358 = vpack.c.b16 %v1354, %v1353
      %1359 = vrot.lane.b32.xlu0 %v1355, 124
      %v1360 = vpop.permute.xlu0 %1359
      %1361 = vrot.lane.b32.xlu0 %v1356, 124
      %v1362 = vpop.permute.xlu0 %1361
      %1363 = vrot.lane.b32.xlu0 %v1357, 124
      %v1364 = vpop.permute.xlu0 %1363
      %1365 = vrot.lane.b32.xlu0 %v1358, 124
      %v1366 = vpop.permute.xlu0 %1365
      %v1368 = vsel %vm1204, %v1355, 0
      %v1371 = vsel %vm1204, %v1356, 0
      %v1374 = vsel %vm1204, %v1357, 0
      %v1377 = vsel %vm1204, %v1358, 0
      %v1380 = vsel %vm1204, %v1360, 0
      %v1383 = vsel %vm1204, %v1362, 0
      %v1386 = vsel %vm1204, %v1364, 0
      %v1389 = vsel %vm1204, %v1366, 0
      %1391 = vmatpush.bf16.xpose.msra.mxu0 0
      %1392 = vmatpush.bf16.xpose.msra.mxu0 0
      %1393 = vmatpush.bf16.xpose.msra.mxu0 0
      %1394 = vmatpush.bf16.xpose.msra.mxu0 0
      %1395 = vmatpush.bf16.xpose.msra.mxu0 %v1389
      %1396 = vmatpush.bf16.xpose.msra.mxu0 %v1386
      %1397 = vmatpush.bf16.xpose.msra.mxu0 %v1383
      %1398 = vmatpush.bf16.xpose.msra.mxu0 %v1380
      %1399 = vmatmul.bf16.gmra.mxu0 %v1368
      %v1400 = vpop.f32.mrf.mxu0
      %v1401 = vadd.f32 0.0, %v1400
      %v1402 = vpop.f32.mrf.mxu0
      %v1403 = vadd.f32 0.0, %v1402
      %1404 = vmatmul.bf16.gmra.mxu0 %v1371
      %v1405 = vpop.f32.mrf.mxu0
      %v1406 = vadd.f32 0.0, %v1405
      %v1407 = vpop.f32.mrf.mxu0
      %v1408 = vadd.f32 0.0, %v1407
      %1409 = vmatmul.bf16.gmra.mxu0 %v1374
      %v1410 = vpop.f32.mrf.mxu0
      %v1411 = vadd.f32 0.0, %v1410
      %v1412 = vpop.f32.mrf.mxu0
      %v1413 = vadd.f32 0.0, %v1412
      %1414 = vmatmul.bf16.gmra.mxu0 %v1377
      %v1415 = vpop.f32.mrf.mxu0
      %v1416 = vadd.f32 0.0, %v1415
      %v1417 = vpop.f32.mrf.mxu0
      %v1418 = vadd.f32 0.0, %v1417
      %1419 = vdwg.mxu0
      %v1428 = vunpack.c.l.b16 %v1136
      %v1429 = vunpack.c.l.b16 %v1137
      %v1430 = vunpack.c.l.b16 %v1138
      %v1431 = vunpack.c.l.b16 %v1139
      %v1432 = vunpack.c.l.b16 %v1140
      %v1433 = vunpack.c.l.b16 %v1141
      %v1434 = vunpack.c.l.b16 %v1142
      %v1435 = vunpack.c.l.b16 %v1143
      %v1436 = vpack.c.b16 %v1429, %v1428
      %v1437 = vpack.c.b16 %v1431, %v1430
      %v1438 = vpack.c.b16 %v1433, %v1432
      %v1439 = vpack.c.b16 %v1435, %v1434
      %1440 = vrot.lane.b32.xlu0 %v1436, 124
      %v1441 = vpop.permute.xlu0 %1440
      %1442 = vrot.lane.b32.xlu0 %v1437, 124
      %v1443 = vpop.permute.xlu0 %1442
      %1444 = vrot.lane.b32.xlu0 %v1438, 124
      %v1445 = vpop.permute.xlu0 %1444
      %1446 = vrot.lane.b32.xlu0 %v1439, 124
      %v1447 = vpop.permute.xlu0 %1446
      %v1449 = vsel %vm1204, %v1436, 0
      %v1452 = vsel %vm1204, %v1437, 0
      %v1455 = vsel %vm1204, %v1438, 0
      %v1458 = vsel %vm1204, %v1439, 0
      %v1461 = vsel %vm1204, %v1441, 0
      %v1464 = vsel %vm1204, %v1443, 0
      %v1467 = vsel %vm1204, %v1445, 0
      %v1470 = vsel %vm1204, %v1447, 0
      %1472 = vmatpush.bf16.xpose.msra.mxu0 0
      %1473 = vmatpush.bf16.xpose.msra.mxu0 0
      %1474 = vmatpush.bf16.xpose.msra.mxu0 0
      %1475 = vmatpush.bf16.xpose.msra.mxu0 0
      %1476 = vmatpush.bf16.xpose.msra.mxu0 %v1470
      %1477 = vmatpush.bf16.xpose.msra.mxu0 %v1467
      %1478 = vmatpush.bf16.xpose.msra.mxu0 %v1464
      %1479 = vmatpush.bf16.xpose.msra.mxu0 %v1461
      %1480 = vmatmul.bf16.gmra.mxu0 %v1449
      %v1481 = vpop.f32.mrf.mxu0
      %v1482 = vadd.f32 0.0, %v1481
      %v1483 = vpop.f32.mrf.mxu0
      %v1484 = vadd.f32 0.0, %v1483
      %1485 = vmatmul.bf16.gmra.mxu0 %v1452
      %v1486 = vpop.f32.mrf.mxu0
      %v1487 = vadd.f32 0.0, %v1486
      %v1488 = vpop.f32.mrf.mxu0
      %v1489 = vadd.f32 0.0, %v1488
      %1490 = vmatmul.bf16.gmra.mxu0 %v1455
      %v1491 = vpop.f32.mrf.mxu0
      %v1492 = vadd.f32 0.0, %v1491
      %v1493 = vpop.f32.mrf.mxu0
      %v1494 = vadd.f32 0.0, %v1493
      %1495 = vmatmul.bf16.gmra.mxu0 %v1458
      %v1496 = vpop.f32.mrf.mxu0
      %v1497 = vadd.f32 0.0, %v1496
      %v1498 = vpop.f32.mrf.mxu0
      %v1499 = vadd.f32 0.0, %v1498
      %1500 = vdwg.mxu0
      %v1509 = vunpack.c.l.b16 %v1144
      %v1510 = vunpack.c.l.b16 %v1145
      %v1511 = vunpack.c.l.b16 %v1146
      %v1512 = vunpack.c.l.b16 %v1147
      %v1513 = vunpack.c.l.b16 %v1148
      %v1514 = vunpack.c.l.b16 %v1149
      %v1515 = vunpack.c.l.b16 %v1150
      %v1516 = vunpack.c.l.b16 %v1151
      %v1517 = vpack.c.b16 %v1510, %v1509
      %v1518 = vpack.c.b16 %v1512, %v1511
      %v1519 = vpack.c.b16 %v1514, %v1513
      %v1520 = vpack.c.b16 %v1516, %v1515
      %1521 = vrot.lane.b32.xlu0 %v1517, 124
      %v1522 = vpop.permute.xlu0 %1521
      %1523 = vrot.lane.b32.xlu0 %v1518, 124
      %v1524 = vpop.permute.xlu0 %1523
      %1525 = vrot.lane.b32.xlu0 %v1519, 124
      %v1526 = vpop.permute.xlu0 %1525
      %1527 = vrot.lane.b32.xlu0 %v1520, 124
      %v1528 = vpop.permute.xlu0 %1527
      %v1530 = vsel %vm1204, %v1517, 0
      %v1533 = vsel %vm1204, %v1518, 0
      %v1536 = vsel %vm1204, %v1519, 0
      %v1539 = vsel %vm1204, %v1520, 0
      %v1542 = vsel %vm1204, %v1522, 0
      %v1545 = vsel %vm1204, %v1524, 0
      %v1548 = vsel %vm1204, %v1526, 0
      %v1551 = vsel %vm1204, %v1528, 0
      %1553 = vmatpush.bf16.xpose.msra.mxu0 0
      %1554 = vmatpush.bf16.xpose.msra.mxu0 0
      %1555 = vmatpush.bf16.xpose.msra.mxu0 0
      %1556 = vmatpush.bf16.xpose.msra.mxu0 0
      %1557 = vmatpush.bf16.xpose.msra.mxu0 %v1551
      %1558 = vmatpush.bf16.xpose.msra.mxu0 %v1548
      %1559 = vmatpush.bf16.xpose.msra.mxu0 %v1545
      %1560 = vmatpush.bf16.xpose.msra.mxu0 %v1542
      %1561 = vmatmul.bf16.gmra.mxu0 %v1530
      %v1562 = vpop.f32.mrf.mxu0
      %v1563 = vadd.f32 0.0, %v1562
      %v1564 = vpop.f32.mrf.mxu0
      %v1565 = vadd.f32 0.0, %v1564
      %1566 = vmatmul.bf16.gmra.mxu0 %v1533
      %v1567 = vpop.f32.mrf.mxu0
      %v1568 = vadd.f32 0.0, %v1567
      %v1569 = vpop.f32.mrf.mxu0
      %v1570 = vadd.f32 0.0, %v1569
      %1571 = vmatmul.bf16.gmra.mxu0 %v1536
      %v1572 = vpop.f32.mrf.mxu0
      %v1573 = vadd.f32 0.0, %v1572
      %v1574 = vpop.f32.mrf.mxu0
      %v1575 = vadd.f32 0.0, %v1574
      %1576 = vmatmul.bf16.gmra.mxu0 %v1539
      %v1577 = vpop.f32.mrf.mxu0
      %v1578 = vadd.f32 0.0, %v1577
      %v1579 = vpop.f32.mrf.mxu0
      %v1580 = vadd.f32 0.0, %v1579
      %1581 = vdwg.mxu0
      %v1590 = vunpack.c.l.b16 %v1152
      %v1591 = vunpack.c.l.b16 %v1153
      %v1592 = vunpack.c.l.b16 %v1154
      %v1593 = vunpack.c.l.b16 %v1155
      %v1594 = vunpack.c.l.b16 %v1156
      %v1595 = vunpack.c.l.b16 %v1157
      %v1596 = vunpack.c.l.b16 %v1158
      %v1597 = vunpack.c.l.b16 %v1159
      %v1598 = vpack.c.b16 %v1591, %v1590
      %v1599 = vpack.c.b16 %v1593, %v1592
      %v1600 = vpack.c.b16 %v1595, %v1594
      %v1601 = vpack.c.b16 %v1597, %v1596
      %1602 = vrot.lane.b32.xlu0 %v1598, 124
      %v1603 = vpop.permute.xlu0 %1602
      %1604 = vrot.lane.b32.xlu0 %v1599, 124
      %v1605 = vpop.permute.xlu0 %1604
      %1606 = vrot.lane.b32.xlu0 %v1600, 124
      %v1607 = vpop.permute.xlu0 %1606
      %1608 = vrot.lane.b32.xlu0 %v1601, 124
      %v1609 = vpop.permute.xlu0 %1608
      %v1611 = vsel %vm1204, %v1598, 0
      %v1614 = vsel %vm1204, %v1599, 0
      %v1617 = vsel %vm1204, %v1600, 0
      %v1620 = vsel %vm1204, %v1601, 0
      %v1623 = vsel %vm1204, %v1603, 0
      %v1626 = vsel %vm1204, %v1605, 0
      %v1629 = vsel %vm1204, %v1607, 0
      %v1632 = vsel %vm1204, %v1609, 0
      %1634 = vmatpush.bf16.xpose.msra.mxu0 0
      %1635 = vmatpush.bf16.xpose.msra.mxu0 0
      %1636 = vmatpush.bf16.xpose.msra.mxu0 0
      %1637 = vmatpush.bf16.xpose.msra.mxu0 0
      %1638 = vmatpush.bf16.xpose.msra.mxu0 %v1632
      %1639 = vmatpush.bf16.xpose.msra.mxu0 %v1629
      %1640 = vmatpush.bf16.xpose.msra.mxu0 %v1626
      %1641 = vmatpush.bf16.xpose.msra.mxu0 %v1623
      %1642 = vmatmul.bf16.gmra.mxu0 %v1611
      %v1643 = vpop.f32.mrf.mxu0
      %v1644 = vadd.f32 0.0, %v1643
      %v1645 = vpop.f32.mrf.mxu0
      %v1646 = vadd.f32 0.0, %v1645
      %1647 = vmatmul.bf16.gmra.mxu0 %v1614
      %v1648 = vpop.f32.mrf.mxu0
      %v1649 = vadd.f32 0.0, %v1648
      %v1650 = vpop.f32.mrf.mxu0
      %v1651 = vadd.f32 0.0, %v1650
      %1652 = vmatmul.bf16.gmra.mxu0 %v1617
      %v1653 = vpop.f32.mrf.mxu0
      %v1654 = vadd.f32 0.0, %v1653
      %v1655 = vpop.f32.mrf.mxu0
      %v1656 = vadd.f32 0.0, %v1655
      %1657 = vmatmul.bf16.gmra.mxu0 %v1620
      %v1658 = vpop.f32.mrf.mxu0
      %v1659 = vadd.f32 0.0, %v1658
      %v1660 = vpop.f32.mrf.mxu0
      %v1661 = vadd.f32 0.0, %v1660
      %1662 = vdwg.mxu0
      %v1671 = vunpack.c.l.b16 %v1160
      %v1672 = vunpack.c.l.b16 %v1161
      %v1673 = vunpack.c.l.b16 %v1162
      %v1674 = vunpack.c.l.b16 %v1163
      %v1675 = vunpack.c.l.b16 %v1164
      %v1676 = vunpack.c.l.b16 %v1165
      %v1677 = vunpack.c.l.b16 %v1166
      %v1678 = vunpack.c.l.b16 %v1167
      %v1679 = vpack.c.b16 %v1672, %v1671
      %v1680 = vpack.c.b16 %v1674, %v1673
      %v1681 = vpack.c.b16 %v1676, %v1675
      %v1682 = vpack.c.b16 %v1678, %v1677
      %1683 = vrot.lane.b32.xlu0 %v1679, 124
      %v1684 = vpop.permute.xlu0 %1683
      %1685 = vrot.lane.b32.xlu0 %v1680, 124
      %v1686 = vpop.permute.xlu0 %1685
      %1687 = vrot.lane.b32.xlu0 %v1681, 124
      %v1688 = vpop.permute.xlu0 %1687
      %1689 = vrot.lane.b32.xlu0 %v1682, 124
      %v1690 = vpop.permute.xlu0 %1689
      %v1692 = vsel %vm1204, %v1679, 0
      %v1695 = vsel %vm1204, %v1680, 0
      %v1698 = vsel %vm1204, %v1681, 0
      %v1701 = vsel %vm1204, %v1682, 0
      %v1704 = vsel %vm1204, %v1684, 0
      %v1707 = vsel %vm1204, %v1686, 0
      %v1710 = vsel %vm1204, %v1688, 0
      %v1713 = vsel %vm1204, %v1690, 0
      %1715 = vmatpush.bf16.xpose.msra.mxu0 0
      %1716 = vmatpush.bf16.xpose.msra.mxu0 0
      %1717 = vmatpush.bf16.xpose.msra.mxu0 0
      %1718 = vmatpush.bf16.xpose.msra.mxu0 0
      %1719 = vmatpush.bf16.xpose.msra.mxu0 %v1713
      %1720 = vmatpush.bf16.xpose.msra.mxu0 %v1710
      %1721 = vmatpush.bf16.xpose.msra.mxu0 %v1707
      %1722 = vmatpush.bf16.xpose.msra.mxu0 %v1704
      %1723 = vmatmul.bf16.gmra.mxu0 %v1692
      %v1724 = vpop.f32.mrf.mxu0
      %v1725 = vadd.f32 0.0, %v1724
      %v1726 = vpop.f32.mrf.mxu0
      %v1727 = vadd.f32 0.0, %v1726
      %1728 = vmatmul.bf16.gmra.mxu0 %v1695
      %v1729 = vpop.f32.mrf.mxu0
      %v1730 = vadd.f32 0.0, %v1729
      %v1731 = vpop.f32.mrf.mxu0
      %v1732 = vadd.f32 0.0, %v1731
      %1733 = vmatmul.bf16.gmra.mxu0 %v1698
      %v1734 = vpop.f32.mrf.mxu0
      %v1735 = vadd.f32 0.0, %v1734
      %v1736 = vpop.f32.mrf.mxu0
      %v1737 = vadd.f32 0.0, %v1736
      %1738 = vmatmul.bf16.gmra.mxu0 %v1701
      %v1739 = vpop.f32.mrf.mxu0
      %v1740 = vadd.f32 0.0, %v1739
      %v1741 = vpop.f32.mrf.mxu0
      %v1742 = vadd.f32 0.0, %v1741
      %1743 = vdwg.mxu0
      %v1752 = vunpack.c.l.b16 %v1168
      %v1753 = vunpack.c.l.b16 %v1169
      %v1754 = vunpack.c.l.b16 %v1170
      %v1755 = vunpack.c.l.b16 %v1171
      %v1756 = vunpack.c.l.b16 %v1172
      %v1757 = vunpack.c.l.b16 %v1173
      %v1758 = vunpack.c.l.b16 %v1174
      %v1759 = vunpack.c.l.b16 %v1175
      %v1760 = vpack.c.b16 %v1753, %v1752
      %v1761 = vpack.c.b16 %v1755, %v1754
      %v1762 = vpack.c.b16 %v1757, %v1756
      %v1763 = vpack.c.b16 %v1759, %v1758
      %1764 = vrot.lane.b32.xlu0 %v1760, 124
      %v1765 = vpop.permute.xlu0 %1764
      %1766 = vrot.lane.b32.xlu0 %v1761, 124
      %v1767 = vpop.permute.xlu0 %1766
      %1768 = vrot.lane.b32.xlu0 %v1762, 124
      %v1769 = vpop.permute.xlu0 %1768
      %1770 = vrot.lane.b32.xlu0 %v1763, 124
      %v1771 = vpop.permute.xlu0 %1770
      %v1773 = vsel %vm1204, %v1760, 0
      %v1776 = vsel %vm1204, %v1761, 0
      %v1779 = vsel %vm1204, %v1762, 0
      %v1782 = vsel %vm1204, %v1763, 0
      %v1785 = vsel %vm1204, %v1765, 0
      %v1788 = vsel %vm1204, %v1767, 0
      %v1791 = vsel %vm1204, %v1769, 0
      %v1794 = vsel %vm1204, %v1771, 0
      %1796 = vmatpush.bf16.xpose.msra.mxu0 0
      %1797 = vmatpush.bf16.xpose.msra.mxu0 0
      %1798 = vmatpush.bf16.xpose.msra.mxu0 0
      %1799 = vmatpush.bf16.xpose.msra.mxu0 0
      %1800 = vmatpush.bf16.xpose.msra.mxu0 %v1794
      %1801 = vmatpush.bf16.xpose.msra.mxu0 %v1791
      %1802 = vmatpush.bf16.xpose.msra.mxu0 %v1788
      %1803 = vmatpush.bf16.xpose.msra.mxu0 %v1785
      %1804 = vmatmul.bf16.gmra.mxu0 %v1773
      %v1805 = vpop.f32.mrf.mxu0
      %v1806 = vadd.f32 0.0, %v1805
      %v1807 = vpop.f32.mrf.mxu0
      %v1808 = vadd.f32 0.0, %v1807
      %1809 = vmatmul.bf16.gmra.mxu0 %v1776
      %v1810 = vpop.f32.mrf.mxu0
      %v1811 = vadd.f32 0.0, %v1810
      %v1812 = vpop.f32.mrf.mxu0
      %v1813 = vadd.f32 0.0, %v1812
      %1814 = vmatmul.bf16.gmra.mxu0 %v1779
      %v1815 = vpop.f32.mrf.mxu0
      %v1816 = vadd.f32 0.0, %v1815
      %v1817 = vpop.f32.mrf.mxu0
      %v1818 = vadd.f32 0.0, %v1817
      %1819 = vmatmul.bf16.gmra.mxu0 %v1782
      %v1820 = vpop.f32.mrf.mxu0
      %v1821 = vadd.f32 0.0, %v1820
      %v1822 = vpop.f32.mrf.mxu0
      %v1823 = vadd.f32 0.0, %v1822
      %1824 = vdwg.mxu0
      %vm1825 = vcmask 523264
      %v1826 = vsel %vm1825, %v1239, -inf
      %1827 = vmax.xlane.f32.xlu0 %v1826
      %v1828 = vpop.xlane.xlu0 %1827
      %v1829 = vsel %vm1825, %v1241, -inf
      %1830 = vmax.xlane.f32.xlu0 %v1829
      %v1831 = vpop.xlane.xlu0 %1830
      %v1832 = vsel %vm1825, %v1244, -inf
      %1833 = vmax.xlane.f32.xlu0 %v1832
      %v1834 = vpop.xlane.xlu0 %1833
      %v1835 = vsel %vm1825, %v1246, -inf
      %1836 = vmax.xlane.f32.xlu0 %v1835
      %v1837 = vpop.xlane.xlu0 %1836
      %v1838 = vsel %vm1825, %v1249, -inf
      %1839 = vmax.xlane.f32.xlu0 %v1838
      %v1840 = vpop.xlane.xlu0 %1839
      %v1841 = vsel %vm1825, %v1251, -inf
      %1842 = vmax.xlane.f32.xlu0 %v1841
      %v1843 = vpop.xlane.xlu0 %1842
      %v1844 = vsel %vm1825, %v1254, -inf
      %1845 = vmax.xlane.f32.xlu0 %v1844
      %v1846 = vpop.xlane.xlu0 %1845
      %v1847 = vsel %vm1825, %v1256, -inf
      %1848 = vmax.xlane.f32.xlu0 %v1847
      %v1849 = vpop.xlane.xlu0 %1848
      %v1850 = vsel %vm1825, %v1320, -inf
      %1851 = vmax.xlane.f32.xlu0 %v1850
      %v1852 = vpop.xlane.xlu0 %1851
      %v1853 = vsel %vm1825, %v1322, -inf
      %1854 = vmax.xlane.f32.xlu0 %v1853
      %v1855 = vpop.xlane.xlu0 %1854
      %v1856 = vsel %vm1825, %v1325, -inf
      %1857 = vmax.xlane.f32.xlu0 %v1856
      %v1858 = vpop.xlane.xlu0 %1857
      %v1859 = vsel %vm1825, %v1327, -inf
      %1860 = vmax.xlane.f32.xlu0 %v1859
      %v1861 = vpop.xlane.xlu0 %1860
      %v1862 = vsel %vm1825, %v1330, -inf
      %1863 = vmax.xlane.f32.xlu0 %v1862
      %v1864 = vpop.xlane.xlu0 %1863
      %v1865 = vsel %vm1825, %v1332, -inf
      %1866 = vmax.xlane.f32.xlu0 %v1865
      %v1867 = vpop.xlane.xlu0 %1866
      %v1868 = vsel %vm1825, %v1335, -inf
      %1869 = vmax.xlane.f32.xlu0 %v1868
      %v1870 = vpop.xlane.xlu0 %1869
      %v1871 = vsel %vm1825, %v1337, -inf
      %1872 = vmax.xlane.f32.xlu0 %v1871
      %v1873 = vpop.xlane.xlu0 %1872
      %v1874 = vsel %vm1825, %v1401, -inf
      %1875 = vmax.xlane.f32.xlu0 %v1874
      %v1876 = vpop.xlane.xlu0 %1875
      %v1877 = vsel %vm1825, %v1403, -inf
      %1878 = vmax.xlane.f32.xlu0 %v1877
      %v1879 = vpop.xlane.xlu0 %1878
      %v1880 = vsel %vm1825, %v1406, -inf
      %1881 = vmax.xlane.f32.xlu0 %v1880
      %v1882 = vpop.xlane.xlu0 %1881
      %v1883 = vsel %vm1825, %v1408, -inf
      %1884 = vmax.xlane.f32.xlu0 %v1883
      %v1885 = vpop.xlane.xlu0 %1884
      %v1886 = vsel %vm1825, %v1411, -inf
      %1887 = vmax.xlane.f32.xlu0 %v1886
      %v1888 = vpop.xlane.xlu0 %1887
      %v1889 = vsel %vm1825, %v1413, -inf
      %1890 = vmax.xlane.f32.xlu0 %v1889
      %v1891 = vpop.xlane.xlu0 %1890
      %v1892 = vsel %vm1825, %v1416, -inf
      %1893 = vmax.xlane.f32.xlu0 %v1892
      %v1894 = vpop.xlane.xlu0 %1893
      %v1895 = vsel %vm1825, %v1418, -inf
      %1896 = vmax.xlane.f32.xlu0 %v1895
      %v1897 = vpop.xlane.xlu0 %1896
      %v1898 = vsel %vm1825, %v1482, -inf
      %1899 = vmax.xlane.f32.xlu0 %v1898
      %v1900 = vpop.xlane.xlu0 %1899
      %v1901 = vsel %vm1825, %v1484, -inf
      %1902 = vmax.xlane.f32.xlu0 %v1901
      %v1903 = vpop.xlane.xlu0 %1902
      %v1904 = vsel %vm1825, %v1487, -inf
      %1905 = vmax.xlane.f32.xlu0 %v1904
      %v1906 = vpop.xlane.xlu0 %1905
      %v1907 = vsel %vm1825, %v1489, -inf
      %1908 = vmax.xlane.f32.xlu0 %v1907
      %v1909 = vpop.xlane.xlu0 %1908
      %v1910 = vsel %vm1825, %v1492, -inf
      %1911 = vmax.xlane.f32.xlu0 %v1910
      %v1912 = vpop.xlane.xlu0 %1911
      %v1913 = vsel %vm1825, %v1494, -inf
      %1914 = vmax.xlane.f32.xlu0 %v1913
      %v1915 = vpop.xlane.xlu0 %1914
      %v1916 = vsel %vm1825, %v1497, -inf
      %1917 = vmax.xlane.f32.xlu0 %v1916
      %v1918 = vpop.xlane.xlu0 %1917
      %v1919 = vsel %vm1825, %v1499, -inf
      %1920 = vmax.xlane.f32.xlu0 %v1919
      %v1921 = vpop.xlane.xlu0 %1920
      %v1922 = vsel %vm1825, %v1563, -inf
      %1923 = vmax.xlane.f32.xlu0 %v1922
      %v1924 = vpop.xlane.xlu0 %1923
      %v1925 = vsel %vm1825, %v1565, -inf
      %1926 = vmax.xlane.f32.xlu0 %v1925
      %v1927 = vpop.xlane.xlu0 %1926
      %v1928 = vsel %vm1825, %v1568, -inf
      %1929 = vmax.xlane.f32.xlu0 %v1928
      %v1930 = vpop.xlane.xlu0 %1929
      %v1931 = vsel %vm1825, %v1570, -inf
      %1932 = vmax.xlane.f32.xlu0 %v1931
      %v1933 = vpop.xlane.xlu0 %1932
      %v1934 = vsel %vm1825, %v1573, -inf
      %1935 = vmax.xlane.f32.xlu0 %v1934
      %v1936 = vpop.xlane.xlu0 %1935
      %v1937 = vsel %vm1825, %v1575, -inf
      %1938 = vmax.xlane.f32.xlu0 %v1937
      %v1939 = vpop.xlane.xlu0 %1938
      %v1940 = vsel %vm1825, %v1578, -inf
      %1941 = vmax.xlane.f32.xlu0 %v1940
      %v1942 = vpop.xlane.xlu0 %1941
      %v1943 = vsel %vm1825, %v1580, -inf
      %1944 = vmax.xlane.f32.xlu0 %v1943
      %v1945 = vpop.xlane.xlu0 %1944
      %v1946 = vsel %vm1825, %v1644, -inf
      %1947 = vmax.xlane.f32.xlu0 %v1946
      %v1948 = vpop.xlane.xlu0 %1947
      %v1949 = vsel %vm1825, %v1646, -inf
      %1950 = vmax.xlane.f32.xlu0 %v1949
      %v1951 = vpop.xlane.xlu0 %1950
      %v1952 = vsel %vm1825, %v1649, -inf
      %1953 = vmax.xlane.f32.xlu0 %v1952
      %v1954 = vpop.xlane.xlu0 %1953
      %v1955 = vsel %vm1825, %v1651, -inf
      %1956 = vmax.xlane.f32.xlu0 %v1955
      %v1957 = vpop.xlane.xlu0 %1956
      %v1958 = vsel %vm1825, %v1654, -inf
      %1959 = vmax.xlane.f32.xlu0 %v1958
      %v1960 = vpop.xlane.xlu0 %1959
      %v1961 = vsel %vm1825, %v1656, -inf
      %1962 = vmax.xlane.f32.xlu0 %v1961
      %v1963 = vpop.xlane.xlu0 %1962
      %v1964 = vsel %vm1825, %v1659, -inf
      %1965 = vmax.xlane.f32.xlu0 %v1964
      %v1966 = vpop.xlane.xlu0 %1965
      %v1967 = vsel %vm1825, %v1661, -inf
      %1968 = vmax.xlane.f32.xlu0 %v1967
      %v1969 = vpop.xlane.xlu0 %1968
      %v1970 = vsel %vm1825, %v1725, -inf
      %1971 = vmax.xlane.f32.xlu0 %v1970
      %v1972 = vpop.xlane.xlu0 %1971
      %v1973 = vsel %vm1825, %v1727, -inf
      %1974 = vmax.xlane.f32.xlu0 %v1973
      %v1975 = vpop.xlane.xlu0 %1974
      %v1976 = vsel %vm1825, %v1730, -inf
      %1977 = vmax.xlane.f32.xlu0 %v1976
      %v1978 = vpop.xlane.xlu0 %1977
      %v1979 = vsel %vm1825, %v1732, -inf
      %1980 = vmax.xlane.f32.xlu0 %v1979
      %v1981 = vpop.xlane.xlu0 %1980
      %v1982 = vsel %vm1825, %v1735, -inf
      %1983 = vmax.xlane.f32.xlu0 %v1982
      %v1984 = vpop.xlane.xlu0 %1983
      %v1985 = vsel %vm1825, %v1737, -inf
      %1986 = vmax.xlane.f32.xlu0 %v1985
      %v1987 = vpop.xlane.xlu0 %1986
      %v1988 = vsel %vm1825, %v1740, -inf
      %1989 = vmax.xlane.f32.xlu0 %v1988
      %v1990 = vpop.xlane.xlu0 %1989
      %v1991 = vsel %vm1825, %v1742, -inf
      %1992 = vmax.xlane.f32.xlu0 %v1991
      %v1993 = vpop.xlane.xlu0 %1992
      %v1994 = vsel %vm1825, %v1806, -inf
      %1995 = vmax.xlane.f32.xlu0 %v1994
      %v1996 = vpop.xlane.xlu0 %1995
      %v1997 = vsel %vm1825, %v1808, -inf
      %1998 = vmax.xlane.f32.xlu0 %v1997
      %v1999 = vpop.xlane.xlu0 %1998
      %v2000 = vsel %vm1825, %v1811, -inf
      %2001 = vmax.xlane.f32.xlu0 %v2000
      %v2002 = vpop.xlane.xlu0 %2001
      %v2003 = vsel %vm1825, %v1813, -inf
      %2004 = vmax.xlane.f32.xlu0 %v2003
      %v2005 = vpop.xlane.xlu0 %2004
      %v2006 = vsel %vm1825, %v1816, -inf
      %2007 = vmax.xlane.f32.xlu0 %v2006
      %v2008 = vpop.xlane.xlu0 %2007
      %v2009 = vsel %vm1825, %v1818, -inf
      %2010 = vmax.xlane.f32.xlu0 %v2009
      %v2011 = vpop.xlane.xlu0 %2010
      %v2012 = vsel %vm1825, %v1821, -inf
      %2013 = vmax.xlane.f32.xlu0 %v2012
      %v2014 = vpop.xlane.xlu0 %2013
      %v2015 = vsel %vm1825, %v1823, -inf
      %2016 = vmax.xlane.f32.xlu0 %v2015
      %v2017 = vpop.xlane.xlu0 %2016
      %v2018 = vsub.f32 %v1239, %v1828
      %v2019 = vsub.f32 %v1241, %v1831
      %v2020 = vsub.f32 %v1244, %v1834
      %v2021 = vsub.f32 %v1246, %v1837
      %v2022 = vsub.f32 %v1249, %v1840
      %v2023 = vsub.f32 %v1251, %v1843
      %v2024 = vsub.f32 %v1254, %v1846
      %v2025 = vsub.f32 %v1256, %v1849
      %v2026 = vsub.f32 %v1320, %v1852
      %v2027 = vsub.f32 %v1322, %v1855
      %v2028 = vsub.f32 %v1325, %v1858
      %v2029 = vsub.f32 %v1327, %v1861
      %v2030 = vsub.f32 %v1330, %v1864
      %v2031 = vsub.f32 %v1332, %v1867
      %v2032 = vsub.f32 %v1335, %v1870
      %v2033 = vsub.f32 %v1337, %v1873
      %v2034 = vsub.f32 %v1401, %v1876
      %v2035 = vsub.f32 %v1403, %v1879
      %v2036 = vsub.f32 %v1406, %v1882
      %v2037 = vsub.f32 %v1408, %v1885
      %v2038 = vsub.f32 %v1411, %v1888
      %v2039 = vsub.f32 %v1413, %v1891
      %v2040 = vsub.f32 %v1416, %v1894
      %v2041 = vsub.f32 %v1418, %v1897
      %v2042 = vsub.f32 %v1482, %v1900
      %v2043 = vsub.f32 %v1484, %v1903
      %v2044 = vsub.f32 %v1487, %v1906
      %v2045 = vsub.f32 %v1489, %v1909
      %v2046 = vsub.f32 %v1492, %v1912
      %v2047 = vsub.f32 %v1494, %v1915
      %v2048 = vsub.f32 %v1497, %v1918
      %v2049 = vsub.f32 %v1499, %v1921
      %v2050 = vsub.f32 %v1563, %v1924
      %v2051 = vsub.f32 %v1565, %v1927
      %v2052 = vsub.f32 %v1568, %v1930
      %v2053 = vsub.f32 %v1570, %v1933
      %v2054 = vsub.f32 %v1573, %v1936
      %v2055 = vsub.f32 %v1575, %v1939
      %v2056 = vsub.f32 %v1578, %v1942
      %v2057 = vsub.f32 %v1580, %v1945
      %v2058 = vsub.f32 %v1644, %v1948
      %v2059 = vsub.f32 %v1646, %v1951
      %v2060 = vsub.f32 %v1649, %v1954
      %v2061 = vsub.f32 %v1651, %v1957
      %v2062 = vsub.f32 %v1654, %v1960
      %v2063 = vsub.f32 %v1656, %v1963
      %v2064 = vsub.f32 %v1659, %v1966
      %v2065 = vsub.f32 %v1661, %v1969
      %v2066 = vsub.f32 %v1725, %v1972
      %v2067 = vsub.f32 %v1727, %v1975
      %v2068 = vsub.f32 %v1730, %v1978
      %v2069 = vsub.f32 %v1732, %v1981
      %v2070 = vsub.f32 %v1735, %v1984
      %v2071 = vsub.f32 %v1737, %v1987
      %v2072 = vsub.f32 %v1740, %v1990
      %v2073 = vsub.f32 %v1742, %v1993
      %v2074 = vsub.f32 %v1806, %v1996
      %v2075 = vsub.f32 %v1808, %v1999
      %v2076 = vsub.f32 %v1811, %v2002
      %v2077 = vsub.f32 %v1813, %v2005
      %v2078 = vsub.f32 %v1816, %v2008
      %v2079 = vsub.f32 %v1818, %v2011
      %v2080 = vsub.f32 %v1821, %v2014
      %v2081 = vsub.f32 %v1823, %v2017
      %v2082 = vmul.f32 %v2018, 1.442695
      %v2083 = vpow.pop %v2082
      %v2084 = vmul.f32 %v2019, 1.442695
      %v2085 = vpow.pop %v2084
      %v2086 = vmul.f32 %v2020, 1.442695
      %v2087 = vpow.pop %v2086
      %v2088 = vmul.f32 %v2021, 1.442695
      %v2089 = vpow.pop %v2088
      %v2090 = vmul.f32 %v2022, 1.442695
      %v2091 = vpow.pop %v2090
      %v2092 = vmul.f32 %v2023, 1.442695
      %v2093 = vpow.pop %v2092
      %v2094 = vmul.f32 %v2024, 1.442695
      %v2095 = vpow.pop %v2094
      %v2096 = vmul.f32 %v2025, 1.442695
      %v2097 = vpow.pop %v2096
      %v2098 = vmul.f32 %v2026, 1.442695
      %v2099 = vpow.pop %v2098
      %v2100 = vmul.f32 %v2027, 1.442695
      %v2101 = vpow.pop %v2100
      %v2102 = vmul.f32 %v2028, 1.442695
      %v2103 = vpow.pop %v2102
      %v2104 = vmul.f32 %v2029, 1.442695
      %v2105 = vpow.pop %v2104
      %v2106 = vmul.f32 %v2030, 1.442695
      %v2107 = vpow.pop %v2106
      %v2108 = vmul.f32 %v2031, 1.442695
      %v2109 = vpow.pop %v2108
      %v2110 = vmul.f32 %v2032, 1.442695
      %v2111 = vpow.pop %v2110
      %v2112 = vmul.f32 %v2033, 1.442695
      %v2113 = vpow.pop %v2112
      %v2114 = vmul.f32 %v2034, 1.442695
      %v2115 = vpow.pop %v2114
      %v2116 = vmul.f32 %v2035, 1.442695
      %v2117 = vpow.pop %v2116
      %v2118 = vmul.f32 %v2036, 1.442695
      %v2119 = vpow.pop %v2118
      %v2120 = vmul.f32 %v2037, 1.442695
      %v2121 = vpow.pop %v2120
      %v2122 = vmul.f32 %v2038, 1.442695
      %v2123 = vpow.pop %v2122
      %v2124 = vmul.f32 %v2039, 1.442695
      %v2125 = vpow.pop %v2124
      %v2126 = vmul.f32 %v2040, 1.442695
      %v2127 = vpow.pop %v2126
      %v2128 = vmul.f32 %v2041, 1.442695
      %v2129 = vpow.pop %v2128
      %v2130 = vmul.f32 %v2042, 1.442695
      %v2131 = vpow.pop %v2130
      %v2132 = vmul.f32 %v2043, 1.442695
      %v2133 = vpow.pop %v2132
      %v2134 = vmul.f32 %v2044, 1.442695
      %v2135 = vpow.pop %v2134
      %v2136 = vmul.f32 %v2045, 1.442695
      %v2137 = vpow.pop %v2136
      %v2138 = vmul.f32 %v2046, 1.442695
      %v2139 = vpow.pop %v2138
      %v2140 = vmul.f32 %v2047, 1.442695
      %v2141 = vpow.pop %v2140
      %v2142 = vmul.f32 %v2048, 1.442695
      %v2143 = vpow.pop %v2142
      %v2144 = vmul.f32 %v2049, 1.442695
      %v2145 = vpow.pop %v2144
      %v2146 = vmul.f32 %v2050, 1.442695
      %v2147 = vpow.pop %v2146
      %v2148 = vmul.f32 %v2051, 1.442695
      %v2149 = vpow.pop %v2148
      %v2150 = vmul.f32 %v2052, 1.442695
      %v2151 = vpow.pop %v2150
      %v2152 = vmul.f32 %v2053, 1.442695
      %v2153 = vpow.pop %v2152
      %v2154 = vmul.f32 %v2054, 1.442695
      %v2155 = vpow.pop %v2154
      %v2156 = vmul.f32 %v2055, 1.442695
      %v2157 = vpow.pop %v2156
      %v2158 = vmul.f32 %v2056, 1.442695
      %v2159 = vpow.pop %v2158
      %v2160 = vmul.f32 %v2057, 1.442695
      %v2161 = vpow.pop %v2160
      %v2162 = vmul.f32 %v2058, 1.442695
      %v2163 = vpow.pop %v2162
      %v2164 = vmul.f32 %v2059, 1.442695
      %v2165 = vpow.pop %v2164
      %v2166 = vmul.f32 %v2060, 1.442695
      %v2167 = vpow.pop %v2166
      %v2168 = vmul.f32 %v2061, 1.442695
      %v2169 = vpow.pop %v2168
      %v2170 = vmul.f32 %v2062, 1.442695
      %v2171 = vpow.pop %v2170
      %v2172 = vmul.f32 %v2063, 1.442695
      %v2173 = vpow.pop %v2172
      %v2174 = vmul.f32 %v2064, 1.442695
      %v2175 = vpow.pop %v2174
      %v2176 = vmul.f32 %v2065, 1.442695
      %v2177 = vpow.pop %v2176
      %v2178 = vmul.f32 %v2066, 1.442695
      %v2179 = vpow.pop %v2178
      %v2180 = vmul.f32 %v2067, 1.442695
      %v2181 = vpow.pop %v2180
      %v2182 = vmul.f32 %v2068, 1.442695
      %v2183 = vpow.pop %v2182
      %v2184 = vmul.f32 %v2069, 1.442695
      %v2185 = vpow.pop %v2184
      %v2186 = vmul.f32 %v2070, 1.442695
      %v2187 = vpow.pop %v2186
      %v2188 = vmul.f32 %v2071, 1.442695
      %v2189 = vpow.pop %v2188
      %v2190 = vmul.f32 %v2072, 1.442695
      %v2191 = vpow.pop %v2190
      %v2192 = vmul.f32 %v2073, 1.442695
      %v2193 = vpow.pop %v2192
      %v2194 = vmul.f32 %v2074, 1.442695
      %v2195 = vpow.pop %v2194
      %v2196 = vmul.f32 %v2075, 1.442695
      %v2197 = vpow.pop %v2196
      %v2198 = vmul.f32 %v2076, 1.442695
      %v2199 = vpow.pop %v2198
      %v2200 = vmul.f32 %v2077, 1.442695
      %v2201 = vpow.pop %v2200
      %v2202 = vmul.f32 %v2078, 1.442695
      %v2203 = vpow.pop %v2202
      %v2204 = vmul.f32 %v2079, 1.442695
      %v2205 = vpow.pop %v2204
      %v2206 = vmul.f32 %v2080, 1.442695
      %v2207 = vpow.pop %v2206
      %v2208 = vmul.f32 %v2081, 1.442695
      %v2209 = vpow.pop %v2208
      %v2210 = vsel %vm1825, %v2083, 0.0
      %2211 = vadd.xlane.f32.xlu0 %v2210
      %v2212 = vpop.xlane.xlu0 %2211
      %v2213 = vsel %vm1825, %v2085, 0.0
      %2214 = vadd.xlane.f32.xlu0 %v2213
      %v2215 = vpop.xlane.xlu0 %2214
      %v2216 = vsel %vm1825, %v2087, 0.0
      %2217 = vadd.xlane.f32.xlu0 %v2216
      %v2218 = vpop.xlane.xlu0 %2217
      %v2219 = vsel %vm1825, %v2089, 0.0
      %2220 = vadd.xlane.f32.xlu0 %v2219
      %v2221 = vpop.xlane.xlu0 %2220
      %v2222 = vsel %vm1825, %v2091, 0.0
      %2223 = vadd.xlane.f32.xlu0 %v2222
      %v2224 = vpop.xlane.xlu0 %2223
      %v2225 = vsel %vm1825, %v2093, 0.0
      %2226 = vadd.xlane.f32.xlu0 %v2225
      %v2227 = vpop.xlane.xlu0 %2226
      %v2228 = vsel %vm1825, %v2095, 0.0
      %2229 = vadd.xlane.f32.xlu0 %v2228
      %v2230 = vpop.xlane.xlu0 %2229
      %v2231 = vsel %vm1825, %v2097, 0.0
      %2232 = vadd.xlane.f32.xlu0 %v2231
      %v2233 = vpop.xlane.xlu0 %2232
      %v2234 = vsel %vm1825, %v2099, 0.0
      %2235 = vadd.xlane.f32.xlu0 %v2234
      %v2236 = vpop.xlane.xlu0 %2235
      %v2237 = vsel %vm1825, %v2101, 0.0
      %2238 = vadd.xlane.f32.xlu0 %v2237
      %v2239 = vpop.xlane.xlu0 %2238
      %v2240 = vsel %vm1825, %v2103, 0.0
      %2241 = vadd.xlane.f32.xlu0 %v2240
      %v2242 = vpop.xlane.xlu0 %2241
      %v2243 = vsel %vm1825, %v2105, 0.0
      %2244 = vadd.xlane.f32.xlu0 %v2243
      %v2245 = vpop.xlane.xlu0 %2244
      %v2246 = vsel %vm1825, %v2107, 0.0
      %2247 = vadd.xlane.f32.xlu0 %v2246
      %v2248 = vpop.xlane.xlu0 %2247
      %v2249 = vsel %vm1825, %v2109, 0.0
      %2250 = vadd.xlane.f32.xlu0 %v2249
      %v2251 = vpop.xlane.xlu0 %2250
      %v2252 = vsel %vm1825, %v2111, 0.0
      %2253 = vadd.xlane.f32.xlu0 %v2252
      %v2254 = vpop.xlane.xlu0 %2253
      %v2255 = vsel %vm1825, %v2113, 0.0
      %2256 = vadd.xlane.f32.xlu0 %v2255
      %v2257 = vpop.xlane.xlu0 %2256
      %v2258 = vsel %vm1825, %v2115, 0.0
      %2259 = vadd.xlane.f32.xlu0 %v2258
      %v2260 = vpop.xlane.xlu0 %2259
      %v2261 = vsel %vm1825, %v2117, 0.0
      %2262 = vadd.xlane.f32.xlu0 %v2261
      %v2263 = vpop.xlane.xlu0 %2262
      %v2264 = vsel %vm1825, %v2119, 0.0
      %2265 = vadd.xlane.f32.xlu0 %v2264
      %v2266 = vpop.xlane.xlu0 %2265
      %v2267 = vsel %vm1825, %v2121, 0.0
      %2268 = vadd.xlane.f32.xlu0 %v2267
      %v2269 = vpop.xlane.xlu0 %2268
      %v2270 = vsel %vm1825, %v2123, 0.0
      %2271 = vadd.xlane.f32.xlu0 %v2270
      %v2272 = vpop.xlane.xlu0 %2271
      %v2273 = vsel %vm1825, %v2125, 0.0
      %2274 = vadd.xlane.f32.xlu0 %v2273
      %v2275 = vpop.xlane.xlu0 %2274
      %v2276 = vsel %vm1825, %v2127, 0.0
      %2277 = vadd.xlane.f32.xlu0 %v2276
      %v2278 = vpop.xlane.xlu0 %2277
      %v2279 = vsel %vm1825, %v2129, 0.0
      %2280 = vadd.xlane.f32.xlu0 %v2279
      %v2281 = vpop.xlane.xlu0 %2280
      %v2282 = vsel %vm1825, %v2131, 0.0
      %2283 = vadd.xlane.f32.xlu0 %v2282
      %v2284 = vpop.xlane.xlu0 %2283
      %v2285 = vsel %vm1825, %v2133, 0.0
      %2286 = vadd.xlane.f32.xlu0 %v2285
      %v2287 = vpop.xlane.xlu0 %2286
      %v2288 = vsel %vm1825, %v2135, 0.0
      %2289 = vadd.xlane.f32.xlu0 %v2288
      %v2290 = vpop.xlane.xlu0 %2289
      %v2291 = vsel %vm1825, %v2137, 0.0
      %2292 = vadd.xlane.f32.xlu0 %v2291
      %v2293 = vpop.xlane.xlu0 %2292
      %v2294 = vsel %vm1825, %v2139, 0.0
      %2295 = vadd.xlane.f32.xlu0 %v2294
      %v2296 = vpop.xlane.xlu0 %2295
      %v2297 = vsel %vm1825, %v2141, 0.0
      %2298 = vadd.xlane.f32.xlu0 %v2297
      %v2299 = vpop.xlane.xlu0 %2298
      %v2300 = vsel %vm1825, %v2143, 0.0
      %2301 = vadd.xlane.f32.xlu0 %v2300
      %v2302 = vpop.xlane.xlu0 %2301
      %v2303 = vsel %vm1825, %v2145, 0.0
      %2304 = vadd.xlane.f32.xlu0 %v2303
      %v2305 = vpop.xlane.xlu0 %2304
      %v2306 = vsel %vm1825, %v2147, 0.0
      %2307 = vadd.xlane.f32.xlu0 %v2306
      %v2308 = vpop.xlane.xlu0 %2307
      %v2309 = vsel %vm1825, %v2149, 0.0
      %2310 = vadd.xlane.f32.xlu0 %v2309
      %v2311 = vpop.xlane.xlu0 %2310
      %v2312 = vsel %vm1825, %v2151, 0.0
      %2313 = vadd.xlane.f32.xlu0 %v2312
      %v2314 = vpop.xlane.xlu0 %2313
      %v2315 = vsel %vm1825, %v2153, 0.0
      %2316 = vadd.xlane.f32.xlu0 %v2315
      %v2317 = vpop.xlane.xlu0 %2316
      %v2318 = vsel %vm1825, %v2155, 0.0
      %2319 = vadd.xlane.f32.xlu0 %v2318
      %v2320 = vpop.xlane.xlu0 %2319
      %v2321 = vsel %vm1825, %v2157, 0.0
      %2322 = vadd.xlane.f32.xlu0 %v2321
      %v2323 = vpop.xlane.xlu0 %2322
      %v2324 = vsel %vm1825, %v2159, 0.0
      %2325 = vadd.xlane.f32.xlu0 %v2324
      %v2326 = vpop.xlane.xlu0 %2325
      %v2327 = vsel %vm1825, %v2161, 0.0
      %2328 = vadd.xlane.f32.xlu0 %v2327
      %v2329 = vpop.xlane.xlu0 %2328
      %v2330 = vsel %vm1825, %v2163, 0.0
      %2331 = vadd.xlane.f32.xlu0 %v2330
      %v2332 = vpop.xlane.xlu0 %2331
      %v2333 = vsel %vm1825, %v2165, 0.0
      %2334 = vadd.xlane.f32.xlu0 %v2333
      %v2335 = vpop.xlane.xlu0 %2334
      %v2336 = vsel %vm1825, %v2167, 0.0
      %2337 = vadd.xlane.f32.xlu0 %v2336
      %v2338 = vpop.xlane.xlu0 %2337
      %v2339 = vsel %vm1825, %v2169, 0.0
      %2340 = vadd.xlane.f32.xlu0 %v2339
      %v2341 = vpop.xlane.xlu0 %2340
      %v2342 = vsel %vm1825, %v2171, 0.0
      %2343 = vadd.xlane.f32.xlu0 %v2342
      %v2344 = vpop.xlane.xlu0 %2343
      %v2345 = vsel %vm1825, %v2173, 0.0
      %2346 = vadd.xlane.f32.xlu0 %v2345
      %v2347 = vpop.xlane.xlu0 %2346
      %v2348 = vsel %vm1825, %v2175, 0.0
      %2349 = vadd.xlane.f32.xlu0 %v2348
      %v2350 = vpop.xlane.xlu0 %2349
      %v2351 = vsel %vm1825, %v2177, 0.0
      %2352 = vadd.xlane.f32.xlu0 %v2351
      %v2353 = vpop.xlane.xlu0 %2352
      %v2354 = vsel %vm1825, %v2179, 0.0
      %2355 = vadd.xlane.f32.xlu0 %v2354
      %v2356 = vpop.xlane.xlu0 %2355
      %v2357 = vsel %vm1825, %v2181, 0.0
      %2358 = vadd.xlane.f32.xlu0 %v2357
      %v2359 = vpop.xlane.xlu0 %2358
      %v2360 = vsel %vm1825, %v2183, 0.0
      %2361 = vadd.xlane.f32.xlu0 %v2360
      %v2362 = vpop.xlane.xlu0 %2361
      %v2363 = vsel %vm1825, %v2185, 0.0
      %2364 = vadd.xlane.f32.xlu0 %v2363
      %v2365 = vpop.xlane.xlu0 %2364
      %v2366 = vsel %vm1825, %v2187, 0.0
      %2367 = vadd.xlane.f32.xlu0 %v2366
      %v2368 = vpop.xlane.xlu0 %2367
      %v2369 = vsel %vm1825, %v2189, 0.0
      %2370 = vadd.xlane.f32.xlu0 %v2369
      %v2371 = vpop.xlane.xlu0 %2370
      %v2372 = vsel %vm1825, %v2191, 0.0
      %2373 = vadd.xlane.f32.xlu0 %v2372
      %v2374 = vpop.xlane.xlu0 %2373
      %v2375 = vsel %vm1825, %v2193, 0.0
      %2376 = vadd.xlane.f32.xlu0 %v2375
      %v2377 = vpop.xlane.xlu0 %2376
      %v2378 = vsel %vm1825, %v2195, 0.0
      %2379 = vadd.xlane.f32.xlu0 %v2378
      %v2380 = vpop.xlane.xlu0 %2379
      %v2381 = vsel %vm1825, %v2197, 0.0
      %2382 = vadd.xlane.f32.xlu0 %v2381
      %v2383 = vpop.xlane.xlu0 %2382
      %v2384 = vsel %vm1825, %v2199, 0.0
      %2385 = vadd.xlane.f32.xlu0 %v2384
      %v2386 = vpop.xlane.xlu0 %2385
      %v2387 = vsel %vm1825, %v2201, 0.0
      %2388 = vadd.xlane.f32.xlu0 %v2387
      %v2389 = vpop.xlane.xlu0 %2388
      %v2390 = vsel %vm1825, %v2203, 0.0
      %2391 = vadd.xlane.f32.xlu0 %v2390
      %v2392 = vpop.xlane.xlu0 %2391
      %v2393 = vsel %vm1825, %v2205, 0.0
      %2394 = vadd.xlane.f32.xlu0 %v2393
      %v2395 = vpop.xlane.xlu0 %2394
      %v2396 = vsel %vm1825, %v2207, 0.0
      %2397 = vadd.xlane.f32.xlu0 %v2396
      %v2398 = vpop.xlane.xlu0 %2397
      %v2399 = vsel %vm1825, %v2209, 0.0
      %2400 = vadd.xlane.f32.xlu0 %v2399
      %v2401 = vpop.xlane.xlu0 %2400
      %v2402 = vrcp.pop %v2212
      %v2403 = vrcp.pop %v2215
      %v2404 = vrcp.pop %v2218
      %v2405 = vrcp.pop %v2221
      %v2406 = vrcp.pop %v2224
      %v2407 = vrcp.pop %v2227
      %v2408 = vrcp.pop %v2230
      %v2409 = vrcp.pop %v2233
      %v2410 = vrcp.pop %v2236
      %v2411 = vrcp.pop %v2239
      %v2412 = vrcp.pop %v2242
      %v2413 = vrcp.pop %v2245
      %v2414 = vrcp.pop %v2248
      %v2415 = vrcp.pop %v2251
      %v2416 = vrcp.pop %v2254
      %v2417 = vrcp.pop %v2257
      %v2418 = vrcp.pop %v2260
      %v2419 = vrcp.pop %v2263
      %v2420 = vrcp.pop %v2266
      %v2421 = vrcp.pop %v2269
      %v2422 = vrcp.pop %v2272
      %v2423 = vrcp.pop %v2275
      %v2424 = vrcp.pop %v2278
      %v2425 = vrcp.pop %v2281
      %v2426 = vrcp.pop %v2284
      %v2427 = vrcp.pop %v2287
      %v2428 = vrcp.pop %v2290
      %v2429 = vrcp.pop %v2293
      %v2430 = vrcp.pop %v2296
      %v2431 = vrcp.pop %v2299
      %v2432 = vrcp.pop %v2302
      %v2433 = vrcp.pop %v2305
      %v2434 = vrcp.pop %v2308
      %v2435 = vrcp.pop %v2311
      %v2436 = vrcp.pop %v2314
      %v2437 = vrcp.pop %v2317
      %v2438 = vrcp.pop %v2320
      %v2439 = vrcp.pop %v2323
      %v2440 = vrcp.pop %v2326
      %v2441 = vrcp.pop %v2329
      %v2442 = vrcp.pop %v2332
      %v2443 = vrcp.pop %v2335
      %v2444 = vrcp.pop %v2338
      %v2445 = vrcp.pop %v2341
      %v2446 = vrcp.pop %v2344
      %v2447 = vrcp.pop %v2347
      %v2448 = vrcp.pop %v2350
      %v2449 = vrcp.pop %v2353
      %v2450 = vrcp.pop %v2356
      %v2451 = vrcp.pop %v2359
      %v2452 = vrcp.pop %v2362
      %v2453 = vrcp.pop %v2365
      %v2454 = vrcp.pop %v2368
      %v2455 = vrcp.pop %v2371
      %v2456 = vrcp.pop %v2374
      %v2457 = vrcp.pop %v2377
      %v2458 = vrcp.pop %v2380
      %v2459 = vrcp.pop %v2383
      %v2460 = vrcp.pop %v2386
      %v2461 = vrcp.pop %v2389
      %v2462 = vrcp.pop %v2392
      %v2463 = vrcp.pop %v2395
      %v2464 = vrcp.pop %v2398
      %v2465 = vrcp.pop %v2401
      %v2466 = vmul.f32 %v2083, %v2402
      %v2467 = vmul.f32 %v2085, %v2403
      %v2468 = vmul.f32 %v2087, %v2404
      %v2469 = vmul.f32 %v2089, %v2405
      %v2470 = vmul.f32 %v2091, %v2406
      %v2471 = vmul.f32 %v2093, %v2407
      %v2472 = vmul.f32 %v2095, %v2408
      %v2473 = vmul.f32 %v2097, %v2409
      %v2474 = vmul.f32 %v2099, %v2410
      %v2475 = vmul.f32 %v2101, %v2411
      %v2476 = vmul.f32 %v2103, %v2412
      %v2477 = vmul.f32 %v2105, %v2413
      %v2478 = vmul.f32 %v2107, %v2414
      %v2479 = vmul.f32 %v2109, %v2415
      %v2480 = vmul.f32 %v2111, %v2416
      %v2481 = vmul.f32 %v2113, %v2417
      %v2482 = vmul.f32 %v2115, %v2418
      %v2483 = vmul.f32 %v2117, %v2419
      %v2484 = vmul.f32 %v2119, %v2420
      %v2485 = vmul.f32 %v2121, %v2421
      %v2486 = vmul.f32 %v2123, %v2422
      %v2487 = vmul.f32 %v2125, %v2423
      %v2488 = vmul.f32 %v2127, %v2424
      %v2489 = vmul.f32 %v2129, %v2425
      %v2490 = vmul.f32 %v2131, %v2426
      %v2491 = vmul.f32 %v2133, %v2427
      %v2492 = vmul.f32 %v2135, %v2428
      %v2493 = vmul.f32 %v2137, %v2429
      %v2494 = vmul.f32 %v2139, %v2430
      %v2495 = vmul.f32 %v2141, %v2431
      %v2496 = vmul.f32 %v2143, %v2432
      %v2497 = vmul.f32 %v2145, %v2433
      %v2498 = vmul.f32 %v2147, %v2434
      %v2499 = vmul.f32 %v2149, %v2435
      %v2500 = vmul.f32 %v2151, %v2436
      %v2501 = vmul.f32 %v2153, %v2437
      %v2502 = vmul.f32 %v2155, %v2438
      %v2503 = vmul.f32 %v2157, %v2439
      %v2504 = vmul.f32 %v2159, %v2440
      %v2505 = vmul.f32 %v2161, %v2441
      %v2506 = vmul.f32 %v2163, %v2442
      %v2507 = vmul.f32 %v2165, %v2443
      %v2508 = vmul.f32 %v2167, %v2444
      %v2509 = vmul.f32 %v2169, %v2445
      %v2510 = vmul.f32 %v2171, %v2446
      %v2511 = vmul.f32 %v2173, %v2447
      %v2512 = vmul.f32 %v2175, %v2448
      %v2513 = vmul.f32 %v2177, %v2449
      %v2514 = vmul.f32 %v2179, %v2450
      %v2515 = vmul.f32 %v2181, %v2451
      %v2516 = vmul.f32 %v2183, %v2452
      %v2517 = vmul.f32 %v2185, %v2453
      %v2518 = vmul.f32 %v2187, %v2454
      %v2519 = vmul.f32 %v2189, %v2455
      %v2520 = vmul.f32 %v2191, %v2456
      %v2521 = vmul.f32 %v2193, %v2457
      %v2522 = vmul.f32 %v2195, %v2458
      %v2523 = vmul.f32 %v2197, %v2459
      %v2524 = vmul.f32 %v2199, %v2460
      %v2525 = vmul.f32 %v2201, %v2461
      %v2526 = vmul.f32 %v2203, %v2462
      %v2527 = vmul.f32 %v2205, %v2463
      %v2528 = vmul.f32 %v2207, %v2464
      %v2529 = vmul.f32 %v2209, %v2465
      %v2530 = vpack.c.bf16 %v2466, %v2466
      %v2531 = vpack.c.bf16 %v2467, %v2467
      %v2532 = vpack.c.bf16 %v2468, %v2468
      %v2533 = vpack.c.bf16 %v2469, %v2469
      %v2534 = vpack.c.bf16 %v2470, %v2470
      %v2535 = vpack.c.bf16 %v2471, %v2471
      %v2536 = vpack.c.bf16 %v2472, %v2472
      %v2537 = vpack.c.bf16 %v2473, %v2473
      %v2538 = vpack.c.bf16 %v2474, %v2474
      %v2539 = vpack.c.bf16 %v2475, %v2475
      %v2540 = vpack.c.bf16 %v2476, %v2476
      %v2541 = vpack.c.bf16 %v2477, %v2477
      %v2542 = vpack.c.bf16 %v2478, %v2478
      %v2543 = vpack.c.bf16 %v2479, %v2479
      %v2544 = vpack.c.bf16 %v2480, %v2480
      %v2545 = vpack.c.bf16 %v2481, %v2481
      %v2546 = vpack.c.bf16 %v2482, %v2482
      %v2547 = vpack.c.bf16 %v2483, %v2483
      %v2548 = vpack.c.bf16 %v2484, %v2484
      %v2549 = vpack.c.bf16 %v2485, %v2485
      %v2550 = vpack.c.bf16 %v2486, %v2486
      %v2551 = vpack.c.bf16 %v2487, %v2487
      %v2552 = vpack.c.bf16 %v2488, %v2488
      %v2553 = vpack.c.bf16 %v2489, %v2489
      %v2554 = vpack.c.bf16 %v2490, %v2490
      %v2555 = vpack.c.bf16 %v2491, %v2491
      %v2556 = vpack.c.bf16 %v2492, %v2492
      %v2557 = vpack.c.bf16 %v2493, %v2493
      %v2558 = vpack.c.bf16 %v2494, %v2494
      %v2559 = vpack.c.bf16 %v2495, %v2495
      %v2560 = vpack.c.bf16 %v2496, %v2496
      %v2561 = vpack.c.bf16 %v2497, %v2497
      %v2562 = vpack.c.bf16 %v2498, %v2498
      %v2563 = vpack.c.bf16 %v2499, %v2499
      %v2564 = vpack.c.bf16 %v2500, %v2500
      %v2565 = vpack.c.bf16 %v2501, %v2501
      %v2566 = vpack.c.bf16 %v2502, %v2502
      %v2567 = vpack.c.bf16 %v2503, %v2503
      %v2568 = vpack.c.bf16 %v2504, %v2504
      %v2569 = vpack.c.bf16 %v2505, %v2505
      %v2570 = vpack.c.bf16 %v2506, %v2506
      %v2571 = vpack.c.bf16 %v2507, %v2507
      %v2572 = vpack.c.bf16 %v2508, %v2508
      %v2573 = vpack.c.bf16 %v2509, %v2509
      %v2574 = vpack.c.bf16 %v2510, %v2510
      %v2575 = vpack.c.bf16 %v2511, %v2511
      %v2576 = vpack.c.bf16 %v2512, %v2512
      %v2577 = vpack.c.bf16 %v2513, %v2513
      %v2578 = vpack.c.bf16 %v2514, %v2514
      %v2579 = vpack.c.bf16 %v2515, %v2515
      %v2580 = vpack.c.bf16 %v2516, %v2516
      %v2581 = vpack.c.bf16 %v2517, %v2517
      %v2582 = vpack.c.bf16 %v2518, %v2518
      %v2583 = vpack.c.bf16 %v2519, %v2519
      %v2584 = vpack.c.bf16 %v2520, %v2520
      %v2585 = vpack.c.bf16 %v2521, %v2521
      %v2586 = vpack.c.bf16 %v2522, %v2522
      %v2587 = vpack.c.bf16 %v2523, %v2523
      %v2588 = vpack.c.bf16 %v2524, %v2524
      %v2589 = vpack.c.bf16 %v2525, %v2525
      %v2590 = vpack.c.bf16 %v2526, %v2526
      %v2591 = vpack.c.bf16 %v2527, %v2527
      %v2592 = vpack.c.bf16 %v2528, %v2528
      %v2593 = vpack.c.bf16 %v2529, %v2529
      %v2602 = vunpack.c.l.b16 %v2530
      %v2603 = vunpack.c.l.b16 %v2531
      %v2604 = vunpack.c.l.b16 %v2532
      %v2605 = vunpack.c.l.b16 %v2533
      %v2606 = vunpack.c.l.b16 %v2534
      %v2607 = vunpack.c.l.b16 %v2535
      %v2608 = vunpack.c.l.b16 %v2536
      %v2609 = vunpack.c.l.b16 %v2537
      %v2610 = vpack.c.b16 %v2603, %v2602
      %v2611 = vpack.c.b16 %v2605, %v2604
      %v2612 = vpack.c.b16 %v2607, %v2606
      %v2613 = vpack.c.b16 %v2609, %v2608
      %2614 = vrot.lane.b32.xlu0 %v1192, 120
      %v2615 = vpop.permute.xlu0 %2614
      %2616 = vrot.lane.b32.xlu0 %v1193, 120
      %v2617 = vpop.permute.xlu0 %2616
      %2618 = vrot.lane.b32.xlu0 %v1194, 120
      %v2619 = vpop.permute.xlu0 %2618
      %2620 = vrot.lane.b32.xlu0 %v1195, 120
      %v2621 = vpop.permute.xlu0 %2620
      %v2627 = vsel %vm1825, %v2610, 0
      %v2630 = vsel %vm1825, %v2611, 0
      %v2633 = vsel %vm1825, %v2612, 0
      %v2636 = vsel %vm1825, %v2613, 0
      %2638 = vmatpush.bf16.msra.mxu0 0
      %2639 = vmatpush.bf16.msra.mxu0 0
      %2640 = vmatpush.bf16.msra.mxu0 0
      %2641 = vmatpush.bf16.msra.mxu0 0
      %2642 = vmatpush.bf16.msra.mxu0 %v2621
      %2643 = vmatpush.bf16.msra.mxu0 %v2619
      %2644 = vmatpush.bf16.msra.mxu0 %v2617
      %2645 = vmatpush.bf16.msra.mxu0 %v2615
      %2646 = vmatmul.bf16.gmra.mxu0 %v2627
      %v2647 = vpop.f32.mrf.mxu0
      %v2648 = vadd.f32 0.0, %v2647
      %v2649 = vpop.f32.mrf.mxu0
      %v2650 = vadd.f32 0.0, %v2649
      %2651 = vmatmul.bf16.gmra.mxu0 %v2630
      %v2652 = vpop.f32.mrf.mxu0
      %v2653 = vadd.f32 0.0, %v2652
      %v2654 = vpop.f32.mrf.mxu0
      %v2655 = vadd.f32 0.0, %v2654
      %2656 = vmatmul.bf16.gmra.mxu0 %v2633
      %v2657 = vpop.f32.mrf.mxu0
      %v2658 = vadd.f32 0.0, %v2657
      %v2659 = vpop.f32.mrf.mxu0
      %v2660 = vadd.f32 0.0, %v2659
      %2661 = vmatmul.bf16.gmra.mxu0 %v2636
      %v2662 = vpop.f32.mrf.mxu0
      %v2663 = vadd.f32 0.0, %v2662
      %v2664 = vpop.f32.mrf.mxu0
      %v2665 = vadd.f32 0.0, %v2664
      %2666 = vdwg.mxu0
      %v2675 = vunpack.c.l.b16 %v2538
      %v2676 = vunpack.c.l.b16 %v2539
      %v2677 = vunpack.c.l.b16 %v2540
      %v2678 = vunpack.c.l.b16 %v2541
      %v2679 = vunpack.c.l.b16 %v2542
      %v2680 = vunpack.c.l.b16 %v2543
      %v2681 = vunpack.c.l.b16 %v2544
      %v2682 = vunpack.c.l.b16 %v2545
      %v2683 = vpack.c.b16 %v2676, %v2675
      %v2684 = vpack.c.b16 %v2678, %v2677
      %v2685 = vpack.c.b16 %v2680, %v2679
      %v2686 = vpack.c.b16 %v2682, %v2681
      %2687 = vrot.lane.b32.xlu0 %v1274, 120
      %v2688 = vpop.permute.xlu0 %2687
      %2689 = vrot.lane.b32.xlu0 %v1275, 120
      %v2690 = vpop.permute.xlu0 %2689
      %2691 = vrot.lane.b32.xlu0 %v1276, 120
      %v2692 = vpop.permute.xlu0 %2691
      %2693 = vrot.lane.b32.xlu0 %v1277, 120
      %v2694 = vpop.permute.xlu0 %2693
      %v2700 = vsel %vm1825, %v2683, 0
      %v2703 = vsel %vm1825, %v2684, 0
      %v2706 = vsel %vm1825, %v2685, 0
      %v2709 = vsel %vm1825, %v2686, 0
      %2711 = vmatpush.bf16.msra.mxu0 0
      %2712 = vmatpush.bf16.msra.mxu0 0
      %2713 = vmatpush.bf16.msra.mxu0 0
      %2714 = vmatpush.bf16.msra.mxu0 0
      %2715 = vmatpush.bf16.msra.mxu0 %v2694
      %2716 = vmatpush.bf16.msra.mxu0 %v2692
      %2717 = vmatpush.bf16.msra.mxu0 %v2690
      %2718 = vmatpush.bf16.msra.mxu0 %v2688
      %2719 = vmatmul.bf16.gmra.mxu0 %v2700
      %v2720 = vpop.f32.mrf.mxu0
      %v2721 = vadd.f32 0.0, %v2720
      %v2722 = vpop.f32.mrf.mxu0
      %v2723 = vadd.f32 0.0, %v2722
      %2724 = vmatmul.bf16.gmra.mxu0 %v2703
      %v2725 = vpop.f32.mrf.mxu0
      %v2726 = vadd.f32 0.0, %v2725
      %v2727 = vpop.f32.mrf.mxu0
      %v2728 = vadd.f32 0.0, %v2727
      %2729 = vmatmul.bf16.gmra.mxu0 %v2706
      %v2730 = vpop.f32.mrf.mxu0
      %v2731 = vadd.f32 0.0, %v2730
      %v2732 = vpop.f32.mrf.mxu0
      %v2733 = vadd.f32 0.0, %v2732
      %2734 = vmatmul.bf16.gmra.mxu0 %v2709
      %v2735 = vpop.f32.mrf.mxu0
      %v2736 = vadd.f32 0.0, %v2735
      %v2737 = vpop.f32.mrf.mxu0
      %v2738 = vadd.f32 0.0, %v2737
      %2739 = vdwg.mxu0
      %v2748 = vunpack.c.l.b16 %v2546
      %v2749 = vunpack.c.l.b16 %v2547
      %v2750 = vunpack.c.l.b16 %v2548
      %v2751 = vunpack.c.l.b16 %v2549
      %v2752 = vunpack.c.l.b16 %v2550
      %v2753 = vunpack.c.l.b16 %v2551
      %v2754 = vunpack.c.l.b16 %v2552
      %v2755 = vunpack.c.l.b16 %v2553
      %v2756 = vpack.c.b16 %v2749, %v2748
      %v2757 = vpack.c.b16 %v2751, %v2750
      %v2758 = vpack.c.b16 %v2753, %v2752
      %v2759 = vpack.c.b16 %v2755, %v2754
      %2760 = vrot.lane.b32.xlu0 %v1355, 120
      %v2761 = vpop.permute.xlu0 %2760
      %2762 = vrot.lane.b32.xlu0 %v1356, 120
      %v2763 = vpop.permute.xlu0 %2762
      %2764 = vrot.lane.b32.xlu0 %v1357, 120
      %v2765 = vpop.permute.xlu0 %2764
      %2766 = vrot.lane.b32.xlu0 %v1358, 120
      %v2767 = vpop.permute.xlu0 %2766
      %v2773 = vsel %vm1825, %v2756, 0
      %v2776 = vsel %vm1825, %v2757, 0
      %v2779 = vsel %vm1825, %v2758, 0
      %v2782 = vsel %vm1825, %v2759, 0
      %2784 = vmatpush.bf16.msra.mxu0 0
      %2785 = vmatpush.bf16.msra.mxu0 0
      %2786 = vmatpush.bf16.msra.mxu0 0
      %2787 = vmatpush.bf16.msra.mxu0 0
      %2788 = vmatpush.bf16.msra.mxu0 %v2767
      %2789 = vmatpush.bf16.msra.mxu0 %v2765
      %2790 = vmatpush.bf16.msra.mxu0 %v2763
      %2791 = vmatpush.bf16.msra.mxu0 %v2761
      %2792 = vmatmul.bf16.gmra.mxu0 %v2773
      %v2793 = vpop.f32.mrf.mxu0
      %v2794 = vadd.f32 0.0, %v2793
      %v2795 = vpop.f32.mrf.mxu0
      %v2796 = vadd.f32 0.0, %v2795
      %2797 = vmatmul.bf16.gmra.mxu0 %v2776
      %v2798 = vpop.f32.mrf.mxu0
      %v2799 = vadd.f32 0.0, %v2798
      %v2800 = vpop.f32.mrf.mxu0
      %v2801 = vadd.f32 0.0, %v2800
      %2802 = vmatmul.bf16.gmra.mxu0 %v2779
      %v2803 = vpop.f32.mrf.mxu0
      %v2804 = vadd.f32 0.0, %v2803
      %v2805 = vpop.f32.mrf.mxu0
      %v2806 = vadd.f32 0.0, %v2805
      %2807 = vmatmul.bf16.gmra.mxu0 %v2782
      %v2808 = vpop.f32.mrf.mxu0
      %v2809 = vadd.f32 0.0, %v2808
      %v2810 = vpop.f32.mrf.mxu0
      %v2811 = vadd.f32 0.0, %v2810
      %2812 = vdwg.mxu0
      %v2821 = vunpack.c.l.b16 %v2554
      %v2822 = vunpack.c.l.b16 %v2555
      %v2823 = vunpack.c.l.b16 %v2556
      %v2824 = vunpack.c.l.b16 %v2557
      %v2825 = vunpack.c.l.b16 %v2558
      %v2826 = vunpack.c.l.b16 %v2559
      %v2827 = vunpack.c.l.b16 %v2560
      %v2828 = vunpack.c.l.b16 %v2561
      %v2829 = vpack.c.b16 %v2822, %v2821
      %v2830 = vpack.c.b16 %v2824, %v2823
      %v2831 = vpack.c.b16 %v2826, %v2825
      %v2832 = vpack.c.b16 %v2828, %v2827
      %2833 = vrot.lane.b32.xlu0 %v1436, 120
      %v2834 = vpop.permute.xlu0 %2833
      %2835 = vrot.lane.b32.xlu0 %v1437, 120
      %v2836 = vpop.permute.xlu0 %2835
      %2837 = vrot.lane.b32.xlu0 %v1438, 120
      %v2838 = vpop.permute.xlu0 %2837
      %2839 = vrot.lane.b32.xlu0 %v1439, 120
      %v2840 = vpop.permute.xlu0 %2839
      %v2846 = vsel %vm1825, %v2829, 0
      %v2849 = vsel %vm1825, %v2830, 0
      %v2852 = vsel %vm1825, %v2831, 0
      %v2855 = vsel %vm1825, %v2832, 0
      %2857 = vmatpush.bf16.msra.mxu0 0
      %2858 = vmatpush.bf16.msra.mxu0 0
      %2859 = vmatpush.bf16.msra.mxu0 0
      %2860 = vmatpush.bf16.msra.mxu0 0
      %2861 = vmatpush.bf16.msra.mxu0 %v2840
      %2862 = vmatpush.bf16.msra.mxu0 %v2838
      %2863 = vmatpush.bf16.msra.mxu0 %v2836
      %2864 = vmatpush.bf16.msra.mxu0 %v2834
      %2865 = vmatmul.bf16.gmra.mxu0 %v2846
      %v2866 = vpop.f32.mrf.mxu0
      %v2867 = vadd.f32 0.0, %v2866
      %v2868 = vpop.f32.mrf.mxu0
      %v2869 = vadd.f32 0.0, %v2868
      %2870 = vmatmul.bf16.gmra.mxu0 %v2849
      %v2871 = vpop.f32.mrf.mxu0
      %v2872 = vadd.f32 0.0, %v2871
      %v2873 = vpop.f32.mrf.mxu0
      %v2874 = vadd.f32 0.0, %v2873
      %2875 = vmatmul.bf16.gmra.mxu0 %v2852
      %v2876 = vpop.f32.mrf.mxu0
      %v2877 = vadd.f32 0.0, %v2876
      %v2878 = vpop.f32.mrf.mxu0
      %v2879 = vadd.f32 0.0, %v2878
      %2880 = vmatmul.bf16.gmra.mxu0 %v2855
      %v2881 = vpop.f32.mrf.mxu0
      %v2882 = vadd.f32 0.0, %v2881
      %v2883 = vpop.f32.mrf.mxu0
      %v2884 = vadd.f32 0.0, %v2883
      %2885 = vdwg.mxu0
      %v2894 = vunpack.c.l.b16 %v2562
      %v2895 = vunpack.c.l.b16 %v2563
      %v2896 = vunpack.c.l.b16 %v2564
      %v2897 = vunpack.c.l.b16 %v2565
      %v2898 = vunpack.c.l.b16 %v2566
      %v2899 = vunpack.c.l.b16 %v2567
      %v2900 = vunpack.c.l.b16 %v2568
      %v2901 = vunpack.c.l.b16 %v2569
      %v2902 = vpack.c.b16 %v2895, %v2894
      %v2903 = vpack.c.b16 %v2897, %v2896
      %v2904 = vpack.c.b16 %v2899, %v2898
      %v2905 = vpack.c.b16 %v2901, %v2900
      %2906 = vrot.lane.b32.xlu0 %v1517, 120
      %v2907 = vpop.permute.xlu0 %2906
      %2908 = vrot.lane.b32.xlu0 %v1518, 120
      %v2909 = vpop.permute.xlu0 %2908
      %2910 = vrot.lane.b32.xlu0 %v1519, 120
      %v2911 = vpop.permute.xlu0 %2910
      %2912 = vrot.lane.b32.xlu0 %v1520, 120
      %v2913 = vpop.permute.xlu0 %2912
      %v2919 = vsel %vm1825, %v2902, 0
      %v2922 = vsel %vm1825, %v2903, 0
      %v2925 = vsel %vm1825, %v2904, 0
      %v2928 = vsel %vm1825, %v2905, 0
      %2930 = vmatpush.bf16.msra.mxu0 0
      %2931 = vmatpush.bf16.msra.mxu0 0
      %2932 = vmatpush.bf16.msra.mxu0 0
      %2933 = vmatpush.bf16.msra.mxu0 0
      %2934 = vmatpush.bf16.msra.mxu0 %v2913
      %2935 = vmatpush.bf16.msra.mxu0 %v2911
      %2936 = vmatpush.bf16.msra.mxu0 %v2909
      %2937 = vmatpush.bf16.msra.mxu0 %v2907
      %2938 = vmatmul.bf16.gmra.mxu0 %v2919
      %v2939 = vpop.f32.mrf.mxu0
      %v2940 = vadd.f32 0.0, %v2939
      %v2941 = vpop.f32.mrf.mxu0
      %v2942 = vadd.f32 0.0, %v2941
      %2943 = vmatmul.bf16.gmra.mxu0 %v2922
      %v2944 = vpop.f32.mrf.mxu0
      %v2945 = vadd.f32 0.0, %v2944
      %v2946 = vpop.f32.mrf.mxu0
      %v2947 = vadd.f32 0.0, %v2946
      %2948 = vmatmul.bf16.gmra.mxu0 %v2925
      %v2949 = vpop.f32.mrf.mxu0
      %v2950 = vadd.f32 0.0, %v2949
      %v2951 = vpop.f32.mrf.mxu0
      %v2952 = vadd.f32 0.0, %v2951
      %2953 = vmatmul.bf16.gmra.mxu0 %v2928
      %v2954 = vpop.f32.mrf.mxu0
      %v2955 = vadd.f32 0.0, %v2954
      %v2956 = vpop.f32.mrf.mxu0
      %v2957 = vadd.f32 0.0, %v2956
      %2958 = vdwg.mxu0
      %v2967 = vunpack.c.l.b16 %v2570
      %v2968 = vunpack.c.l.b16 %v2571
      %v2969 = vunpack.c.l.b16 %v2572
      %v2970 = vunpack.c.l.b16 %v2573
      %v2971 = vunpack.c.l.b16 %v2574
      %v2972 = vunpack.c.l.b16 %v2575
      %v2973 = vunpack.c.l.b16 %v2576
      %v2974 = vunpack.c.l.b16 %v2577
      %v2975 = vpack.c.b16 %v2968, %v2967
      %v2976 = vpack.c.b16 %v2970, %v2969
      %v2977 = vpack.c.b16 %v2972, %v2971
      %v2978 = vpack.c.b16 %v2974, %v2973
      %2979 = vrot.lane.b32.xlu0 %v1598, 120
      %v2980 = vpop.permute.xlu0 %2979
      %2981 = vrot.lane.b32.xlu0 %v1599, 120
      %v2982 = vpop.permute.xlu0 %2981
      %2983 = vrot.lane.b32.xlu0 %v1600, 120
      %v2984 = vpop.permute.xlu0 %2983
      %2985 = vrot.lane.b32.xlu0 %v1601, 120
      %v2986 = vpop.permute.xlu0 %2985
      %v2992 = vsel %vm1825, %v2975, 0
      %v2995 = vsel %vm1825, %v2976, 0
      %v2998 = vsel %vm1825, %v2977, 0
      %v3001 = vsel %vm1825, %v2978, 0
      %3003 = vmatpush.bf16.msra.mxu0 0
      %3004 = vmatpush.bf16.msra.mxu0 0
      %3005 = vmatpush.bf16.msra.mxu0 0
      %3006 = vmatpush.bf16.msra.mxu0 0
      %3007 = vmatpush.bf16.msra.mxu0 %v2986
      %3008 = vmatpush.bf16.msra.mxu0 %v2984
      %3009 = vmatpush.bf16.msra.mxu0 %v2982
      %3010 = vmatpush.bf16.msra.mxu0 %v2980
      %3011 = vmatmul.bf16.gmra.mxu0 %v2992
      %v3012 = vpop.f32.mrf.mxu0
      %v3013 = vadd.f32 0.0, %v3012
      %v3014 = vpop.f32.mrf.mxu0
      %v3015 = vadd.f32 0.0, %v3014
      %3016 = vmatmul.bf16.gmra.mxu0 %v2995
      %v3017 = vpop.f32.mrf.mxu0
      %v3018 = vadd.f32 0.0, %v3017
      %v3019 = vpop.f32.mrf.mxu0
      %v3020 = vadd.f32 0.0, %v3019
      %3021 = vmatmul.bf16.gmra.mxu0 %v2998
      %v3022 = vpop.f32.mrf.mxu0
      %v3023 = vadd.f32 0.0, %v3022
      %v3024 = vpop.f32.mrf.mxu0
      %v3025 = vadd.f32 0.0, %v3024
      %3026 = vmatmul.bf16.gmra.mxu0 %v3001
      %v3027 = vpop.f32.mrf.mxu0
      %v3028 = vadd.f32 0.0, %v3027
      %v3029 = vpop.f32.mrf.mxu0
      %v3030 = vadd.f32 0.0, %v3029
      %3031 = vdwg.mxu0
      %v3040 = vunpack.c.l.b16 %v2578
      %v3041 = vunpack.c.l.b16 %v2579
      %v3042 = vunpack.c.l.b16 %v2580
      %v3043 = vunpack.c.l.b16 %v2581
      %v3044 = vunpack.c.l.b16 %v2582
      %v3045 = vunpack.c.l.b16 %v2583
      %v3046 = vunpack.c.l.b16 %v2584
      %v3047 = vunpack.c.l.b16 %v2585
      %v3048 = vpack.c.b16 %v3041, %v3040
      %v3049 = vpack.c.b16 %v3043, %v3042
      %v3050 = vpack.c.b16 %v3045, %v3044
      %v3051 = vpack.c.b16 %v3047, %v3046
      %3052 = vrot.lane.b32.xlu0 %v1679, 120
      %v3053 = vpop.permute.xlu0 %3052
      %3054 = vrot.lane.b32.xlu0 %v1680, 120
      %v3055 = vpop.permute.xlu0 %3054
      %3056 = vrot.lane.b32.xlu0 %v1681, 120
      %v3057 = vpop.permute.xlu0 %3056
      %3058 = vrot.lane.b32.xlu0 %v1682, 120
      %v3059 = vpop.permute.xlu0 %3058
      %v3065 = vsel %vm1825, %v3048, 0
      %v3068 = vsel %vm1825, %v3049, 0
      %v3071 = vsel %vm1825, %v3050, 0
      %v3074 = vsel %vm1825, %v3051, 0
      %3076 = vmatpush.bf16.msra.mxu0 0
      %3077 = vmatpush.bf16.msra.mxu0 0
      %3078 = vmatpush.bf16.msra.mxu0 0
      %3079 = vmatpush.bf16.msra.mxu0 0
      %3080 = vmatpush.bf16.msra.mxu0 %v3059
      %3081 = vmatpush.bf16.msra.mxu0 %v3057
      %3082 = vmatpush.bf16.msra.mxu0 %v3055
      %3083 = vmatpush.bf16.msra.mxu0 %v3053
      %3084 = vmatmul.bf16.gmra.mxu0 %v3065
      %v3085 = vpop.f32.mrf.mxu0
      %v3086 = vadd.f32 0.0, %v3085
      %v3087 = vpop.f32.mrf.mxu0
      %v3088 = vadd.f32 0.0, %v3087
      %3089 = vmatmul.bf16.gmra.mxu0 %v3068
      %v3090 = vpop.f32.mrf.mxu0
      %v3091 = vadd.f32 0.0, %v3090
      %v3092 = vpop.f32.mrf.mxu0
      %v3093 = vadd.f32 0.0, %v3092
      %3094 = vmatmul.bf16.gmra.mxu0 %v3071
      %v3095 = vpop.f32.mrf.mxu0
      %v3096 = vadd.f32 0.0, %v3095
      %v3097 = vpop.f32.mrf.mxu0
      %v3098 = vadd.f32 0.0, %v3097
      %3099 = vmatmul.bf16.gmra.mxu0 %v3074
      %v3100 = vpop.f32.mrf.mxu0
      %v3101 = vadd.f32 0.0, %v3100
      %v3102 = vpop.f32.mrf.mxu0
      %v3103 = vadd.f32 0.0, %v3102
      %3104 = vdwg.mxu0
      %v3113 = vunpack.c.l.b16 %v2586
      %v3114 = vunpack.c.l.b16 %v2587
      %v3115 = vunpack.c.l.b16 %v2588
      %v3116 = vunpack.c.l.b16 %v2589
      %v3117 = vunpack.c.l.b16 %v2590
      %v3118 = vunpack.c.l.b16 %v2591
      %v3119 = vunpack.c.l.b16 %v2592
      %v3120 = vunpack.c.l.b16 %v2593
      %v3121 = vpack.c.b16 %v3114, %v3113
      %v3122 = vpack.c.b16 %v3116, %v3115
      %v3123 = vpack.c.b16 %v3118, %v3117
      %v3124 = vpack.c.b16 %v3120, %v3119
      %3125 = vrot.lane.b32.xlu0 %v1760, 120
      %v3126 = vpop.permute.xlu0 %3125
      %3127 = vrot.lane.b32.xlu0 %v1761, 120
      %v3128 = vpop.permute.xlu0 %3127
      %3129 = vrot.lane.b32.xlu0 %v1762, 120
      %v3130 = vpop.permute.xlu0 %3129
      %3131 = vrot.lane.b32.xlu0 %v1763, 120
      %v3132 = vpop.permute.xlu0 %3131
      %v3138 = vsel %vm1825, %v3121, 0
      %v3141 = vsel %vm1825, %v3122, 0
      %v3144 = vsel %vm1825, %v3123, 0
      %v3147 = vsel %vm1825, %v3124, 0
      %3149 = vmatpush.bf16.msra.mxu0 0
      %3150 = vmatpush.bf16.msra.mxu0 0
      %3151 = vmatpush.bf16.msra.mxu0 0
      %3152 = vmatpush.bf16.msra.mxu0 0
      %3153 = vmatpush.bf16.msra.mxu0 %v3132
      %3154 = vmatpush.bf16.msra.mxu0 %v3130
      %3155 = vmatpush.bf16.msra.mxu0 %v3128
      %3156 = vmatpush.bf16.msra.mxu0 %v3126
      %3157 = vmatmul.bf16.gmra.mxu0 %v3138
      %v3158 = vpop.f32.mrf.mxu0
      %v3159 = vadd.f32 0.0, %v3158
      %v3160 = vpop.f32.mrf.mxu0
      %v3161 = vadd.f32 0.0, %v3160
      %3162 = vmatmul.bf16.gmra.mxu0 %v3141
      %v3163 = vpop.f32.mrf.mxu0
      %v3164 = vadd.f32 0.0, %v3163
      %v3165 = vpop.f32.mrf.mxu0
      %v3166 = vadd.f32 0.0, %v3165
      %3167 = vmatmul.bf16.gmra.mxu0 %v3144
      %v3168 = vpop.f32.mrf.mxu0
      %v3169 = vadd.f32 0.0, %v3168
      %v3170 = vpop.f32.mrf.mxu0
      %v3171 = vadd.f32 0.0, %v3170
      %3172 = vmatmul.bf16.gmra.mxu0 %v3147
      %v3173 = vpop.f32.mrf.mxu0
      %v3174 = vadd.f32 0.0, %v3173
      %v3175 = vpop.f32.mrf.mxu0
      %v3176 = vadd.f32 0.0, %v3175
      %3177 = vdwg.mxu0
      %v3178 = vpack.c.bf16 %v2648, %v2648
      %v3179 = vpack.c.bf16 %v2650, %v2650
      %v3180 = vpack.c.bf16 %v2653, %v2653
      %v3181 = vpack.c.bf16 %v2655, %v2655
      %v3182 = vpack.c.bf16 %v2658, %v2658
      %v3183 = vpack.c.bf16 %v2660, %v2660
      %v3184 = vpack.c.bf16 %v2663, %v2663
      %v3185 = vpack.c.bf16 %v2665, %v2665
      %v3186 = vpack.c.bf16 %v2721, %v2721
      %v3187 = vpack.c.bf16 %v2723, %v2723
      %v3188 = vpack.c.bf16 %v2726, %v2726
      %v3189 = vpack.c.bf16 %v2728, %v2728
      %v3190 = vpack.c.bf16 %v2731, %v2731
      %v3191 = vpack.c.bf16 %v2733, %v2733
      %v3192 = vpack.c.bf16 %v2736, %v2736
      %v3193 = vpack.c.bf16 %v2738, %v2738
      %v3194 = vpack.c.bf16 %v2794, %v2794
      %v3195 = vpack.c.bf16 %v2796, %v2796
      %v3196 = vpack.c.bf16 %v2799, %v2799
      %v3197 = vpack.c.bf16 %v2801, %v2801
      %v3198 = vpack.c.bf16 %v2804, %v2804
      %v3199 = vpack.c.bf16 %v2806, %v2806
      %v3200 = vpack.c.bf16 %v2809, %v2809
      %v3201 = vpack.c.bf16 %v2811, %v2811
      %v3202 = vpack.c.bf16 %v2867, %v2867
      %v3203 = vpack.c.bf16 %v2869, %v2869
      %v3204 = vpack.c.bf16 %v2872, %v2872
      %v3205 = vpack.c.bf16 %v2874, %v2874
      %v3206 = vpack.c.bf16 %v2877, %v2877
      %v3207 = vpack.c.bf16 %v2879, %v2879
      %v3208 = vpack.c.bf16 %v2882, %v2882
      %v3209 = vpack.c.bf16 %v2884, %v2884
      %v3210 = vpack.c.bf16 %v2940, %v2940
      %v3211 = vpack.c.bf16 %v2942, %v2942
      %v3212 = vpack.c.bf16 %v2945, %v2945
      %v3213 = vpack.c.bf16 %v2947, %v2947
      %v3214 = vpack.c.bf16 %v2950, %v2950
      %v3215 = vpack.c.bf16 %v2952, %v2952
      %v3216 = vpack.c.bf16 %v2955, %v2955
      %v3217 = vpack.c.bf16 %v2957, %v2957
      %v3218 = vpack.c.bf16 %v3013, %v3013
      %v3219 = vpack.c.bf16 %v3015, %v3015
      %v3220 = vpack.c.bf16 %v3018, %v3018
      %v3221 = vpack.c.bf16 %v3020, %v3020
      %v3222 = vpack.c.bf16 %v3023, %v3023
      %v3223 = vpack.c.bf16 %v3025, %v3025
      %v3224 = vpack.c.bf16 %v3028, %v3028
      %v3225 = vpack.c.bf16 %v3030, %v3030
      %v3226 = vpack.c.bf16 %v3086, %v3086
      %v3227 = vpack.c.bf16 %v3088, %v3088
      %v3228 = vpack.c.bf16 %v3091, %v3091
      %v3229 = vpack.c.bf16 %v3093, %v3093
      %v3230 = vpack.c.bf16 %v3096, %v3096
      %v3231 = vpack.c.bf16 %v3098, %v3098
      %v3232 = vpack.c.bf16 %v3101, %v3101
      %v3233 = vpack.c.bf16 %v3103, %v3103
      %v3234 = vpack.c.bf16 %v3159, %v3159
      %v3235 = vpack.c.bf16 %v3161, %v3161
      %v3236 = vpack.c.bf16 %v3164, %v3164
      %v3237 = vpack.c.bf16 %v3166, %v3166
      %v3238 = vpack.c.bf16 %v3169, %v3169
      %v3239 = vpack.c.bf16 %v3171, %v3171
      %v3240 = vpack.c.bf16 %v3174, %v3174
      %v3241 = vpack.c.bf16 %v3176, %v3176
      %v3242 = vld [vmem:[%s4] sm:$0x3]
      %v3243 = vld [vmem:[%s4 + $0x2] sm:$0x3]
      %v3244 = vld [vmem:[%s4 + $0x4] sm:$0x3]
      %v3245 = vld [vmem:[%s4 + $0x6] sm:$0x3]
      %v3246 = vld [vmem:[%s4 + $0x8] sm:$0x3]
      %v3247 = vld [vmem:[%s4 + $0xa] sm:$0x3]
      %v3248 = vld [vmem:[%s4 + $0xc] sm:$0x3]
      %v3249 = vld [vmem:[%s4 + $0xe] sm:$0x3]
      %v3258 = vunpack.c.l.b16 %v3178
      %v3259 = vunpack.c.l.b16 %v3179
      %v3260 = vunpack.c.l.b16 %v3180
      %v3261 = vunpack.c.l.b16 %v3181
      %v3262 = vunpack.c.l.b16 %v3182
      %v3263 = vunpack.c.l.b16 %v3183
      %v3264 = vunpack.c.l.b16 %v3184
      %v3265 = vunpack.c.l.b16 %v3185
      %v3266 = vpack.c.b16 %v3259, %v3258
      %v3267 = vpack.c.b16 %v3261, %v3260
      %v3268 = vpack.c.b16 %v3263, %v3262
      %v3269 = vpack.c.b16 %v3265, %v3264
      %v3271 = vsel %vm1204, %v3266, 0
      %v3274 = vsel %vm1204, %v3267, 0
      %v3277 = vsel %vm1204, %v3268, 0
      %v3280 = vsel %vm1204, %v3269, 0
      %vm3282 = vcmask 1041408
      %v3284 = vsel %vm3282, %v3242, 0
      %3286 = vmatpush.bf16.msra.mxu0 0
      %3287 = vmatpush.bf16.msra.mxu0 0
      %3288 = vmatpush.bf16.msra.mxu0 0
      %3289 = vmatpush.bf16.msra.mxu0 0
      %3290 = vmatpush.bf16.msra.mxu0 0
      %3291 = vmatpush.bf16.msra.mxu0 0
      %3292 = vmatpush.bf16.msra.mxu0 0
      %3293 = vmatpush.bf16.msra.mxu0 %v3284
      %3294 = vmatmul.bf16.gmra.mxu0 %v3271
      %v3295 = vpop.f32.mrf.mxu0
      %v3296 = vadd.f32 0.0, %v3295
      %v3297 = vpop.f32.mrf.mxu0
      %v3298 = vadd.f32 0.0, %v3297
      %3299 = vmatmul.bf16.gmra.mxu0 %v3274
      %v3300 = vpop.f32.mrf.mxu0
      %v3301 = vadd.f32 0.0, %v3300
      %v3302 = vpop.f32.mrf.mxu0
      %v3303 = vadd.f32 0.0, %v3302
      %3304 = vmatmul.bf16.gmra.mxu0 %v3277
      %v3305 = vpop.f32.mrf.mxu0
      %v3306 = vadd.f32 0.0, %v3305
      %v3307 = vpop.f32.mrf.mxu0
      %v3308 = vadd.f32 0.0, %v3307
      %3309 = vmatmul.bf16.gmra.mxu0 %v3280
      %v3310 = vpop.f32.mrf.mxu0
      %v3311 = vadd.f32 0.0, %v3310
      %v3312 = vpop.f32.mrf.mxu0
      %v3313 = vadd.f32 0.0, %v3312
      %3314 = vdwg.mxu0
      %v3323 = vunpack.c.l.b16 %v3186
      %v3324 = vunpack.c.l.b16 %v3187
      %v3325 = vunpack.c.l.b16 %v3188
      %v3326 = vunpack.c.l.b16 %v3189
      %v3327 = vunpack.c.l.b16 %v3190
      %v3328 = vunpack.c.l.b16 %v3191
      %v3329 = vunpack.c.l.b16 %v3192
      %v3330 = vunpack.c.l.b16 %v3193
      %v3331 = vpack.c.b16 %v3324, %v3323
      %v3332 = vpack.c.b16 %v3326, %v3325
      %v3333 = vpack.c.b16 %v3328, %v3327
      %v3334 = vpack.c.b16 %v3330, %v3329
      %v3336 = vsel %vm1204, %v3331, 0
      %v3339 = vsel %vm1204, %v3332, 0
      %v3342 = vsel %vm1204, %v3333, 0
      %v3345 = vsel %vm1204, %v3334, 0
      %v3348 = vsel %vm3282, %v3243, 0
      %3350 = vmatpush.bf16.msra.mxu0 0
      %3351 = vmatpush.bf16.msra.mxu0 0
      %3352 = vmatpush.bf16.msra.mxu0 0
      %3353 = vmatpush.bf16.msra.mxu0 0
      %3354 = vmatpush.bf16.msra.mxu0 0
      %3355 = vmatpush.bf16.msra.mxu0 0
      %3356 = vmatpush.bf16.msra.mxu0 0
      %3357 = vmatpush.bf16.msra.mxu0 %v3348
      %3358 = vmatmul.bf16.gmra.mxu0 %v3336
      %v3359 = vpop.f32.mrf.mxu0
      %v3360 = vadd.f32 0.0, %v3359
      %v3361 = vpop.f32.mrf.mxu0
      %v3362 = vadd.f32 0.0, %v3361
      %3363 = vmatmul.bf16.gmra.mxu0 %v3339
      %v3364 = vpop.f32.mrf.mxu0
      %v3365 = vadd.f32 0.0, %v3364
      %v3366 = vpop.f32.mrf.mxu0
      %v3367 = vadd.f32 0.0, %v3366
      %3368 = vmatmul.bf16.gmra.mxu0 %v3342
      %v3369 = vpop.f32.mrf.mxu0
      %v3370 = vadd.f32 0.0, %v3369
      %v3371 = vpop.f32.mrf.mxu0
      %v3372 = vadd.f32 0.0, %v3371
      %3373 = vmatmul.bf16.gmra.mxu0 %v3345
      %v3374 = vpop.f32.mrf.mxu0
      %v3375 = vadd.f32 0.0, %v3374
      %v3376 = vpop.f32.mrf.mxu0
      %v3377 = vadd.f32 0.0, %v3376
      %3378 = vdwg.mxu0
      %v3387 = vunpack.c.l.b16 %v3194
      %v3388 = vunpack.c.l.b16 %v3195
      %v3389 = vunpack.c.l.b16 %v3196
      %v3390 = vunpack.c.l.b16 %v3197
      %v3391 = vunpack.c.l.b16 %v3198
      %v3392 = vunpack.c.l.b16 %v3199
      %v3393 = vunpack.c.l.b16 %v3200
      %v3394 = vunpack.c.l.b16 %v3201
      %v3395 = vpack.c.b16 %v3388, %v3387
      %v3396 = vpack.c.b16 %v3390, %v3389
      %v3397 = vpack.c.b16 %v3392, %v3391
      %v3398 = vpack.c.b16 %v3394, %v3393
      %v3400 = vsel %vm1204, %v3395, 0
      %v3403 = vsel %vm1204, %v3396, 0
      %v3406 = vsel %vm1204, %v3397, 0
      %v3409 = vsel %vm1204, %v3398, 0
      %v3412 = vsel %vm3282, %v3244, 0
      %3414 = vmatpush.bf16.msra.mxu0 0
      %3415 = vmatpush.bf16.msra.mxu0 0
      %3416 = vmatpush.bf16.msra.mxu0 0
      %3417 = vmatpush.bf16.msra.mxu0 0
      %3418 = vmatpush.bf16.msra.mxu0 0
      %3419 = vmatpush.bf16.msra.mxu0 0
      %3420 = vmatpush.bf16.msra.mxu0 0
      %3421 = vmatpush.bf16.msra.mxu0 %v3412
      %3422 = vmatmul.bf16.gmra.mxu0 %v3400
      %v3423 = vpop.f32.mrf.mxu0
      %v3424 = vadd.f32 0.0, %v3423
      %v3425 = vpop.f32.mrf.mxu0
      %v3426 = vadd.f32 0.0, %v3425
      %3427 = vmatmul.bf16.gmra.mxu0 %v3403
      %v3428 = vpop.f32.mrf.mxu0
      %v3429 = vadd.f32 0.0, %v3428
      %v3430 = vpop.f32.mrf.mxu0
      %v3431 = vadd.f32 0.0, %v3430
      %3432 = vmatmul.bf16.gmra.mxu0 %v3406
      %v3433 = vpop.f32.mrf.mxu0
      %v3434 = vadd.f32 0.0, %v3433
      %v3435 = vpop.f32.mrf.mxu0
      %v3436 = vadd.f32 0.0, %v3435
      %3437 = vmatmul.bf16.gmra.mxu0 %v3409
      %v3438 = vpop.f32.mrf.mxu0
      %v3439 = vadd.f32 0.0, %v3438
      %v3440 = vpop.f32.mrf.mxu0
      %v3441 = vadd.f32 0.0, %v3440
      %3442 = vdwg.mxu0
      %v3451 = vunpack.c.l.b16 %v3202
      %v3452 = vunpack.c.l.b16 %v3203
      %v3453 = vunpack.c.l.b16 %v3204
      %v3454 = vunpack.c.l.b16 %v3205
      %v3455 = vunpack.c.l.b16 %v3206
      %v3456 = vunpack.c.l.b16 %v3207
      %v3457 = vunpack.c.l.b16 %v3208
      %v3458 = vunpack.c.l.b16 %v3209
      %v3459 = vpack.c.b16 %v3452, %v3451
      %v3460 = vpack.c.b16 %v3454, %v3453
      %v3461 = vpack.c.b16 %v3456, %v3455
      %v3462 = vpack.c.b16 %v3458, %v3457
      %v3464 = vsel %vm1204, %v3459, 0
      %v3467 = vsel %vm1204, %v3460, 0
      %v3470 = vsel %vm1204, %v3461, 0
      %v3473 = vsel %vm1204, %v3462, 0
      %v3476 = vsel %vm3282, %v3245, 0
      %3478 = vmatpush.bf16.msra.mxu0 0
      %3479 = vmatpush.bf16.msra.mxu0 0
      %3480 = vmatpush.bf16.msra.mxu0 0
      %3481 = vmatpush.bf16.msra.mxu0 0
      %3482 = vmatpush.bf16.msra.mxu0 0
      %3483 = vmatpush.bf16.msra.mxu0 0
      %3484 = vmatpush.bf16.msra.mxu0 0
      %3485 = vmatpush.bf16.msra.mxu0 %v3476
      %3486 = vmatmul.bf16.gmra.mxu0 %v3464
      %v3487 = vpop.f32.mrf.mxu0
      %v3488 = vadd.f32 0.0, %v3487
      %v3489 = vpop.f32.mrf.mxu0
      %v3490 = vadd.f32 0.0, %v3489
      %3491 = vmatmul.bf16.gmra.mxu0 %v3467
      %v3492 = vpop.f32.mrf.mxu0
      %v3493 = vadd.f32 0.0, %v3492
      %v3494 = vpop.f32.mrf.mxu0
      %v3495 = vadd.f32 0.0, %v3494
      %3496 = vmatmul.bf16.gmra.mxu0 %v3470
      %v3497 = vpop.f32.mrf.mxu0
      %v3498 = vadd.f32 0.0, %v3497
      %v3499 = vpop.f32.mrf.mxu0
      %v3500 = vadd.f32 0.0, %v3499
      %3501 = vmatmul.bf16.gmra.mxu0 %v3473
      %v3502 = vpop.f32.mrf.mxu0
      %v3503 = vadd.f32 0.0, %v3502
      %v3504 = vpop.f32.mrf.mxu0
      %v3505 = vadd.f32 0.0, %v3504
      %3506 = vdwg.mxu0
      %v3515 = vunpack.c.l.b16 %v3210
      %v3516 = vunpack.c.l.b16 %v3211
      %v3517 = vunpack.c.l.b16 %v3212
      %v3518 = vunpack.c.l.b16 %v3213
      %v3519 = vunpack.c.l.b16 %v3214
      %v3520 = vunpack.c.l.b16 %v3215
      %v3521 = vunpack.c.l.b16 %v3216
      %v3522 = vunpack.c.l.b16 %v3217
      %v3523 = vpack.c.b16 %v3516, %v3515
      %v3524 = vpack.c.b16 %v3518, %v3517
      %v3525 = vpack.c.b16 %v3520, %v3519
      %v3526 = vpack.c.b16 %v3522, %v3521
      %v3528 = vsel %vm1204, %v3523, 0
      %v3531 = vsel %vm1204, %v3524, 0
      %v3534 = vsel %vm1204, %v3525, 0
      %v3537 = vsel %vm1204, %v3526, 0
      %v3540 = vsel %vm3282, %v3246, 0
      %3542 = vmatpush.bf16.msra.mxu0 0
      %3543 = vmatpush.bf16.msra.mxu0 0
      %3544 = vmatpush.bf16.msra.mxu0 0
      %3545 = vmatpush.bf16.msra.mxu0 0
      %3546 = vmatpush.bf16.msra.mxu0 0
      %3547 = vmatpush.bf16.msra.mxu0 0
      %3548 = vmatpush.bf16.msra.mxu0 0
      %3549 = vmatpush.bf16.msra.mxu0 %v3540
      %3550 = vmatmul.bf16.gmra.mxu0 %v3528
      %v3551 = vpop.f32.mrf.mxu0
      %v3552 = vadd.f32 0.0, %v3551
      %v3553 = vpop.f32.mrf.mxu0
      %v3554 = vadd.f32 0.0, %v3553
      %3555 = vmatmul.bf16.gmra.mxu0 %v3531
      %v3556 = vpop.f32.mrf.mxu0
      %v3557 = vadd.f32 0.0, %v3556
      %v3558 = vpop.f32.mrf.mxu0
      %v3559 = vadd.f32 0.0, %v3558
      %3560 = vmatmul.bf16.gmra.mxu0 %v3534
      %v3561 = vpop.f32.mrf.mxu0
      %v3562 = vadd.f32 0.0, %v3561
      %v3563 = vpop.f32.mrf.mxu0
      %v3564 = vadd.f32 0.0, %v3563
      %3565 = vmatmul.bf16.gmra.mxu0 %v3537
      %v3566 = vpop.f32.mrf.mxu0
      %v3567 = vadd.f32 0.0, %v3566
      %v3568 = vpop.f32.mrf.mxu0
      %v3569 = vadd.f32 0.0, %v3568
      %3570 = vdwg.mxu0
      %v3579 = vunpack.c.l.b16 %v3218
      %v3580 = vunpack.c.l.b16 %v3219
      %v3581 = vunpack.c.l.b16 %v3220
      %v3582 = vunpack.c.l.b16 %v3221
      %v3583 = vunpack.c.l.b16 %v3222
      %v3584 = vunpack.c.l.b16 %v3223
      %v3585 = vunpack.c.l.b16 %v3224
      %v3586 = vunpack.c.l.b16 %v3225
      %v3587 = vpack.c.b16 %v3580, %v3579
      %v3588 = vpack.c.b16 %v3582, %v3581
      %v3589 = vpack.c.b16 %v3584, %v3583
      %v3590 = vpack.c.b16 %v3586, %v3585
      %v3592 = vsel %vm1204, %v3587, 0
      %v3595 = vsel %vm1204, %v3588, 0
      %v3598 = vsel %vm1204, %v3589, 0
      %v3601 = vsel %vm1204, %v3590, 0
      %v3604 = vsel %vm3282, %v3247, 0
      %3606 = vmatpush.bf16.msra.mxu0 0
      %3607 = vmatpush.bf16.msra.mxu0 0
      %3608 = vmatpush.bf16.msra.mxu0 0
      %3609 = vmatpush.bf16.msra.mxu0 0
      %3610 = vmatpush.bf16.msra.mxu0 0
      %3611 = vmatpush.bf16.msra.mxu0 0
      %3612 = vmatpush.bf16.msra.mxu0 0
      %3613 = vmatpush.bf16.msra.mxu0 %v3604
      %3614 = vmatmul.bf16.gmra.mxu0 %v3592
      %v3615 = vpop.f32.mrf.mxu0
      %v3616 = vadd.f32 0.0, %v3615
      %v3617 = vpop.f32.mrf.mxu0
      %v3618 = vadd.f32 0.0, %v3617
      %3619 = vmatmul.bf16.gmra.mxu0 %v3595
      %v3620 = vpop.f32.mrf.mxu0
      %v3621 = vadd.f32 0.0, %v3620
      %v3622 = vpop.f32.mrf.mxu0
      %v3623 = vadd.f32 0.0, %v3622
      %3624 = vmatmul.bf16.gmra.mxu0 %v3598
      %v3625 = vpop.f32.mrf.mxu0
      %v3626 = vadd.f32 0.0, %v3625
      %v3627 = vpop.f32.mrf.mxu0
      %v3628 = vadd.f32 0.0, %v3627
      %3629 = vmatmul.bf16.gmra.mxu0 %v3601
      %v3630 = vpop.f32.mrf.mxu0
      %v3631 = vadd.f32 0.0, %v3630
      %v3632 = vpop.f32.mrf.mxu0
      %v3633 = vadd.f32 0.0, %v3632
      %3634 = vdwg.mxu0
      %v3643 = vunpack.c.l.b16 %v3226
      %v3644 = vunpack.c.l.b16 %v3227
      %v3645 = vunpack.c.l.b16 %v3228
      %v3646 = vunpack.c.l.b16 %v3229
      %v3647 = vunpack.c.l.b16 %v3230
      %v3648 = vunpack.c.l.b16 %v3231
      %v3649 = vunpack.c.l.b16 %v3232
      %v3650 = vunpack.c.l.b16 %v3233
      %v3651 = vpack.c.b16 %v3644, %v3643
      %v3652 = vpack.c.b16 %v3646, %v3645
      %v3653 = vpack.c.b16 %v3648, %v3647
      %v3654 = vpack.c.b16 %v3650, %v3649
      %v3656 = vsel %vm1204, %v3651, 0
      %v3659 = vsel %vm1204, %v3652, 0
      %v3662 = vsel %vm1204, %v3653, 0
      %v3665 = vsel %vm1204, %v3654, 0
      %v3668 = vsel %vm3282, %v3248, 0
      %3670 = vmatpush.bf16.msra.mxu0 0
      %3671 = vmatpush.bf16.msra.mxu0 0
      %3672 = vmatpush.bf16.msra.mxu0 0
      %3673 = vmatpush.bf16.msra.mxu0 0
      %3674 = vmatpush.bf16.msra.mxu0 0
      %3675 = vmatpush.bf16.msra.mxu0 0
      %3676 = vmatpush.bf16.msra.mxu0 0
      %3677 = vmatpush.bf16.msra.mxu0 %v3668
      %3678 = vmatmul.bf16.gmra.mxu0 %v3656
      %v3679 = vpop.f32.mrf.mxu0
      %v3680 = vadd.f32 0.0, %v3679
      %v3681 = vpop.f32.mrf.mxu0
      %v3682 = vadd.f32 0.0, %v3681
      %3683 = vmatmul.bf16.gmra.mxu0 %v3659
      %v3684 = vpop.f32.mrf.mxu0
      %v3685 = vadd.f32 0.0, %v3684
      %v3686 = vpop.f32.mrf.mxu0
      %v3687 = vadd.f32 0.0, %v3686
      %3688 = vmatmul.bf16.gmra.mxu0 %v3662
      %v3689 = vpop.f32.mrf.mxu0
      %v3690 = vadd.f32 0.0, %v3689
      %v3691 = vpop.f32.mrf.mxu0
      %v3692 = vadd.f32 0.0, %v3691
      %3693 = vmatmul.bf16.gmra.mxu0 %v3665
      %v3694 = vpop.f32.mrf.mxu0
      %v3695 = vadd.f32 0.0, %v3694
      %v3696 = vpop.f32.mrf.mxu0
      %v3697 = vadd.f32 0.0, %v3696
      %3698 = vdwg.mxu0
      %v3707 = vunpack.c.l.b16 %v3234
      %v3708 = vunpack.c.l.b16 %v3235
      %v3709 = vunpack.c.l.b16 %v3236
      %v3710 = vunpack.c.l.b16 %v3237
      %v3711 = vunpack.c.l.b16 %v3238
      %v3712 = vunpack.c.l.b16 %v3239
      %v3713 = vunpack.c.l.b16 %v3240
      %v3714 = vunpack.c.l.b16 %v3241
      %v3715 = vpack.c.b16 %v3708, %v3707
      %v3716 = vpack.c.b16 %v3710, %v3709
      %v3717 = vpack.c.b16 %v3712, %v3711
      %v3718 = vpack.c.b16 %v3714, %v3713
      %v3720 = vsel %vm1204, %v3715, 0
      %v3723 = vsel %vm1204, %v3716, 0
      %v3726 = vsel %vm1204, %v3717, 0
      %v3729 = vsel %vm1204, %v3718, 0
      %v3732 = vsel %vm3282, %v3249, 0
      %3734 = vmatpush.bf16.msra.mxu0 0
      %3735 = vmatpush.bf16.msra.mxu0 0
      %3736 = vmatpush.bf16.msra.mxu0 0
      %3737 = vmatpush.bf16.msra.mxu0 0
      %3738 = vmatpush.bf16.msra.mxu0 0
      %3739 = vmatpush.bf16.msra.mxu0 0
      %3740 = vmatpush.bf16.msra.mxu0 0
      %3741 = vmatpush.bf16.msra.mxu0 %v3732
      %3742 = vmatmul.bf16.gmra.mxu0 %v3720
      %v3743 = vpop.f32.mrf.mxu0
      %v3744 = vadd.f32 0.0, %v3743
      %v3745 = vpop.f32.mrf.mxu0
      %v3746 = vadd.f32 0.0, %v3745
      %3747 = vmatmul.bf16.gmra.mxu0 %v3723
      %v3748 = vpop.f32.mrf.mxu0
      %v3749 = vadd.f32 0.0, %v3748
      %v3750 = vpop.f32.mrf.mxu0
      %v3751 = vadd.f32 0.0, %v3750
      %3752 = vmatmul.bf16.gmra.mxu0 %v3726
      %v3753 = vpop.f32.mrf.mxu0
      %v3754 = vadd.f32 0.0, %v3753
      %v3755 = vpop.f32.mrf.mxu0
      %v3756 = vadd.f32 0.0, %v3755
      %3757 = vmatmul.bf16.gmra.mxu0 %v3729
      %v3758 = vpop.f32.mrf.mxu0
      %v3759 = vadd.f32 0.0, %v3758
      %v3760 = vpop.f32.mrf.mxu0
      %v3761 = vadd.f32 0.0, %v3760
      %3762 = vdwg.mxu0
      %v3763 = vsel %vm504, %v3296, 0.0
      %v3764 = vsel %vm504, %v3360, 0.0
      %v3765 = vadd.f32 %v3763, %v3764
      %v3766 = vsel %vm504, %v3424, 0.0
      %v3767 = vadd.f32 %v3765, %v3766
      %v3768 = vsel %vm504, %v3488, 0.0
      %v3769 = vadd.f32 %v3767, %v3768
      %v3770 = vsel %vm504, %v3552, 0.0
      %v3771 = vadd.f32 %v3769, %v3770
      %v3772 = vsel %vm504, %v3616, 0.0
      %v3773 = vadd.f32 %v3771, %v3772
      %v3774 = vsel %vm504, %v3680, 0.0
      %v3775 = vadd.f32 %v3773, %v3774
      %v3776 = vsel %vm504, %v3744, 0.0
      %v3777 = vadd.f32 %v3775, %v3776
      %v3778 = vsel %vm504, %v3298, 0.0
      %v3779 = vsel %vm504, %v3362, 0.0
      %v3780 = vadd.f32 %v3778, %v3779
      %v3781 = vsel %vm504, %v3426, 0.0
      %v3782 = vadd.f32 %v3780, %v3781
      %v3783 = vsel %vm504, %v3490, 0.0
      %v3784 = vadd.f32 %v3782, %v3783
      %v3785 = vsel %vm504, %v3554, 0.0
      %v3786 = vadd.f32 %v3784, %v3785
      %v3787 = vsel %vm504, %v3618, 0.0
      %v3788 = vadd.f32 %v3786, %v3787
      %v3789 = vsel %vm504, %v3682, 0.0
      %v3790 = vadd.f32 %v3788, %v3789
      %v3791 = vsel %vm504, %v3746, 0.0
      %v3792 = vadd.f32 %v3790, %v3791
      %v3793 = vsel %vm504, %v3301, 0.0
      %v3794 = vsel %vm504, %v3365, 0.0
      %v3795 = vadd.f32 %v3793, %v3794
      %v3796 = vsel %vm504, %v3429, 0.0
      %v3797 = vadd.f32 %v3795, %v3796
      %v3798 = vsel %vm504, %v3493, 0.0
      %v3799 = vadd.f32 %v3797, %v3798
      %v3800 = vsel %vm504, %v3557, 0.0
      %v3801 = vadd.f32 %v3799, %v3800
      %v3802 = vsel %vm504, %v3621, 0.0
      %v3803 = vadd.f32 %v3801, %v3802
      %v3804 = vsel %vm504, %v3685, 0.0
      %v3805 = vadd.f32 %v3803, %v3804
      %v3806 = vsel %vm504, %v3749, 0.0
      %v3807 = vadd.f32 %v3805, %v3806
      %v3808 = vsel %vm504, %v3303, 0.0
      %v3809 = vsel %vm504, %v3367, 0.0
      %v3810 = vadd.f32 %v3808, %v3809
      %v3811 = vsel %vm504, %v3431, 0.0
      %v3812 = vadd.f32 %v3810, %v3811
      %v3813 = vsel %vm504, %v3495, 0.0
      %v3814 = vadd.f32 %v3812, %v3813
      %v3815 = vsel %vm504, %v3559, 0.0
      %v3816 = vadd.f32 %v3814, %v3815
      %v3817 = vsel %vm504, %v3623, 0.0
      %v3818 = vadd.f32 %v3816, %v3817
      %v3819 = vsel %vm504, %v3687, 0.0
      %v3820 = vadd.f32 %v3818, %v3819
      %v3821 = vsel %vm504, %v3751, 0.0
      %v3822 = vadd.f32 %v3820, %v3821
      %v3823 = vsel %vm504, %v3306, 0.0
      %v3824 = vsel %vm504, %v3370, 0.0
      %v3825 = vadd.f32 %v3823, %v3824
      %v3826 = vsel %vm504, %v3434, 0.0
      %v3827 = vadd.f32 %v3825, %v3826
      %v3828 = vsel %vm504, %v3498, 0.0
      %v3829 = vadd.f32 %v3827, %v3828
      %v3830 = vsel %vm504, %v3562, 0.0
      %v3831 = vadd.f32 %v3829, %v3830
      %v3832 = vsel %vm504, %v3626, 0.0
      %v3833 = vadd.f32 %v3831, %v3832
      %v3834 = vsel %vm504, %v3690, 0.0
      %v3835 = vadd.f32 %v3833, %v3834
      %v3836 = vsel %vm504, %v3754, 0.0
      %v3837 = vadd.f32 %v3835, %v3836
      %v3838 = vsel %vm504, %v3308, 0.0
      %v3839 = vsel %vm504, %v3372, 0.0
      %v3840 = vadd.f32 %v3838, %v3839
      %v3841 = vsel %vm504, %v3436, 0.0
      %v3842 = vadd.f32 %v3840, %v3841
      %v3843 = vsel %vm504, %v3500, 0.0
      %v3844 = vadd.f32 %v3842, %v3843
      %v3845 = vsel %vm504, %v3564, 0.0
      %v3846 = vadd.f32 %v3844, %v3845
      %v3847 = vsel %vm504, %v3628, 0.0
      %v3848 = vadd.f32 %v3846, %v3847
      %v3849 = vsel %vm504, %v3692, 0.0
      %v3850 = vadd.f32 %v3848, %v3849
      %v3851 = vsel %vm504, %v3756, 0.0
      %v3852 = vadd.f32 %v3850, %v3851
      %v3853 = vsel %vm504, %v3311, 0.0
      %v3854 = vsel %vm504, %v3375, 0.0
      %v3855 = vadd.f32 %v3853, %v3854
      %v3856 = vsel %vm504, %v3439, 0.0
      %v3857 = vadd.f32 %v3855, %v3856
      %v3858 = vsel %vm504, %v3503, 0.0
      %v3859 = vadd.f32 %v3857, %v3858
      %v3860 = vsel %vm504, %v3567, 0.0
      %v3861 = vadd.f32 %v3859, %v3860
      %v3862 = vsel %vm504, %v3631, 0.0
      %v3863 = vadd.f32 %v3861, %v3862
      %v3864 = vsel %vm504, %v3695, 0.0
      %v3865 = vadd.f32 %v3863, %v3864
      %v3866 = vsel %vm504, %v3759, 0.0
      %v3867 = vadd.f32 %v3865, %v3866
      %v3868 = vsel %vm504, %v3313, 0.0
      %v3869 = vsel %vm504, %v3377, 0.0
      %v3870 = vadd.f32 %v3868, %v3869
      %v3871 = vsel %vm504, %v3441, 0.0
      %v3872 = vadd.f32 %v3870, %v3871
      %v3873 = vsel %vm504, %v3505, 0.0
      %v3874 = vadd.f32 %v3872, %v3873
      %v3875 = vsel %vm504, %v3569, 0.0
      %v3876 = vadd.f32 %v3874, %v3875
      %v3877 = vsel %vm504, %v3633, 0.0
      %v3878 = vadd.f32 %v3876, %v3877
      %v3879 = vsel %vm504, %v3697, 0.0
      %v3880 = vadd.f32 %v3878, %v3879
      %v3881 = vsel %vm504, %v3761, 0.0
      %v3882 = vadd.f32 %v3880, %v3881
      %v3883 = vld [vmem:[%s5] sm:$0x1]
      %v3885 = vperm.slane %v3883, 0
      %v3887 = vadd.f32 %v3777, %v3885
      %v3888 = vadd.f32 %v3792, %v3885
      %v3889 = vadd.f32 %v3807, %v3885
      %v3890 = vadd.f32 %v3822, %v3885
      %v3891 = vadd.f32 %v3837, %v3885
      %v3892 = vadd.f32 %v3852, %v3885
      %v3893 = vadd.f32 %v3867, %v3885
      %v3894 = vadd.f32 %v3882, %v3885
      %v3895 = vadd.f32 %v496, %v3887
      %v3896 = vadd.f32 %v497, %v3888
      %v3897 = vadd.f32 %v498, %v3889
      %v3898 = vadd.f32 %v499, %v3890
      %v3899 = vadd.f32 %v500, %v3891
      %v3900 = vadd.f32 %v501, %v3892
      %v3901 = vadd.f32 %v502, %v3893
      %v3902 = vadd.f32 %v503, %v3894
      %v3903 = vsel %vm504, %v3895, 0.0
      %3904 = vadd.xlane.f32.xlu0 %v3903
      %v3905 = vpop.xlane.xlu0 %3904
      %v3906 = vsel %vm504, %v3896, 0.0
      %3907 = vadd.xlane.f32.xlu0 %v3906
      %v3908 = vpop.xlane.xlu0 %3907
      %v3909 = vsel %vm504, %v3897, 0.0
      %3910 = vadd.xlane.f32.xlu0 %v3909
      %v3911 = vpop.xlane.xlu0 %3910
      %v3912 = vsel %vm504, %v3898, 0.0
      %3913 = vadd.xlane.f32.xlu0 %v3912
      %v3914 = vpop.xlane.xlu0 %3913
      %v3915 = vsel %vm504, %v3899, 0.0
      %3916 = vadd.xlane.f32.xlu0 %v3915
      %v3917 = vpop.xlane.xlu0 %3916
      %v3918 = vsel %vm504, %v3900, 0.0
      %3919 = vadd.xlane.f32.xlu0 %v3918
      %v3920 = vpop.xlane.xlu0 %3919
      %v3921 = vsel %vm504, %v3901, 0.0
      %3922 = vadd.xlane.f32.xlu0 %v3921
      %v3923 = vpop.xlane.xlu0 %3922
      %v3924 = vsel %vm504, %v3902, 0.0
      %3925 = vadd.xlane.f32.xlu0 %v3924
      %v3926 = vpop.xlane.xlu0 %3925
      %v3927 = vmul.f32 %v3905, %v535
      %v3928 = vmul.f32 %v3908, %v535
      %v3929 = vmul.f32 %v3911, %v535
      %v3930 = vmul.f32 %v3914, %v535
      %v3931 = vmul.f32 %v3917, %v535
      %v3932 = vmul.f32 %v3920, %v535
      %v3933 = vmul.f32 %v3923, %v535
      %v3934 = vmul.f32 %v3926, %v535
      %v3935 = vsub.f32 %v3895, %v3927
      %v3936 = vsub.f32 %v3896, %v3928
      %v3937 = vsub.f32 %v3897, %v3929
      %v3938 = vsub.f32 %v3898, %v3930
      %v3939 = vsub.f32 %v3899, %v3931
      %v3940 = vsub.f32 %v3900, %v3932
      %v3941 = vsub.f32 %v3901, %v3933
      %v3942 = vsub.f32 %v3902, %v3934
      %v3943 = vmul.f32 %v3935, %v3935
      %v3944 = vmul.f32 %v3936, %v3936
      %v3945 = vmul.f32 %v3937, %v3937
      %v3946 = vmul.f32 %v3938, %v3938
      %v3947 = vmul.f32 %v3939, %v3939
      %v3948 = vmul.f32 %v3940, %v3940
      %v3949 = vmul.f32 %v3941, %v3941
      %v3950 = vmul.f32 %v3942, %v3942
      %v3951 = vsel %vm504, %v3943, 0.0
      %3952 = vadd.xlane.f32.xlu0 %v3951
      %v3953 = vpop.xlane.xlu0 %3952
      %v3954 = vsel %vm504, %v3944, 0.0
      %3955 = vadd.xlane.f32.xlu0 %v3954
      %v3956 = vpop.xlane.xlu0 %3955
      %v3957 = vsel %vm504, %v3945, 0.0
      %3958 = vadd.xlane.f32.xlu0 %v3957
      %v3959 = vpop.xlane.xlu0 %3958
      %v3960 = vsel %vm504, %v3946, 0.0
      %3961 = vadd.xlane.f32.xlu0 %v3960
      %v3962 = vpop.xlane.xlu0 %3961
      %v3963 = vsel %vm504, %v3947, 0.0
      %3964 = vadd.xlane.f32.xlu0 %v3963
      %v3965 = vpop.xlane.xlu0 %3964
      %v3966 = vsel %vm504, %v3948, 0.0
      %3967 = vadd.xlane.f32.xlu0 %v3966
      %v3968 = vpop.xlane.xlu0 %3967
      %v3969 = vsel %vm504, %v3949, 0.0
      %3970 = vadd.xlane.f32.xlu0 %v3969
      %v3971 = vpop.xlane.xlu0 %3970
      %v3972 = vsel %vm504, %v3950, 0.0
      %3973 = vadd.xlane.f32.xlu0 %v3972
      %v3974 = vpop.xlane.xlu0 %3973
      %v3975 = vmul.f32 %v3953, %v535
      %v3976 = vmul.f32 %v3956, %v535
      %v3977 = vmul.f32 %v3959, %v535
      %v3978 = vmul.f32 %v3962, %v535
      %v3979 = vmul.f32 %v3965, %v535
      %v3980 = vmul.f32 %v3968, %v535
      %v3981 = vmul.f32 %v3971, %v535
      %v3982 = vmul.f32 %v3974, %v535
      %v3983 = vadd.f32 %v3975, 1e-05
      %v3984 = vadd.f32 %v3976, 1e-05
      %v3985 = vadd.f32 %v3977, 1e-05
      %v3986 = vadd.f32 %v3978, 1e-05
      %v3987 = vadd.f32 %v3979, 1e-05
      %v3988 = vadd.f32 %v3980, 1e-05
      %v3989 = vadd.f32 %v3981, 1e-05
      %v3990 = vadd.f32 %v3982, 1e-05
      %v3991 = vrsqrt.pop %v3983
      %v3992 = vmul.f32 %v3991, %v3983
      %v3993 = vmul.f32 %v3992, %v3991
      %v3994 = vmul.f32 0.5, %v3993
      %v3995 = vsub.f32 1.5, %v3994
      %v3996 = vmul.f32 %v3991, %v3995
      %vm3997 = vweird.f32 %v3983
      %vm3998 = vweird.f32 %v3991
      %vm3999 = vmor %vm3997, %vm3998
      %v4000 = vsel %vm3999, %v3991, %v3996
      %v4001 = vrsqrt.pop %v3984
      %v4002 = vmul.f32 %v4001, %v3984
      %v4003 = vmul.f32 %v4002, %v4001
      %v4004 = vmul.f32 0.5, %v4003
      %v4005 = vsub.f32 1.5, %v4004
      %v4006 = vmul.f32 %v4001, %v4005
      %vm4007 = vweird.f32 %v3984
      %vm4008 = vweird.f32 %v4001
      %vm4009 = vmor %vm4007, %vm4008
      %v4010 = vsel %vm4009, %v4001, %v4006
      %v4011 = vrsqrt.pop %v3985
      %v4012 = vmul.f32 %v4011, %v3985
      %v4013 = vmul.f32 %v4012, %v4011
      %v4014 = vmul.f32 0.5, %v4013
      %v4015 = vsub.f32 1.5, %v4014
      %v4016 = vmul.f32 %v4011, %v4015
      %vm4017 = vweird.f32 %v3985
      %vm4018 = vweird.f32 %v4011
      %vm4019 = vmor %vm4017, %vm4018
      %v4020 = vsel %vm4019, %v4011, %v4016
      %v4021 = vrsqrt.pop %v3986
      %v4022 = vmul.f32 %v4021, %v3986
      %v4023 = vmul.f32 %v4022, %v4021
      %v4024 = vmul.f32 0.5, %v4023
      %v4025 = vsub.f32 1.5, %v4024
      %v4026 = vmul.f32 %v4021, %v4025
      %vm4027 = vweird.f32 %v3986
      %vm4028 = vweird.f32 %v4021
      %vm4029 = vmor %vm4027, %vm4028
      %v4030 = vsel %vm4029, %v4021, %v4026
      %v4031 = vrsqrt.pop %v3987
      %v4032 = vmul.f32 %v4031, %v3987
      %v4033 = vmul.f32 %v4032, %v4031
      %v4034 = vmul.f32 0.5, %v4033
      %v4035 = vsub.f32 1.5, %v4034
      %v4036 = vmul.f32 %v4031, %v4035
      %vm4037 = vweird.f32 %v3987
      %vm4038 = vweird.f32 %v4031
      %vm4039 = vmor %vm4037, %vm4038
      %v4040 = vsel %vm4039, %v4031, %v4036
      %v4041 = vrsqrt.pop %v3988
      %v4042 = vmul.f32 %v4041, %v3988
      %v4043 = vmul.f32 %v4042, %v4041
      %v4044 = vmul.f32 0.5, %v4043
      %v4045 = vsub.f32 1.5, %v4044
      %v4046 = vmul.f32 %v4041, %v4045
      %vm4047 = vweird.f32 %v3988
      %vm4048 = vweird.f32 %v4041
      %vm4049 = vmor %vm4047, %vm4048
      %v4050 = vsel %vm4049, %v4041, %v4046
      %v4051 = vrsqrt.pop %v3989
      %v4052 = vmul.f32 %v4051, %v3989
      %v4053 = vmul.f32 %v4052, %v4051
      %v4054 = vmul.f32 0.5, %v4053
      %v4055 = vsub.f32 1.5, %v4054
      %v4056 = vmul.f32 %v4051, %v4055
      %vm4057 = vweird.f32 %v3989
      %vm4058 = vweird.f32 %v4051
      %vm4059 = vmor %vm4057, %vm4058
      %v4060 = vsel %vm4059, %v4051, %v4056
      %v4061 = vrsqrt.pop %v3990
      %v4062 = vmul.f32 %v4061, %v3990
      %v4063 = vmul.f32 %v4062, %v4061
      %v4064 = vmul.f32 0.5, %v4063
      %v4065 = vsub.f32 1.5, %v4064
      %v4066 = vmul.f32 %v4061, %v4065
      %vm4067 = vweird.f32 %v3990
      %vm4068 = vweird.f32 %v4061
      %vm4069 = vmor %vm4067, %vm4068
      %v4070 = vsel %vm4069, %v4061, %v4066
      %v4071 = vmul.f32 %v3935, %v4000
      %v4072 = vmul.f32 %v3936, %v4010
      %v4073 = vmul.f32 %v3937, %v4020
      %v4074 = vmul.f32 %v3938, %v4030
      %v4075 = vmul.f32 %v3939, %v4040
      %v4076 = vmul.f32 %v3940, %v4050
      %v4077 = vmul.f32 %v3941, %v4060
      %v4078 = vmul.f32 %v3942, %v4070
      %v4079 = vld [vmem:[%s6] sm:$0x1]
      %v4081 = vperm.slane %v4079, 0
      %v4083 = vmul.f32 %v4071, %v4081
      %v4084 = vmul.f32 %v4072, %v4081
      %v4085 = vmul.f32 %v4073, %v4081
      %v4086 = vmul.f32 %v4074, %v4081
      %v4087 = vmul.f32 %v4075, %v4081
      %v4088 = vmul.f32 %v4076, %v4081
      %v4089 = vmul.f32 %v4077, %v4081
      %v4090 = vmul.f32 %v4078, %v4081
      %v4091 = vld [vmem:[%s7] sm:$0x1]
      %v4093 = vperm.slane %v4091, 0
      %v4095 = vadd.f32 %v4083, %v4093
      %v4096 = vadd.f32 %v4084, %v4093
      %v4097 = vadd.f32 %v4085, %v4093
      %v4098 = vadd.f32 %v4086, %v4093
      %v4099 = vadd.f32 %v4087, %v4093
      %v4100 = vadd.f32 %v4088, %v4093
      %v4101 = vadd.f32 %v4089, %v4093
      %v4102 = vadd.f32 %v4090, %v4093
      %v4103 = vpack.c.bf16 %v4096, %v4095
      %v4104 = vpack.c.bf16 %v4098, %v4097
      %v4105 = vpack.c.bf16 %v4100, %v4099
      %v4106 = vpack.c.bf16 %v4102, %v4101
      %v4107 = vld [vmem:[%s8] sm:$0xf]
      %v4108 = vld [vmem:[%s8 + $0x4] sm:$0xf]
      %v4109 = vld [vmem:[%s8 + $0x8] sm:$0xf]
      %v4110 = vld [vmem:[%s8 + $0xc] sm:$0xf]
      %v4111 = vld [vmem:[%s9] sm:$0x1]
      %v4113 = vperm.slane %v4111, 0
      %v4119 = vunpack.c.l.b16 %v4107
      %v4120 = vunpack.c.l.b16 %v4108
      %v4121 = vunpack.c.l.b16 %v4109
      %v4122 = vunpack.c.l.b16 %v4110
      %v4123 = vpack.c.b16 %v4120, %v4119
      %v4124 = vpack.c.b16 %v4122, %v4121
      %v4128 = vsel %vm504, %v4103, 0
      %v4131 = vsel %vm504, %v4104, 0
      %v4134 = vsel %vm504, %v4105, 0
      %v4137 = vsel %vm504, %v4106, 0
      %4139 = vmatpush.bf16.msra.mxu0 0
      %4140 = vmatpush.bf16.msra.mxu0 0
      %4141 = vmatpush.bf16.msra.mxu0 0
      %4142 = vmatpush.bf16.msra.mxu0 0
      %4143 = vmatpush.bf16.msra.mxu0 0
      %4144 = vmatpush.bf16.msra.mxu0 0
      %4145 = vmatpush.bf16.msra.mxu0 %v4124
      %4146 = vmatpush.bf16.msra.mxu0 %v4123
      %4147 = vmatmul.bf16.gmra.mxu0 %v4128
      %v4148 = vpop.f32.mrf.mxu0
      %v4149 = vadd.f32 %v4113, %v4148
      %v4150 = vpop.f32.mrf.mxu0
      %v4151 = vadd.f32 %v4113, %v4150
      %4152 = vmatmul.bf16.gmra.mxu0 %v4131
      %v4153 = vpop.f32.mrf.mxu0
      %v4154 = vadd.f32 %v4113, %v4153
      %v4155 = vpop.f32.mrf.mxu0
      %v4156 = vadd.f32 %v4113, %v4155
      %4157 = vmatmul.bf16.gmra.mxu0 %v4134
      %v4158 = vpop.f32.mrf.mxu0
      %v4159 = vadd.f32 %v4113, %v4158
      %v4160 = vpop.f32.mrf.mxu0
      %v4161 = vadd.f32 %v4113, %v4160
      %4162 = vmatmul.bf16.gmra.mxu0 %v4137
      %v4163 = vpop.f32.mrf.mxu0
      %v4164 = vadd.f32 %v4113, %v4163
      %v4165 = vpop.f32.mrf.mxu0
      %v4166 = vadd.f32 %v4113, %v4165
      %4167 = vdwg.mxu0
      %v4168 = vld [vmem:[%s10] sm:$0xff]
      %v4169 = vld [vmem:[%s10 + $0x8] sm:$0x1]
      %v4170 = vld [vmem:[%s12] sm:$0xff]
      %v4171 = vld [vmem:[%s12 + $0x8] sm:$0xff]
      %v4172 = vld [vmem:[%s12 + $0x10] sm:$0xff]
      %v4173 = vld [vmem:[%s12 + $0x18] sm:$0xff]
      %v4174 = vld [vmem:[%s12 + $0x20] sm:$0xff]
      %v4175 = vld [vmem:[%s12 + $0x28] sm:$0xff]
      %v4176 = vld [vmem:[%s12 + $0x30] sm:$0xff]
      %v4177 = vld [vmem:[%s12 + $0x38] sm:$0xff]
      %v4178 = vperm.slane %v4168, 4
      %v4179 = vmul.f32 %v4149, %v4178
      %v4180 = vmul.f32 %v4151, %v4178
      %v4181 = vmul.f32 %v4154, %v4178
      %v4182 = vmul.f32 %v4156, %v4178
      %v4183 = vmul.f32 %v4159, %v4178
      %v4184 = vmul.f32 %v4161, %v4178
      %v4185 = vmul.f32 %v4164, %v4178
      %v4186 = vmul.f32 %v4166, %v4178
      %v4187 = vld [vmem:[%s11] sm:$0x1]
      %v4189 = vperm.slane %v4187, 0
      %v4191 = vadd.f32 %v4179, %v4189
      %v4192 = vadd.f32 %v4180, %v4189
      %v4193 = vadd.f32 %v4181, %v4189
      %v4194 = vadd.f32 %v4182, %v4189
      %v4195 = vadd.f32 %v4183, %v4189
      %v4196 = vadd.f32 %v4184, %v4189
      %v4197 = vadd.f32 %v4185, %v4189
      %v4198 = vadd.f32 %v4186, %v4189
      %v4199 = vrot.slane %v4149, 7
      %v4200 = vrot.slane %v4151, 7
      %v4201 = vrot.slane %v4154, 7
      %v4202 = vrot.slane %v4156, 7
      %v4203 = vrot.slane %v4159, 7
      %v4204 = vrot.slane %v4161, 7
      %v4205 = vrot.slane %v4164, 7
      %v4206 = vrot.slane %v4166, 7
      %v4207 = vlaneseq
      %v4208 = vshrl.u32 %v4207, 7
      %vm4209 = vcmp.lt.s32.totalorder %v4208, 1
      %v4210 = vsel %vm4209, %v4205, %v4206
      %v4211 = vsel %vm4209, %v4204, %v4205
      %v4212 = vsel %vm4209, %v4203, %v4204
      %v4213 = vsel %vm4209, %v4202, %v4203
      %v4214 = vsel %vm4209, %v4201, %v4202
      %v4215 = vsel %vm4209, %v4200, %v4201
      %v4216 = vsel %vm4209, %v4199, %v4200
      %v4217 = vsel %vm4209, %v4206, %v4199
      %v4218 = vperm.slane %v4168, 0
      %v4219 = vmul.f32 %v4210, %v4218
      %v4220 = vmul.f32 %v4217, %v4218
      %v4221 = vmul.f32 %v4216, %v4218
      %v4222 = vmul.f32 %v4215, %v4218
      %v4223 = vmul.f32 %v4214, %v4218
      %v4224 = vmul.f32 %v4213, %v4218
      %v4225 = vmul.f32 %v4212, %v4218
      %v4226 = vmul.f32 %v4211, %v4218
      %4228 = vset.pattern.permute.xlu0 0
      %4229 = vperm.xlu0 %4228, %v4170
      %v4230 = vpop.permute.xlu0 %4229
      %4233 = vset.pattern.permute.xlu0 0
      %4234 = vperm.xlu0 %4233, %v4171
      %v4235 = vpop.permute.xlu0 %4234
      %4238 = vset.pattern.permute.xlu0 0
      %4239 = vperm.xlu0 %4238, %v4172
      %v4240 = vpop.permute.xlu0 %4239
      %4243 = vset.pattern.permute.xlu0 0
      %4244 = vperm.xlu0 %4243, %v4173
      %v4245 = vpop.permute.xlu0 %4244
      %4248 = vset.pattern.permute.xlu0 0
      %4249 = vperm.xlu0 %4248, %v4174
      %v4250 = vpop.permute.xlu0 %4249
      %4253 = vset.pattern.permute.xlu0 0
      %4254 = vperm.xlu0 %4253, %v4175
      %v4255 = vpop.permute.xlu0 %4254
      %4258 = vset.pattern.permute.xlu0 0
      %4259 = vperm.xlu0 %4258, %v4176
      %v4260 = vpop.permute.xlu0 %4259
      %4263 = vset.pattern.permute.xlu0 0
      %4264 = vperm.xlu0 %4263, %v4177
      %v4265 = vpop.permute.xlu0 %4264
      %v4267 = vmul.f32 %v4219, %v4230
      %v4268 = vmul.f32 %v4220, %v4235
      %v4269 = vmul.f32 %v4221, %v4240
      %v4270 = vmul.f32 %v4222, %v4245
      %v4271 = vmul.f32 %v4223, %v4250
      %v4272 = vmul.f32 %v4224, %v4255
      %v4273 = vmul.f32 %v4225, %v4260
      %v4274 = vmul.f32 %v4226, %v4265
      %v4275 = vadd.f32 %v4191, %v4267
      %v4276 = vadd.f32 %v4192, %v4268
      %v4277 = vadd.f32 %v4193, %v4269
      %v4278 = vadd.f32 %v4194, %v4270
      %v4279 = vadd.f32 %v4195, %v4271
      %v4280 = vadd.f32 %v4196, %v4272
      %v4281 = vadd.f32 %v4197, %v4273
      %v4282 = vadd.f32 %v4198, %v4274
      %v4283 = vperm.slane %v4168, 1
      %v4284 = vmul.f32 %v4166, %v4283
      %v4285 = vmul.f32 %v4149, %v4283
      %v4286 = vmul.f32 %v4151, %v4283
      %v4287 = vmul.f32 %v4154, %v4283
      %v4288 = vmul.f32 %v4156, %v4283
      %v4289 = vmul.f32 %v4159, %v4283
      %v4290 = vmul.f32 %v4161, %v4283
      %v4291 = vmul.f32 %v4164, %v4283
      %4292 = vset.pattern.permute.xlu0 1
      %4293 = vperm.xlu0 %4292, %v4170
      %v4294 = vpop.permute.xlu0 %4293
      %4296 = vset.pattern.permute.xlu0 1
      %4297 = vperm.xlu0 %4296, %v4171
      %v4298 = vpop.permute.xlu0 %4297
      %4300 = vset.pattern.permute.xlu0 1
      %4301 = vperm.xlu0 %4300, %v4172
      %v4302 = vpop.permute.xlu0 %4301
      %4304 = vset.pattern.permute.xlu0 1
      %4305 = vperm.xlu0 %4304, %v4173
      %v4306 = vpop.permute.xlu0 %4305
      %4308 = vset.pattern.permute.xlu0 1
      %4309 = vperm.xlu0 %4308, %v4174
      %v4310 = vpop.permute.xlu0 %4309
      %4312 = vset.pattern.permute.xlu0 1
      %4313 = vperm.xlu0 %4312, %v4175
      %v4314 = vpop.permute.xlu0 %4313
      %4316 = vset.pattern.permute.xlu0 1
      %4317 = vperm.xlu0 %4316, %v4176
      %v4318 = vpop.permute.xlu0 %4317
      %4320 = vset.pattern.permute.xlu0 1
      %4321 = vperm.xlu0 %4320, %v4177
      %v4322 = vpop.permute.xlu0 %4321
      %v4324 = vmul.f32 %v4284, %v4294
      %v4325 = vmul.f32 %v4285, %v4298
      %v4326 = vmul.f32 %v4286, %v4302
      %v4327 = vmul.f32 %v4287, %v4306
      %v4328 = vmul.f32 %v4288, %v4310
      %v4329 = vmul.f32 %v4289, %v4314
      %v4330 = vmul.f32 %v4290, %v4318
      %v4331 = vmul.f32 %v4291, %v4322
      %v4332 = vadd.f32 %v4275, %v4324
      %v4333 = vadd.f32 %v4276, %v4325
      %v4334 = vadd.f32 %v4277, %v4326
      %v4335 = vadd.f32 %v4278, %v4327
      %v4336 = vadd.f32 %v4279, %v4328
      %v4337 = vadd.f32 %v4280, %v4329
      %v4338 = vadd.f32 %v4281, %v4330
      %v4339 = vadd.f32 %v4282, %v4331
      %v4340 = vrot.slane %v4149, 1
      %v4341 = vrot.slane %v4151, 1
      %v4342 = vrot.slane %v4154, 1
      %v4343 = vrot.slane %v4156, 1
      %v4344 = vrot.slane %v4159, 1
      %v4345 = vrot.slane %v4161, 1
      %v4346 = vrot.slane %v4164, 1
      %v4347 = vrot.slane %v4166, 1
      %vm4348 = vcmp.lt.s32.totalorder %v4208, 7
      %v4349 = vsel %vm4348, %v4346, %v4347
      %v4350 = vsel %vm4348, %v4345, %v4346
      %v4351 = vsel %vm4348, %v4344, %v4345
      %v4352 = vsel %vm4348, %v4343, %v4344
      %v4353 = vsel %vm4348, %v4342, %v4343
      %v4354 = vsel %vm4348, %v4341, %v4342
      %v4355 = vsel %vm4348, %v4340, %v4341
      %v4356 = vsel %vm4348, %v4347, %v4340
      %v4357 = vperm.slane %v4168, 2
      %v4358 = vmul.f32 %v4356, %v4357
      %v4359 = vmul.f32 %v4355, %v4357
      %v4360 = vmul.f32 %v4354, %v4357
      %v4361 = vmul.f32 %v4353, %v4357
      %v4362 = vmul.f32 %v4352, %v4357
      %v4363 = vmul.f32 %v4351, %v4357
      %v4364 = vmul.f32 %v4350, %v4357
      %v4365 = vmul.f32 %v4349, %v4357
      %4366 = vset.pattern.permute.xlu0 2
      %4367 = vperm.xlu0 %4366, %v4170
      %v4368 = vpop.permute.xlu0 %4367
      %4370 = vset.pattern.permute.xlu0 2
      %4371 = vperm.xlu0 %4370, %v4171
      %v4372 = vpop.permute.xlu0 %4371
      %4374 = vset.pattern.permute.xlu0 2
      %4375 = vperm.xlu0 %4374, %v4172
      %v4376 = vpop.permute.xlu0 %4375
      %4378 = vset.pattern.permute.xlu0 2
      %4379 = vperm.xlu0 %4378, %v4173
      %v4380 = vpop.permute.xlu0 %4379
      %4382 = vset.pattern.permute.xlu0 2
      %4383 = vperm.xlu0 %4382, %v4174
      %v4384 = vpop.permute.xlu0 %4383
      %4386 = vset.pattern.permute.xlu0 2
      %4387 = vperm.xlu0 %4386, %v4175
      %v4388 = vpop.permute.xlu0 %4387
      %4390 = vset.pattern.permute.xlu0 2
      %4391 = vperm.xlu0 %4390, %v4176
      %v4392 = vpop.permute.xlu0 %4391
      %4394 = vset.pattern.permute.xlu0 2
      %4395 = vperm.xlu0 %4394, %v4177
      %v4396 = vpop.permute.xlu0 %4395
      %v4398 = vmul.f32 %v4358, %v4368
      %v4399 = vmul.f32 %v4359, %v4372
      %v4400 = vmul.f32 %v4360, %v4376
      %v4401 = vmul.f32 %v4361, %v4380
      %v4402 = vmul.f32 %v4362, %v4384
      %v4403 = vmul.f32 %v4363, %v4388
      %v4404 = vmul.f32 %v4364, %v4392
      %v4405 = vmul.f32 %v4365, %v4396
      %v4406 = vadd.f32 %v4332, %v4398
      %v4407 = vadd.f32 %v4333, %v4399
      %v4408 = vadd.f32 %v4334, %v4400
      %v4409 = vadd.f32 %v4335, %v4401
      %v4410 = vadd.f32 %v4336, %v4402
      %v4411 = vadd.f32 %v4337, %v4403
      %v4412 = vadd.f32 %v4338, %v4404
      %v4413 = vadd.f32 %v4339, %v4405
      %v4414 = vperm.slane %v4168, 3
      %v4415 = vmul.f32 %v4217, %v4414
      %v4416 = vmul.f32 %v4216, %v4414
      %v4417 = vmul.f32 %v4215, %v4414
      %v4418 = vmul.f32 %v4214, %v4414
      %v4419 = vmul.f32 %v4213, %v4414
      %v4420 = vmul.f32 %v4212, %v4414
      %v4421 = vmul.f32 %v4211, %v4414
      %v4422 = vmul.f32 %v4210, %v4414
      %4423 = vset.pattern.permute.xlu0 3
      %4424 = vperm.xlu0 %4423, %v4170
      %v4425 = vpop.permute.xlu0 %4424
      %4427 = vset.pattern.permute.xlu0 3
      %4428 = vperm.xlu0 %4427, %v4171
      %v4429 = vpop.permute.xlu0 %4428
      %4431 = vset.pattern.permute.xlu0 3
      %4432 = vperm.xlu0 %4431, %v4172
      %v4433 = vpop.permute.xlu0 %4432
      %4435 = vset.pattern.permute.xlu0 3
      %4436 = vperm.xlu0 %4435, %v4173
      %v4437 = vpop.permute.xlu0 %4436
      %4439 = vset.pattern.permute.xlu0 3
      %4440 = vperm.xlu0 %4439, %v4174
      %v4441 = vpop.permute.xlu0 %4440
      %4443 = vset.pattern.permute.xlu0 3
      %4444 = vperm.xlu0 %4443, %v4175
      %v4445 = vpop.permute.xlu0 %4444
      %4447 = vset.pattern.permute.xlu0 3
      %4448 = vperm.xlu0 %4447, %v4176
      %v4449 = vpop.permute.xlu0 %4448
      %4451 = vset.pattern.permute.xlu0 3
      %4452 = vperm.xlu0 %4451, %v4177
      %v4453 = vpop.permute.xlu0 %4452
      %v4455 = vmul.f32 %v4415, %v4425
      %v4456 = vmul.f32 %v4416, %v4429
      %v4457 = vmul.f32 %v4417, %v4433
      %v4458 = vmul.f32 %v4418, %v4437
      %v4459 = vmul.f32 %v4419, %v4441
      %v4460 = vmul.f32 %v4420, %v4445
      %v4461 = vmul.f32 %v4421, %v4449
      %v4462 = vmul.f32 %v4422, %v4453
      %v4463 = vadd.f32 %v4406, %v4455
      %v4464 = vadd.f32 %v4407, %v4456
      %v4465 = vadd.f32 %v4408, %v4457
      %v4466 = vadd.f32 %v4409, %v4458
      %v4467 = vadd.f32 %v4410, %v4459
      %v4468 = vadd.f32 %v4411, %v4460
      %v4469 = vadd.f32 %v4412, %v4461
      %v4470 = vadd.f32 %v4413, %v4462
      %v4471 = vperm.slane %v4168, 5
      %v4472 = vmul.f32 %v4355, %v4471
      %v4473 = vmul.f32 %v4354, %v4471
      %v4474 = vmul.f32 %v4353, %v4471
      %v4475 = vmul.f32 %v4352, %v4471
      %v4476 = vmul.f32 %v4351, %v4471
      %v4477 = vmul.f32 %v4350, %v4471
      %v4478 = vmul.f32 %v4349, %v4471
      %v4479 = vmul.f32 %v4356, %v4471
      %4480 = vset.pattern.permute.xlu0 5
      %4481 = vperm.xlu0 %4480, %v4170
      %v4482 = vpop.permute.xlu0 %4481
      %4484 = vset.pattern.permute.xlu0 5
      %4485 = vperm.xlu0 %4484, %v4171
      %v4486 = vpop.permute.xlu0 %4485
      %4488 = vset.pattern.permute.xlu0 5
      %4489 = vperm.xlu0 %4488, %v4172
      %v4490 = vpop.permute.xlu0 %4489
      %4492 = vset.pattern.permute.xlu0 5
      %4493 = vperm.xlu0 %4492, %v4173
      %v4494 = vpop.permute.xlu0 %4493
      %4496 = vset.pattern.permute.xlu0 5
      %4497 = vperm.xlu0 %4496, %v4174
      %v4498 = vpop.permute.xlu0 %4497
      %4500 = vset.pattern.permute.xlu0 5
      %4501 = vperm.xlu0 %4500, %v4175
      %v4502 = vpop.permute.xlu0 %4501
      %4504 = vset.pattern.permute.xlu0 5
      %4505 = vperm.xlu0 %4504, %v4176
      %v4506 = vpop.permute.xlu0 %4505
      %4508 = vset.pattern.permute.xlu0 5
      %4509 = vperm.xlu0 %4508, %v4177
      %v4510 = vpop.permute.xlu0 %4509
      %v4512 = vmul.f32 %v4472, %v4482
      %v4513 = vmul.f32 %v4473, %v4486
      %v4514 = vmul.f32 %v4474, %v4490
      %v4515 = vmul.f32 %v4475, %v4494
      %v4516 = vmul.f32 %v4476, %v4498
      %v4517 = vmul.f32 %v4477, %v4502
      %v4518 = vmul.f32 %v4478, %v4506
      %v4519 = vmul.f32 %v4479, %v4510
      %v4520 = vadd.f32 %v4463, %v4512
      %v4521 = vadd.f32 %v4464, %v4513
      %v4522 = vadd.f32 %v4465, %v4514
      %v4523 = vadd.f32 %v4466, %v4515
      %v4524 = vadd.f32 %v4467, %v4516
      %v4525 = vadd.f32 %v4468, %v4517
      %v4526 = vadd.f32 %v4469, %v4518
      %v4527 = vadd.f32 %v4470, %v4519
      %v4528 = vperm.slane %v4168, 6
      %v4529 = vmul.f32 %v4216, %v4528
      %v4530 = vmul.f32 %v4215, %v4528
      %v4531 = vmul.f32 %v4214, %v4528
      %v4532 = vmul.f32 %v4213, %v4528
      %v4533 = vmul.f32 %v4212, %v4528
      %v4534 = vmul.f32 %v4211, %v4528
      %v4535 = vmul.f32 %v4210, %v4528
      %v4536 = vmul.f32 %v4217, %v4528
      %4537 = vset.pattern.permute.xlu0 6
      %4538 = vperm.xlu0 %4537, %v4170
      %v4539 = vpop.permute.xlu0 %4538
      %4541 = vset.pattern.permute.xlu0 6
      %4542 = vperm.xlu0 %4541, %v4171
      %v4543 = vpop.permute.xlu0 %4542
      %4545 = vset.pattern.permute.xlu0 6
      %4546 = vperm.xlu0 %4545, %v4172
      %v4547 = vpop.permute.xlu0 %4546
      %4549 = vset.pattern.permute.xlu0 6
      %4550 = vperm.xlu0 %4549, %v4173
      %v4551 = vpop.permute.xlu0 %4550
      %4553 = vset.pattern.permute.xlu0 6
      %4554 = vperm.xlu0 %4553, %v4174
      %v4555 = vpop.permute.xlu0 %4554
      %4557 = vset.pattern.permute.xlu0 6
      %4558 = vperm.xlu0 %4557, %v4175
      %v4559 = vpop.permute.xlu0 %4558
      %4561 = vset.pattern.permute.xlu0 6
      %4562 = vperm.xlu0 %4561, %v4176
      %v4563 = vpop.permute.xlu0 %4562
      %4565 = vset.pattern.permute.xlu0 6
      %4566 = vperm.xlu0 %4565, %v4177
      %v4567 = vpop.permute.xlu0 %4566
      %v4569 = vmul.f32 %v4529, %v4539
      %v4570 = vmul.f32 %v4530, %v4543
      %v4571 = vmul.f32 %v4531, %v4547
      %v4572 = vmul.f32 %v4532, %v4551
      %v4573 = vmul.f32 %v4533, %v4555
      %v4574 = vmul.f32 %v4534, %v4559
      %v4575 = vmul.f32 %v4535, %v4563
      %v4576 = vmul.f32 %v4536, %v4567
      %v4577 = vadd.f32 %v4520, %v4569
      %v4578 = vadd.f32 %v4521, %v4570
      %v4579 = vadd.f32 %v4522, %v4571
      %v4580 = vadd.f32 %v4523, %v4572
      %v4581 = vadd.f32 %v4524, %v4573
      %v4582 = vadd.f32 %v4525, %v4574
      %v4583 = vadd.f32 %v4526, %v4575
      %v4584 = vadd.f32 %v4527, %v4576
      %v4585 = vperm.slane %v4168, 7
      %v4586 = vmul.f32 %v4151, %v4585
      %v4587 = vmul.f32 %v4154, %v4585
      %v4588 = vmul.f32 %v4156, %v4585
      %v4589 = vmul.f32 %v4159, %v4585
      %v4590 = vmul.f32 %v4161, %v4585
      %v4591 = vmul.f32 %v4164, %v4585
      %v4592 = vmul.f32 %v4166, %v4585
      %v4593 = vmul.f32 %v4149, %v4585
      %4594 = vset.pattern.permute.xlu0 7
      %4595 = vperm.xlu0 %4594, %v4170
      %v4596 = vpop.permute.xlu0 %4595
      %4598 = vset.pattern.permute.xlu0 7
      %4599 = vperm.xlu0 %4598, %v4171
      %v4600 = vpop.permute.xlu0 %4599
      %4602 = vset.pattern.permute.xlu0 7
      %4603 = vperm.xlu0 %4602, %v4172
      %v4604 = vpop.permute.xlu0 %4603
      %4606 = vset.pattern.permute.xlu0 7
      %4607 = vperm.xlu0 %4606, %v4173
      %v4608 = vpop.permute.xlu0 %4607
      %4610 = vset.pattern.permute.xlu0 7
      %4611 = vperm.xlu0 %4610, %v4174
      %v4612 = vpop.permute.xlu0 %4611
      %4614 = vset.pattern.permute.xlu0 7
      %4615 = vperm.xlu0 %4614, %v4175
      %v4616 = vpop.permute.xlu0 %4615
      %4618 = vset.pattern.permute.xlu0 7
      %4619 = vperm.xlu0 %4618, %v4176
      %v4620 = vpop.permute.xlu0 %4619
      %4622 = vset.pattern.permute.xlu0 7
      %4623 = vperm.xlu0 %4622, %v4177
      %v4624 = vpop.permute.xlu0 %4623
      %v4626 = vmul.f32 %v4586, %v4596
      %v4627 = vmul.f32 %v4587, %v4600
      %v4628 = vmul.f32 %v4588, %v4604
      %v4629 = vmul.f32 %v4589, %v4608
      %v4630 = vmul.f32 %v4590, %v4612
      %v4631 = vmul.f32 %v4591, %v4616
      %v4632 = vmul.f32 %v4592, %v4620
      %v4633 = vmul.f32 %v4593, %v4624
      %v4634 = vadd.f32 %v4577, %v4626
      %v4635 = vadd.f32 %v4578, %v4627
      %v4636 = vadd.f32 %v4579, %v4628
      %v4637 = vadd.f32 %v4580, %v4629
      %v4638 = vadd.f32 %v4581, %v4630
      %v4639 = vadd.f32 %v4582, %v4631
      %v4640 = vadd.f32 %v4583, %v4632
      %v4641 = vadd.f32 %v4584, %v4633
      %v4642 = vperm.slane %v4169, 0
      %v4643 = vmul.f32 %v4354, %v4642
      %v4644 = vmul.f32 %v4353, %v4642
      %v4645 = vmul.f32 %v4352, %v4642
      %v4646 = vmul.f32 %v4351, %v4642
      %v4647 = vmul.f32 %v4350, %v4642
      %v4648 = vmul.f32 %v4349, %v4642
      %v4649 = vmul.f32 %v4356, %v4642
      %v4650 = vmul.f32 %v4355, %v4642
      %4651 = vset.pattern.permute.xlu0 8
      %4652 = vperm.xlu0 %4651, %v4170
      %v4653 = vpop.permute.xlu0 %4652
      %4655 = vset.pattern.permute.xlu0 8
      %4656 = vperm.xlu0 %4655, %v4171
      %v4657 = vpop.permute.xlu0 %4656
      %4659 = vset.pattern.permute.xlu0 8
      %4660 = vperm.xlu0 %4659, %v4172
      %v4661 = vpop.permute.xlu0 %4660
      %4663 = vset.pattern.permute.xlu0 8
      %4664 = vperm.xlu0 %4663, %v4173
      %v4665 = vpop.permute.xlu0 %4664
      %4667 = vset.pattern.permute.xlu0 8
      %4668 = vperm.xlu0 %4667, %v4174
      %v4669 = vpop.permute.xlu0 %4668
      %4671 = vset.pattern.permute.xlu0 8
      %4672 = vperm.xlu0 %4671, %v4175
      %v4673 = vpop.permute.xlu0 %4672
      %4675 = vset.pattern.permute.xlu0 8
      %4676 = vperm.xlu0 %4675, %v4176
      %v4677 = vpop.permute.xlu0 %4676
      %4679 = vset.pattern.permute.xlu0 8
      %4680 = vperm.xlu0 %4679, %v4177
      %v4681 = vpop.permute.xlu0 %4680
      %v4683 = vmul.f32 %v4643, %v4653
      %v4684 = vmul.f32 %v4644, %v4657
      %v4685 = vmul.f32 %v4645, %v4661
      %v4686 = vmul.f32 %v4646, %v4665
      %v4687 = vmul.f32 %v4647, %v4669
      %v4688 = vmul.f32 %v4648, %v4673
      %v4689 = vmul.f32 %v4649, %v4677
      %v4690 = vmul.f32 %v4650, %v4681
      %v4691 = vadd.f32 %v4634, %v4683
      %v4692 = vadd.f32 %v4635, %v4684
      %v4693 = vadd.f32 %v4636, %v4685
      %v4694 = vadd.f32 %v4637, %v4686
      %v4695 = vadd.f32 %v4638, %v4687
      %v4696 = vadd.f32 %v4639, %v4688
      %v4697 = vadd.f32 %v4640, %v4689
      %v4698 = vadd.f32 %v4641, %v4690
      %v4699 = vmul.f32 %v4691, 0.5
      %v4700 = vmul.f32 %v4692, 0.5
      %v4701 = vmul.f32 %v4693, 0.5
      %v4702 = vmul.f32 %v4694, 0.5
      %v4703 = vmul.f32 %v4695, 0.5
      %v4704 = vmul.f32 %v4696, 0.5
      %v4705 = vmul.f32 %v4697, 0.5
      %v4706 = vmul.f32 %v4698, 0.5
      %v4707 = vmul.f32 %v4691, 0.044715
      %v4708 = vmul.f32 %v4692, 0.044715
      %v4709 = vmul.f32 %v4693, 0.044715
      %v4710 = vmul.f32 %v4694, 0.044715
      %v4711 = vmul.f32 %v4695, 0.044715
      %v4712 = vmul.f32 %v4696, 0.044715
      %v4713 = vmul.f32 %v4697, 0.044715
      %v4714 = vmul.f32 %v4698, 0.044715
      %v4715 = vmul.f32 %v4707, %v4691
      %v4716 = vmul.f32 %v4708, %v4692
      %v4717 = vmul.f32 %v4709, %v4693
      %v4718 = vmul.f32 %v4710, %v4694
      %v4719 = vmul.f32 %v4711, %v4695
      %v4720 = vmul.f32 %v4712, %v4696
      %v4721 = vmul.f32 %v4713, %v4697
      %v4722 = vmul.f32 %v4714, %v4698
      %v4723 = vmul.f32 %v4715, %v4691
      %v4724 = vmul.f32 %v4716, %v4692
      %v4725 = vmul.f32 %v4717, %v4693
      %v4726 = vmul.f32 %v4718, %v4694
      %v4727 = vmul.f32 %v4719, %v4695
      %v4728 = vmul.f32 %v4720, %v4696
      %v4729 = vmul.f32 %v4721, %v4697
      %v4730 = vmul.f32 %v4722, %v4698
      %v4731 = vadd.f32 %v4691, %v4723
      %v4732 = vadd.f32 %v4692, %v4724
      %v4733 = vadd.f32 %v4693, %v4725
      %v4734 = vadd.f32 %v4694, %v4726
      %v4735 = vadd.f32 %v4695, %v4727
      %v4736 = vadd.f32 %v4696, %v4728
      %v4737 = vadd.f32 %v4697, %v4729
      %v4738 = vadd.f32 %v4698, %v4730
      %v4739 = vmul.f32 %v4731, 0.7978846
      %v4740 = vmul.f32 %v4732, 0.7978846
      %v4741 = vmul.f32 %v4733, 0.7978846
      %v4742 = vmul.f32 %v4734, 0.7978846
      %v4743 = vmul.f32 %v4735, 0.7978846
      %v4744 = vmul.f32 %v4736, 0.7978846
      %v4745 = vmul.f32 %v4737, 0.7978846
      %v4746 = vmul.f32 %v4738, 0.7978846
      %v4747 = vtanh.pop %v4739
      %v4748 = vtanh.pop %v4740
      %v4749 = vtanh.pop %v4741
      %v4750 = vtanh.pop %v4742
      %v4751 = vtanh.pop %v4743
      %v4752 = vtanh.pop %v4744
      %v4753 = vtanh.pop %v4745
      %v4754 = vtanh.pop %v4746
      %v4755 = vadd.f32 %v4747, 1.0
      %v4756 = vadd.f32 %v4748, 1.0
      %v4757 = vadd.f32 %v4749, 1.0
      %v4758 = vadd.f32 %v4750, 1.0
      %v4759 = vadd.f32 %v4751, 1.0
      %v4760 = vadd.f32 %v4752, 1.0
      %v4761 = vadd.f32 %v4753, 1.0
      %v4762 = vadd.f32 %v4754, 1.0
      %v4763 = vmul.f32 %v4699, %v4755
      %v4764 = vmul.f32 %v4700, %v4756
      %v4765 = vmul.f32 %v4701, %v4757
      %v4766 = vmul.f32 %v4702, %v4758
      %v4767 = vmul.f32 %v4703, %v4759
      %v4768 = vmul.f32 %v4704, %v4760
      %v4769 = vmul.f32 %v4705, %v4761
      %v4770 = vmul.f32 %v4706, %v4762
      %v4771 = vpack.c.bf16 %v4764, %v4763
      %v4772 = vpack.c.bf16 %v4766, %v4765
      %v4773 = vpack.c.bf16 %v4768, %v4767
      %v4774 = vpack.c.bf16 %v4770, %v4769
      %v4775 = vld [vmem:[%s13] sm:$0xf]
      %v4776 = vld [vmem:[%s13 + $0x4] sm:$0xf]
      %v4777 = vld [vmem:[%s13 + $0x8] sm:$0xf]
      %v4778 = vld [vmem:[%s13 + $0xc] sm:$0xf]
      %v4779 = vld [vmem:[%s13 + $0x10] sm:$0xf]
      %v4780 = vld [vmem:[%s13 + $0x14] sm:$0xf]
      %v4781 = vld [vmem:[%s13 + $0x18] sm:$0xf]
      %v4782 = vld [vmem:[%s13 + $0x1c] sm:$0xf]
      %v4783 = vld [vmem:[%s13 + $0x20] sm:$0xf]
      %v4784 = vld [vmem:[%s13 + $0x24] sm:$0xf]
      %v4785 = vld [vmem:[%s13 + $0x28] sm:$0xf]
      %v4786 = vld [vmem:[%s13 + $0x2c] sm:$0xf]
      %v4787 = vld [vmem:[%s13 + $0x30] sm:$0xf]
      %v4788 = vld [vmem:[%s13 + $0x34] sm:$0xf]
      %v4789 = vld [vmem:[%s13 + $0x38] sm:$0xf]
      %v4790 = vld [vmem:[%s13 + $0x3c] sm:$0xf]
      %v4791 = vld [vmem:[%s14] sm:$0x1]
      %v4793 = vperm.slane %v4791, 0
      %v4811 = vunpack.c.l.b16 %v4775
      %v4812 = vunpack.c.l.b16 %v4776
      %v4813 = vunpack.c.l.b16 %v4777
      %v4814 = vunpack.c.l.b16 %v4778
      %v4815 = vunpack.c.l.b16 %v4779
      %v4816 = vunpack.c.l.b16 %v4780
      %v4817 = vunpack.c.l.b16 %v4781
      %v4818 = vunpack.c.l.b16 %v4782
      %v4819 = vunpack.c.l.b16 %v4783
      %v4820 = vunpack.c.l.b16 %v4784
      %v4821 = vunpack.c.l.b16 %v4785
      %v4822 = vunpack.c.l.b16 %v4786
      %v4823 = vunpack.c.l.b16 %v4787
      %v4824 = vunpack.c.l.b16 %v4788
      %v4825 = vunpack.c.l.b16 %v4789
      %v4826 = vunpack.c.l.b16 %v4790
      %v4827 = vpack.c.b16 %v4812, %v4811
      %v4828 = vpack.c.b16 %v4814, %v4813
      %v4829 = vpack.c.b16 %v4816, %v4815
      %v4830 = vpack.c.b16 %v4818, %v4817
      %v4831 = vpack.c.b16 %v4820, %v4819
      %v4832 = vpack.c.b16 %v4822, %v4821
      %v4833 = vpack.c.b16 %v4824, %v4823
      %v4834 = vpack.c.b16 %v4826, %v4825
      %4843 = vmatpush.bf16.msra.mxu0 %v4834
      %4844 = vmatpush.bf16.msra.mxu0 %v4833
      %4845 = vmatpush.bf16.msra.mxu0 %v4832
      %4846 = vmatpush.bf16.msra.mxu0 %v4831
      %4847 = vmatpush.bf16.msra.mxu0 %v4830
      %4848 = vmatpush.bf16.msra.mxu0 %v4829
      %4849 = vmatpush.bf16.msra.mxu0 %v4828
      %4850 = vmatpush.bf16.msra.mxu0 %v4827
      %4851 = vmatmul.bf16.gmra.mxu0 %v4771
      %v4852 = vpop.f32.mrf.mxu0
      %v4853 = vadd.f32 %v4793, %v4852
      %v4854 = vpop.f32.mrf.mxu0
      %v4855 = vadd.f32 %v4793, %v4854
      %4856 = vmatmul.bf16.gmra.mxu0 %v4772
      %v4857 = vpop.f32.mrf.mxu0
      %v4858 = vadd.f32 %v4793, %v4857
      %v4859 = vpop.f32.mrf.mxu0
      %v4860 = vadd.f32 %v4793, %v4859
      %4861 = vmatmul.bf16.gmra.mxu0 %v4773
      %v4862 = vpop.f32.mrf.mxu0
      %v4863 = vadd.f32 %v4793, %v4862
      %v4864 = vpop.f32.mrf.mxu0
      %v4865 = vadd.f32 %v4793, %v4864
      %4866 = vmatmul.bf16.gmra.mxu0 %v4774
      %v4867 = vpop.f32.mrf.mxu0
      %v4868 = vadd.f32 %v4793, %v4867
      %v4869 = vpop.f32.mrf.mxu0
      %v4870 = vadd.f32 %v4793, %v4869
      %4871 = vdwg.mxu0
      %v4872 = vadd.f32 %v3895, %v4853
      %v4873 = vadd.f32 %v3896, %v4855
      %v4874 = vadd.f32 %v3897, %v4858
      %v4875 = vadd.f32 %v3898, %v4860
      %v4876 = vadd.f32 %v3899, %v4863
      %v4877 = vadd.f32 %v3900, %v4865
      %v4878 = vadd.f32 %v3901, %v4868
      %v4879 = vadd.f32 %v3902, %v4870
      %4880 = vst.msk [vmem:[%s494] sm:$0xff] %vm504, %v4872
      %4881 = vst.msk [vmem:[%s494 + $0x8] sm:$0xff] %vm504, %v4873
      %4882 = vst.msk [vmem:[%s494 + $0x10] sm:$0xff] %vm504, %v4874
      %4883 = vst.msk [vmem:[%s494 + $0x18] sm:$0xff] %vm504, %v4875
      %4884 = vst.msk [vmem:[%s494 + $0x20] sm:$0xff] %vm504, %v4876
      %4885 = vst.msk [vmem:[%s494 + $0x28] sm:$0xff] %vm504, %v4877
      %4886 = vst.msk [vmem:[%s494 + $0x30] sm:$0xff] %vm504, %v4878
      %4887 = vst.msk [vmem:[%s494 + $0x38] sm:$0xff] %vm504, %v4879
      %p4888 = scmp.lt.s32.totalorder %s26, 1
      %s4889 = scalar_select %p4888, %s26, 1
      %s4890 = smul.addr %s4889, 8
      %s4891 = smul.addr %s4890, 8
      %s4892 = scalar_lea.vmem %s15, %s4891
      // Predicated region
      $region81: #{tpu_custom_call.1} parent=79 // pred_check
        %p4893 = pneg %p364
      $region82: #{tpu_custom_call.1} parent=79 // pred_check_branch
        %4895 = sbr.rel (%p4893) target = $region84
      $region83: #{tpu_custom_call.1} parent=79 // pred_region
        _
      $region84: #{tpu_custom_call.1} parent=79 // pred_fallthru
        _
    $region80: #{tpu_custom_call.1} parent=5 // pred_fallthru
      _
    %p4896 = scmp.le.s32.totalorder 2, %s21
    // Predicated region
    $region85: #{tpu_custom_call.1} parent=5 // pred_check
      %p4897 = pneg %p4896
    $region86: #{tpu_custom_call.1} parent=5 // pred_check_branch
      %4899 = sbr.rel (%p4897) target = $region88
    $region87: #{tpu_custom_call.1} parent=5 // pred_region
      %s4900 = ssub.s32 %s21, 2
      // Predicated region
      $region89: #{tpu_custom_call.1} parent=87 // pred_check
        %p4901 = pneg %p370
      $region90: #{tpu_custom_call.1} parent=87 // pred_check_branch
        %4903 = sbr.rel (%p4901) target = $region92
      $region91: #{tpu_custom_call.1} parent=87 // pred_region
        %p4904 = scmp.lt.s32.totalorder %s27, 1
        %s4905 = scalar_select %p4904, %s27, 1
        %s4906 = smul.addr %s4905, 8
        %s4907 = smul.addr %s4906, 8
        %s4908 = scalar_lea.vmem %s15, %s4907
      $region92: #{tpu_custom_call.1} parent=87 // pred_fallthru
        _
    $region88: #{tpu_custom_call.1} parent=5 // pred_fallthru
      _
  $region6: #{tpu_custom_call.1} parent=0 // loop_footer
    %s25 = sadd.s32 1, %s21
  $region7: #{tpu_custom_call.1} parent=0 // loop_footer_branch
    %20 = sbr.rel target = $region3
  $region8: #{tpu_custom_call.1} parent=0 // loop_exit
    _

</llo_original>
